<compile_context>
chip_gen: v6e
topology: v6e:2x2x1
jax: 0.10.0
libtpu: 0.0.40
codegen_flags: <defaults>
</compile_context>

<pallas_src>
import numpy as np
import jax
import jax.numpy as jnp
from jax.experimental import pallas as pl
from jax.experimental.pallas import tpu as pltpu


# Matmul-operand dtype.  float32 keeps validation tight on all generations;
# flip to jnp.bfloat16 on v6e/v7x for full-rate MXU and halved weight /
# activation traffic (accumulation stays f32 via preferred_element_type, and
# all elementwise work stays f32, which is what v5e wants).
_MM_DTYPE = jnp.float32


def _mm(a, b):
    return jnp.dot(a.astype(b.dtype), b, preferred_element_type=jnp.float32)


# ---------------------------------------------------------------------------
# Fused forward kernel: one grid step processes TB images.
# Row index convention everywhere: row = (height index) * TB + (local batch).
# ---------------------------------------------------------------------------
def _cnn_kernel(x_ref, wb1_ref, b1_ref, cs1_ref, wb2_ref, b2_ref, cs2_ref,
                w3_ref, b3_ref, w4_ref, b4_ref, w5_ref, b5_ref, out_ref):
    tb = x_ref.shape[1]                                   # images per step

    # x_ref: (28, TB, 28), height-major.  Collapse to 2D (tile-aligned).
    x2 = x_ref[...].reshape(28 * tb, 28)

    # ---- conv1 (5x5, valid): 5 banded matmuls, accumulator = first tap -----
    h1 = _mm(x2[0:24 * tb], wb1_ref[0])
    for dy in range(1, 5):
        h1 = h1 + _mm(x2[dy * tb:(dy + 24) * tb], wb1_ref[dy])
    h1 = jnp.maximum(h1 + b1_ref[...], 0.0)               # (24*TB, 6*24)

    # ---- maxpool 2x2: rows via block pair-max, cols (+conv2 pad) via 0/1 ----
    h1_3 = h1.reshape(12, 2 * tb, 6 * 24)
    v1 = jnp.maximum(h1_3[:, :tb, :], h1_3[:, tb:, :]).reshape(12 * tb, 6 * 24)
    p1 = jnp.maximum(_mm(v1, cs1_ref[0]), _mm(v1, cs1_ref[1]))   # (12*TB, 6*14)

    # conv2's padding=1 in height: exact zero row-blocks on top and bottom.
    zrow = jnp.zeros((tb, 6 * 14), jnp.float32)
    p1p = jnp.concatenate([zrow, p1, zrow], axis=0)              # (14*TB, 84)

    # ---- conv2 (5x5, pad folded): 5 banded matmuls over all 6 channels -----
    h2 = _mm(p1p[0:10 * tb], wb2_ref[0])
    for dy in range(1, 5):
        h2 = h2 + _mm(p1p[dy * tb:(dy + 10) * tb], wb2_ref[dy])
    h2 = jnp.maximum(h2 + b2_ref[...], 0.0)                # (10*TB, 16*10)

    # ---- maxpool 2x2 -------------------------------------------------------
    h2_3 = h2.reshape(5, 2 * tb, 16 * 10)
    v2 = jnp.maximum(h2_3[:, :tb, :], h2_3[:, tb:, :]).reshape(5 * tb, 16 * 10)
    p2 = jnp.maximum(_mm(v2, cs2_ref[0]), _mm(v2, cs2_ref[1]))   # (5*TB, 16*5)

    # ---- fc1 (the (16,5,5)->400 flatten is folded into w3's row order) -----
    a1 = _mm(p2[0:tb], w3_ref[0])
    for i in range(1, 5):
        a1 = a1 + _mm(p2[i * tb:(i + 1) * tb], w3_ref[i])
    a1 = jnp.maximum(a1 + b3_ref[...], 0.0)                # (TB, 120)

    # ---- fc2 + ReLU, fc3 (output padded to 128 lanes -> lane-dense store) --
    a2 = jnp.maximum(_mm(a1, w4_ref[...]) + b4_ref[...], 0.0)    # (TB, 84)
    out_ref[...] = (_mm(a2, w5_ref[...]) + b5_ref[...]).astype(out_ref.dtype)


# ---------------------------------------------------------------------------
# One-time host-side repack of PyTorch-layout params into kernel operands
# ---------------------------------------------------------------------------
def _banded_conv_weights(w, wo):
    """(C_out, C_in, k, k) -> (k, C_in*W_in, C_out*W_out) per-tap banded mats.

    h[i*TB+b, co*wo+j] = sum_dy (input rows (i+dy)) @ WB[dy]
    reproduces the stride-1 convolution; all input channels share one K dim.
    """
    w = np.asarray(w, np.float32)
    cout, cin, k, _ = w.shape
    wp = wo + k - 1                                        # (padded) input width
    wb = np.zeros((k, cin, wp, cout * wo), np.float32)
    for co in range(cout):
        for ci in range(cin):
            for dy in range(k):
                for j in range(wo):
                    wb[dy, ci, j:j + k, co * wo + j] = w[co, ci, dy, :]
    return wb.reshape(k, cin * wp, cout * wo)


def _pool_col_selectors(wo, cout, pad):
    """Even/odd 0/1 column pickers for 2x2/stride-2 pooling over width, with
    an optional zero column border (conv2's padding=1) folded in exactly."""
    half = wo // 2
    wv = half + 2 * pad
    sel = np.zeros((2, cout * wo, cout * wv), np.float32)
    for co in range(cout):
        for c in range(half):
            sel[0, co * wo + 2 * c, co * wv + c + pad] = 1.0
            sel[1, co * wo + 2 * c + 1, co * wv + c + pad] = 1.0
    return sel


def prepare_params(p):
    fc1w = np.asarray(p["fc1_w"], np.float32)              # (120, 400)
    # w3[i, ci*5+j, f] == fc1_w[f, ci*25 + i*5 + j]  (flatten folded in)
    w3 = fc1w.reshape(120, 16, 5, 5).transpose(2, 1, 3, 0).reshape(5, 80, 120)
    w5p = np.zeros((84, 128), np.float32)
    w5p[:, :10] = np.asarray(p["fc3_w"], np.float32).T
    b5p = np.zeros((1, 128), np.float32)
    b5p[0, :10] = np.asarray(p["fc3_b"], np.float32)
    prep = {
        "wb1": _banded_conv_weights(p["conv1_w"], 24),      # (5, 28, 144)
        "b1": np.repeat(np.asarray(p["conv1_b"], np.float32), 24)[None, :],
        "cs1": _pool_col_selectors(24, 6, pad=1),           # (2, 144, 84)
        "wb2": _banded_conv_weights(p["conv2_w"], 10),      # (5, 84, 160)
        "b2": np.repeat(np.asarray(p["conv2_b"], np.float32), 10)[None, :],
        "cs2": _pool_col_selectors(10, 16, pad=0),          # (2, 160, 80)
        "w3": w3,                                           # (5, 80, 120)
        "b3": np.asarray(p["fc1_b"], np.float32)[None, :],
        "w4": np.asarray(p["fc2_w"], np.float32).T.copy(),  # (120, 84)
        "b4": np.asarray(p["fc2_b"], np.float32)[None, :],
        "w5": w5p,                                          # (84, 128) padded
        "b5": b5p,                                          # (1, 128) padded
    }
    mm_keys = {"wb1", "cs1", "wb2", "cs2", "w3", "w4", "w5"}
    return {k: jnp.asarray(v, _MM_DTYPE if k in mm_keys else jnp.float32)
            for k, v in prep.items()}


_CONST_ORDER = ("wb1", "b1", "cs1", "wb2", "b2", "cs2",
                "w3", "b3", "w4", "b4", "w5", "b5")


def _const_spec(a):
    zeros = (0,) * a.ndim
    return pl.BlockSpec(a.shape, lambda i, _z=zeros: _z)


def _round_up(x, m):
    return (x + m - 1) // m * m


@jax.jit
def cnn_forward(x, prep):
    # x: (N, 1, 28, 28) NCHW, matching the PyTorch module.
    n = x.shape[0]
    tb = max(8, min(32, _round_up(n, 8)))       # images per grid step (mult of 8)
    n_pad = _round_up(n, tb)
    xi = x.reshape(n, 28, 28)
    xi = jnp.pad(xi, ((0, n_pad - n), (0, 0), (0, 0)))
    # Height-major layout (28, N_pad, 28): every in-kernel slice / reshape is
    # then a tile-aligned sublane operation (layout plumbing in the wrapper).
    xt = jnp.transpose(xi, (1, 0, 2))
    consts = [prep[k] for k in _CONST_ORDER]
    out = pl.pallas_call(
        _cnn_kernel,
        out_shape=jax.ShapeDtypeStruct((n_pad, 128), jnp.float32),
        grid=(n_pad // tb,),
        in_specs=[pl.BlockSpec((28, tb, 28), lambda i: (0, i, 0))]
                + [_const_spec(a) for a in consts],
        out_specs=pl.BlockSpec((tb, 128), lambda i: (i, 0)),
        compiler_params=pltpu.CompilerParams(
            dimension_semantics=("parallel",)),
    )(xt, *consts)
    return out[:n, :10]


# ---------------------------------------------------------------------------
# Parameter init (PyTorch-style) and pure-XLA reference for correctness check
# ---------------------------------------------------------------------------
def init_params(key):
    ks = jax.random.split(key, 10)

    def u(k, shape, fan_in):
        bound = 1.0 / jnp.sqrt(jnp.float32(fan_in))
        return jax.random.uniform(k, shape, jnp.float32, -bound, bound)

    return {
        "conv1_w": u(ks[0], (6, 1, 5, 5), 25),
        "conv1_b": u(ks[1], (6,), 25),
        "conv2_w": u(ks[2], (16, 6, 5, 5), 150),
        "conv2_b": u(ks[3], (16,), 150),
        "fc1_w": u(ks[4], (120, 400), 400),
        "fc1_b": u(ks[5], (120,), 400),
        "fc2_w": u(ks[6], (84, 120), 120),
        "fc2_b": u(ks[7], (84,), 120),
        "fc3_w": u(ks[8], (10, 84), 84),
        "fc3_b": u(ks[9], (10,), 84),
    }


def _reference_forward(x, p):
    dn = ("NCHW", "OIHW", "NCHW")
    y = jax.lax.conv_general_dilated(x, p["conv1_w"], (1, 1), "VALID",
                                     dimension_numbers=dn)
    y = jnp.maximum(y + p["conv1_b"][None, :, None, None], 0.0)
    y = jax.lax.reduce_window(y, -jnp.inf, jax.lax.max,
                              (1, 1, 2, 2), (1, 1, 2, 2), "VALID")
    y = jax.lax.conv_general_dilated(y, p["conv2_w"], (1, 1),
                                     [(1, 1), (1, 1)], dimension_numbers=dn)
    y = jnp.maximum(y + p["conv2_b"][None, :, None, None], 0.0)
    y = jax.lax.reduce_window(y, -jnp.inf, jax.lax.max,
                              (1, 1, 2, 2), (1, 1, 2, 2), "VALID")
    y = y.reshape(y.shape[0], 400)
    y = jnp.maximum(y @ p["fc1_w"].T + p["fc1_b"], 0.0)
    y = jnp.maximum(y @ p["fc2_w"].T + p["fc2_b"], 0.0)
    return y @ p["fc3_w"].T + p["fc3_b"]


if __name__ == "__main__":
    key = jax.random.PRNGKey(0)
    kx, kx2, kp = jax.random.split(key, 3)
    params = init_params(kp)
    prep = prepare_params(params)
    tol = 2e-3 if _MM_DTYPE == jnp.float32 else 3e-2

    # 28x28 single-channel input implied by the module (16*5*5 == 400).
    x = jax.random.normal(kx, (2, 1, 28, 28), jnp.float32)
    out = jax.block_until_ready(cnn_forward(x, prep))
    assert out.shape == (2, 10), out.shape
    ref = _reference_forward(x, params)
    err = float(jnp.max(jnp.abs(out - ref)))
    assert jnp.allclose(out, ref, rtol=tol, atol=tol), err

    # A batch that exercises multi-step grid + batch padding (grid = 2, TB=32).
    x2 = jax.random.normal(kx2, (40, 1, 28, 28), jnp.float32)
    out2 = jax.block_until_ready(cnn_forward(x2, prep))
    assert out2.shape == (40, 10), out2.shape
    ref2 = _reference_forward(x2, params)
    err2 = float(jnp.max(jnp.abs(out2 - ref2)))
    assert jnp.allclose(out2, ref2, rtol=tol, atol=tol), err2

    print("KERNEL_OK")
</pallas_src>

<mosaic_0001>
module attributes {stable_mosaic.version = 11 : i64} {
  func.func @_cnn_kernel(%arg0: i32, %arg1: memref<28x8x28xf32, #tpu.memory_space<vmem>>, %arg2: memref<5x28x144xf32, #tpu.memory_space<vmem>>, %arg3: memref<1x144xf32, #tpu.memory_space<vmem>>, %arg4: memref<2x144x84xf32, #tpu.memory_space<vmem>>, %arg5: memref<5x84x160xf32, #tpu.memory_space<vmem>>, %arg6: memref<1x160xf32, #tpu.memory_space<vmem>>, %arg7: memref<2x160x80xf32, #tpu.memory_space<vmem>>, %arg8: memref<5x80x120xf32, #tpu.memory_space<vmem>>, %arg9: memref<1x120xf32, #tpu.memory_space<vmem>>, %arg10: memref<120x84xf32, #tpu.memory_space<vmem>>, %arg11: memref<1x84xf32, #tpu.memory_space<vmem>>, %arg12: memref<84x128xf32, #tpu.memory_space<vmem>>, %arg13: memref<1x128xf32, #tpu.memory_space<vmem>>, %arg14: memref<8x128xf32, #tpu.memory_space<vmem>>) attributes {dimension_semantics = [#tpu.dimension_semantics<parallel>], iteration_bounds = array<i64: 1>, scalar_prefetch = 0 : i64, scratch_operands = 0 : i64, tpu.core_type = #tpu.core_type<tc>, window_params = [{transform_indices = @transform_0, window_bounds = array<i64: 28, 8, 28>}, {pipeline_mode = #tpu.pipeline_mode<synchronous>, transform_indices = @transform_1, window_bounds = array<i64: 5, 28, 144>}, {pipeline_mode = #tpu.pipeline_mode<synchronous>, transform_indices = @transform_2, window_bounds = array<i64: 1, 144>}, {pipeline_mode = #tpu.pipeline_mode<synchronous>, transform_indices = @transform_3, window_bounds = array<i64: 2, 144, 84>}, {pipeline_mode = #tpu.pipeline_mode<synchronous>, transform_indices = @transform_4, window_bounds = array<i64: 5, 84, 160>}, {pipeline_mode = #tpu.pipeline_mode<synchronous>, transform_indices = @transform_5, window_bounds = array<i64: 1, 160>}, {pipeline_mode = #tpu.pipeline_mode<synchronous>, transform_indices = @transform_6, window_bounds = array<i64: 2, 160, 80>}, {pipeline_mode = #tpu.pipeline_mode<synchronous>, transform_indices = @transform_7, window_bounds = array<i64: 5, 80, 120>}, {pipeline_mode = #tpu.pipeline_mode<synchronous>, transform_indices = @transform_8, window_bounds = array<i64: 1, 120>}, {pipeline_mode = #tpu.pipeline_mode<synchronous>, transform_indices = @transform_9, window_bounds = array<i64: 120, 84>}, {pipeline_mode = #tpu.pipeline_mode<synchronous>, transform_indices = @transform_10, window_bounds = array<i64: 1, 84>}, {pipeline_mode = #tpu.pipeline_mode<synchronous>, transform_indices = @transform_11, window_bounds = array<i64: 84, 128>}, {pipeline_mode = #tpu.pipeline_mode<synchronous>, transform_indices = @transform_12, window_bounds = array<i64: 1, 128>}, {transform_indices = @transform_13, window_bounds = array<i64: 8, 128>}]} {
    %c0 = arith.constant 0 : index
    %c0_0 = arith.constant 0 : index
    %c0_1 = arith.constant 0 : index
    %0 = vector.load %arg1[%c0, %c0_0, %c0_1] : memref<28x8x28xf32, #tpu.memory_space<vmem>>, vector<28x8x28xf32>
    %1 = vector.shape_cast %0 : vector<28x8x28xf32> to vector<224x28xf32>
    %2 = vector.extract_strided_slice %1 {offsets = [0, 0], sizes = [192, 28], strides = [1, 1]} : vector<224x28xf32> to vector<192x28xf32>
    %c0_2 = arith.constant 0 : index
    %c0_3 = arith.constant 0 : index
    %c0_4 = arith.constant 0 : index
    %3 = vector.load %arg2[%c0_2, %c0_3, %c0_4] : memref<5x28x144xf32, #tpu.memory_space<vmem>>, vector<1x28x144xf32>
    %4 = vector.shape_cast %3 : vector<1x28x144xf32> to vector<28x144xf32>
    %cst = arith.constant dense<0.000000e+00> : vector<192x144xf32>
    %5 = tpu.matmul %2, %4, %cst {dimension_numbers = #tpu.dot_dimension_numbers<[1], [0], [0], [1], [0, 0, 1, 1], [], []>} : vector<192x28xf32>, vector<28x144xf32>, vector<192x144xf32> -> vector<192x144xf32>
    %6 = vector.extract_strided_slice %1 {offsets = [8, 0], sizes = [192, 28], strides = [1, 1]} : vector<224x28xf32> to vector<192x28xf32>
    %c1 = arith.constant 1 : index
    %c0_5 = arith.constant 0 : index
    %c0_6 = arith.constant 0 : index
    %7 = vector.load %arg2[%c1, %c0_5, %c0_6] : memref<5x28x144xf32, #tpu.memory_space<vmem>>, vector<1x28x144xf32>
    %8 = vector.shape_cast %7 : vector<1x28x144xf32> to vector<28x144xf32>
    %cst_7 = arith.constant dense<0.000000e+00> : vector<192x144xf32>
    %9 = tpu.matmul %6, %8, %cst_7 {dimension_numbers = #tpu.dot_dimension_numbers<[1], [0], [0], [1], [0, 0, 1, 1], [], []>} : vector<192x28xf32>, vector<28x144xf32>, vector<192x144xf32> -> vector<192x144xf32>
    %10 = arith.addf %5, %9 : vector<192x144xf32>
    %11 = vector.extract_strided_slice %1 {offsets = [16, 0], sizes = [192, 28], strides = [1, 1]} : vector<224x28xf32> to vector<192x28xf32>
    %c2 = arith.constant 2 : index
    %c0_8 = arith.constant 0 : index
    %c0_9 = arith.constant 0 : index
    %12 = vector.load %arg2[%c2, %c0_8, %c0_9] : memref<5x28x144xf32, #tpu.memory_space<vmem>>, vector<1x28x144xf32>
    %13 = vector.shape_cast %12 : vector<1x28x144xf32> to vector<28x144xf32>
    %cst_10 = arith.constant dense<0.000000e+00> : vector<192x144xf32>
    %14 = tpu.matmul %11, %13, %cst_10 {dimension_numbers = #tpu.dot_dimension_numbers<[1], [0], [0], [1], [0, 0, 1, 1], [], []>} : vector<192x28xf32>, vector<28x144xf32>, vector<192x144xf32> -> vector<192x144xf32>
    %15 = arith.addf %10, %14 : vector<192x144xf32>
    %16 = vector.extract_strided_slice %1 {offsets = [24, 0], sizes = [192, 28], strides = [1, 1]} : vector<224x28xf32> to vector<192x28xf32>
    %c3 = arith.constant 3 : index
    %c0_11 = arith.constant 0 : index
    %c0_12 = arith.constant 0 : index
    %17 = vector.load %arg2[%c3, %c0_11, %c0_12] : memref<5x28x144xf32, #tpu.memory_space<vmem>>, vector<1x28x144xf32>
    %18 = vector.shape_cast %17 : vector<1x28x144xf32> to vector<28x144xf32>
    %cst_13 = arith.constant dense<0.000000e+00> : vector<192x144xf32>
    %19 = tpu.matmul %16, %18, %cst_13 {dimension_numbers = #tpu.dot_dimension_numbers<[1], [0], [0], [1], [0, 0, 1, 1], [], []>} : vector<192x28xf32>, vector<28x144xf32>, vector<192x144xf32> -> vector<192x144xf32>
    %20 = arith.addf %15, %19 : vector<192x144xf32>
    %21 = vector.extract_strided_slice %1 {offsets = [32, 0], sizes = [192, 28], strides = [1, 1]} : vector<224x28xf32> to vector<192x28xf32>
    %c4 = arith.constant 4 : index
    %c0_14 = arith.constant 0 : index
    %c0_15 = arith.constant 0 : index
    %22 = vector.load %arg2[%c4, %c0_14, %c0_15] : memref<5x28x144xf32, #tpu.memory_space<vmem>>, vector<1x28x144xf32>
    %23 = vector.shape_cast %22 : vector<1x28x144xf32> to vector<28x144xf32>
    %cst_16 = arith.constant dense<0.000000e+00> : vector<192x144xf32>
    %24 = tpu.matmul %21, %23, %cst_16 {dimension_numbers = #tpu.dot_dimension_numbers<[1], [0], [0], [1], [0, 0, 1, 1], [], []>} : vector<192x28xf32>, vector<28x144xf32>, vector<192x144xf32> -> vector<192x144xf32>
    %25 = arith.addf %20, %24 : vector<192x144xf32>
    %c0_17 = arith.constant 0 : index
    %c0_18 = arith.constant 0 : index
    %26 = vector.load %arg3[%c0_17, %c0_18] : memref<1x144xf32, #tpu.memory_space<vmem>>, vector<1x144xf32>
    %27 = vector.broadcast %26 : vector<1x144xf32> to vector<192x144xf32>
    %28 = arith.addf %25, %27 : vector<192x144xf32>
    %cst_19 = arith.constant 0.000000e+00 : f32
    %29 = vector.broadcast %cst_19 : f32 to vector<192x144xf32>
    %30 = arith.maximumf %28, %29 : vector<192x144xf32>
    %31 = vector.shape_cast %30 : vector<192x144xf32> to vector<12x16x144xf32>
    %32 = vector.extract_strided_slice %31 {offsets = [0, 0, 0], sizes = [12, 8, 144], strides = [1, 1, 1]} : vector<12x16x144xf32> to vector<12x8x144xf32>
    %33 = vector.extract_strided_slice %31 {offsets = [0, 8, 0], sizes = [12, 8, 144], strides = [1, 1, 1]} : vector<12x16x144xf32> to vector<12x8x144xf32>
    %34 = arith.maximumf %32, %33 : vector<12x8x144xf32>
    %35 = vector.shape_cast %34 : vector<12x8x144xf32> to vector<96x144xf32>
    %c0_20 = arith.constant 0 : index
    %c0_21 = arith.constant 0 : index
    %c0_22 = arith.constant 0 : index
    %36 = vector.load %arg4[%c0_20, %c0_21, %c0_22] : memref<2x144x84xf32, #tpu.memory_space<vmem>>, vector<1x144x84xf32>
    %37 = vector.shape_cast %36 : vector<1x144x84xf32> to vector<144x84xf32>
    %cst_23 = arith.constant dense<0.000000e+00> : vector<96x84xf32>
    %38 = tpu.matmul %35, %37, %cst_23 {dimension_numbers = #tpu.dot_dimension_numbers<[1], [0], [0], [1], [0, 0, 1, 1], [], []>} : vector<96x144xf32>, vector<144x84xf32>, vector<96x84xf32> -> vector<96x84xf32>
    %c1_24 = arith.constant 1 : index
    %c0_25 = arith.constant 0 : index
    %c0_26 = arith.constant 0 : index
    %39 = vector.load %arg4[%c1_24, %c0_25, %c0_26] : memref<2x144x84xf32, #tpu.memory_space<vmem>>, vector<1x144x84xf32>
    %40 = vector.shape_cast %39 : vector<1x144x84xf32> to vector<144x84xf32>
    %cst_27 = arith.constant dense<0.000000e+00> : vector<96x84xf32>
    %41 = tpu.matmul %35, %40, %cst_27 {dimension_numbers = #tpu.dot_dimension_numbers<[1], [0], [0], [1], [0, 0, 1, 1], [], []>} : vector<96x144xf32>, vector<144x84xf32>, vector<96x84xf32> -> vector<96x84xf32>
    %42 = arith.maximumf %38, %41 : vector<96x84xf32>
    %cst_28 = arith.constant 0.000000e+00 : f32
    %43 = vector.broadcast %cst_28 : f32 to vector<8x84xf32>
    %44 = tpu.concatenate %43, %42, %43 in 0 : vector<8x84xf32>, vector<96x84xf32>, vector<8x84xf32> -> vector<112x84xf32>
    %45 = vector.extract_strided_slice %44 {offsets = [0, 0], sizes = [80, 84], strides = [1, 1]} : vector<112x84xf32> to vector<80x84xf32>
    %c0_29 = arith.constant 0 : index
    %c0_30 = arith.constant 0 : index
    %c0_31 = arith.constant 0 : index
    %46 = vector.load %arg5[%c0_29, %c0_30, %c0_31] : memref<5x84x160xf32, #tpu.memory_space<vmem>>, vector<1x84x160xf32>
    %47 = vector.shape_cast %46 : vector<1x84x160xf32> to vector<84x160xf32>
    %cst_32 = arith.constant dense<0.000000e+00> : vector<80x160xf32>
    %48 = tpu.matmul %45, %47, %cst_32 {dimension_numbers = #tpu.dot_dimension_numbers<[1], [0], [0], [1], [0, 0, 1, 1], [], []>} : vector<80x84xf32>, vector<84x160xf32>, vector<80x160xf32> -> vector<80x160xf32>
    %49 = vector.extract_strided_slice %44 {offsets = [8, 0], sizes = [80, 84], strides = [1, 1]} : vector<112x84xf32> to vector<80x84xf32>
    %c1_33 = arith.constant 1 : index
    %c0_34 = arith.constant 0 : index
    %c0_35 = arith.constant 0 : index
    %50 = vector.load %arg5[%c1_33, %c0_34, %c0_35] : memref<5x84x160xf32, #tpu.memory_space<vmem>>, vector<1x84x160xf32>
    %51 = vector.shape_cast %50 : vector<1x84x160xf32> to vector<84x160xf32>
    %cst_36 = arith.constant dense<0.000000e+00> : vector<80x160xf32>
    %52 = tpu.matmul %49, %51, %cst_36 {dimension_numbers = #tpu.dot_dimension_numbers<[1], [0], [0], [1], [0, 0, 1, 1], [], []>} : vector<80x84xf32>, vector<84x160xf32>, vector<80x160xf32> -> vector<80x160xf32>
    %53 = arith.addf %48, %52 : vector<80x160xf32>
    %54 = vector.extract_strided_slice %44 {offsets = [16, 0], sizes = [80, 84], strides = [1, 1]} : vector<112x84xf32> to vector<80x84xf32>
    %c2_37 = arith.constant 2 : index
    %c0_38 = arith.constant 0 : index
    %c0_39 = arith.constant 0 : index
    %55 = vector.load %arg5[%c2_37, %c0_38, %c0_39] : memref<5x84x160xf32, #tpu.memory_space<vmem>>, vector<1x84x160xf32>
    %56 = vector.shape_cast %55 : vector<1x84x160xf32> to vector<84x160xf32>
    %cst_40 = arith.constant dense<0.000000e+00> : vector<80x160xf32>
    %57 = tpu.matmul %54, %56, %cst_40 {dimension_numbers = #tpu.dot_dimension_numbers<[1], [0], [0], [1], [0, 0, 1, 1], [], []>} : vector<80x84xf32>, vector<84x160xf32>, vector<80x160xf32> -> vector<80x160xf32>
    %58 = arith.addf %53, %57 : vector<80x160xf32>
    %59 = vector.extract_strided_slice %44 {offsets = [24, 0], sizes = [80, 84], strides = [1, 1]} : vector<112x84xf32> to vector<80x84xf32>
    %c3_41 = arith.constant 3 : index
    %c0_42 = arith.constant 0 : index
    %c0_43 = arith.constant 0 : index
    %60 = vector.load %arg5[%c3_41, %c0_42, %c0_43] : memref<5x84x160xf32, #tpu.memory_space<vmem>>, vector<1x84x160xf32>
    %61 = vector.shape_cast %60 : vector<1x84x160xf32> to vector<84x160xf32>
    %cst_44 = arith.constant dense<0.000000e+00> : vector<80x160xf32>
    %62 = tpu.matmul %59, %61, %cst_44 {dimension_numbers = #tpu.dot_dimension_numbers<[1], [0], [0], [1], [0, 0, 1, 1], [], []>} : vector<80x84xf32>, vector<84x160xf32>, vector<80x160xf32> -> vector<80x160xf32>
    %63 = arith.addf %58, %62 : vector<80x160xf32>
    %64 = vector.extract_strided_slice %44 {offsets = [32, 0], sizes = [80, 84], strides = [1, 1]} : vector<112x84xf32> to vector<80x84xf32>
    %c4_45 = arith.constant 4 : index
    %c0_46 = arith.constant 0 : index
    %c0_47 = arith.constant 0 : index
    %65 = vector.load %arg5[%c4_45, %c0_46, %c0_47] : memref<5x84x160xf32, #tpu.memory_space<vmem>>, vector<1x84x160xf32>
    %66 = vector.shape_cast %65 : vector<1x84x160xf32> to vector<84x160xf32>
    %cst_48 = arith.constant dense<0.000000e+00> : vector<80x160xf32>
    %67 = tpu.matmul %64, %66, %cst_48 {dimension_numbers = #tpu.dot_dimension_numbers<[1], [0], [0], [1], [0, 0, 1, 1], [], []>} : vector<80x84xf32>, vector<84x160xf32>, vector<80x160xf32> -> vector<80x160xf32>
    %68 = arith.addf %63, %67 : vector<80x160xf32>
    %c0_49 = arith.constant 0 : index
    %c0_50 = arith.constant 0 : index
    %69 = vector.load %arg6[%c0_49, %c0_50] : memref<1x160xf32, #tpu.memory_space<vmem>>, vector<1x160xf32>
    %70 = vector.broadcast %69 : vector<1x160xf32> to vector<80x160xf32>
    %71 = arith.addf %68, %70 : vector<80x160xf32>
    %cst_51 = arith.constant 0.000000e+00 : f32
    %72 = vector.broadcast %cst_51 : f32 to vector<80x160xf32>
    %73 = arith.maximumf %71, %72 : vector<80x160xf32>
    %74 = vector.shape_cast %73 : vector<80x160xf32> to vector<5x16x160xf32>
    %75 = vector.extract_strided_slice %74 {offsets = [0, 0, 0], sizes = [5, 8, 160], strides = [1, 1, 1]} : vector<5x16x160xf32> to vector<5x8x160xf32>
    %76 = vector.extract_strided_slice %74 {offsets = [0, 8, 0], sizes = [5, 8, 160], strides = [1, 1, 1]} : vector<5x16x160xf32> to vector<5x8x160xf32>
    %77 = arith.maximumf %75, %76 : vector<5x8x160xf32>
    %78 = vector.shape_cast %77 : vector<5x8x160xf32> to vector<40x160xf32>
    %c0_52 = arith.constant 0 : index
    %c0_53 = arith.constant 0 : index
    %c0_54 = arith.constant 0 : index
    %79 = vector.load %arg7[%c0_52, %c0_53, %c0_54] : memref<2x160x80xf32, #tpu.memory_space<vmem>>, vector<1x160x80xf32>
    %80 = vector.shape_cast %79 : vector<1x160x80xf32> to vector<160x80xf32>
    %cst_55 = arith.constant dense<0.000000e+00> : vector<40x80xf32>
    %81 = tpu.matmul %78, %80, %cst_55 {dimension_numbers = #tpu.dot_dimension_numbers<[1], [0], [0], [1], [0, 0, 1, 1], [], []>} : vector<40x160xf32>, vector<160x80xf32>, vector<40x80xf32> -> vector<40x80xf32>
    %c1_56 = arith.constant 1 : index
    %c0_57 = arith.constant 0 : index
    %c0_58 = arith.constant 0 : index
    %82 = vector.load %arg7[%c1_56, %c0_57, %c0_58] : memref<2x160x80xf32, #tpu.memory_space<vmem>>, vector<1x160x80xf32>
    %83 = vector.shape_cast %82 : vector<1x160x80xf32> to vector<160x80xf32>
    %cst_59 = arith.constant dense<0.000000e+00> : vector<40x80xf32>
    %84 = tpu.matmul %78, %83, %cst_59 {dimension_numbers = #tpu.dot_dimension_numbers<[1], [0], [0], [1], [0, 0, 1, 1], [], []>} : vector<40x160xf32>, vector<160x80xf32>, vector<40x80xf32> -> vector<40x80xf32>
    %85 = arith.maximumf %81, %84 : vector<40x80xf32>
    %86 = vector.extract_strided_slice %85 {offsets = [0, 0], sizes = [8, 80], strides = [1, 1]} : vector<40x80xf32> to vector<8x80xf32>
    %c0_60 = arith.constant 0 : index
    %c0_61 = arith.constant 0 : index
    %c0_62 = arith.constant 0 : index
    %87 = vector.load %arg8[%c0_60, %c0_61, %c0_62] : memref<5x80x120xf32, #tpu.memory_space<vmem>>, vector<1x80x120xf32>
    %88 = vector.shape_cast %87 : vector<1x80x120xf32> to vector<80x120xf32>
    %cst_63 = arith.constant dense<0.000000e+00> : vector<8x120xf32>
    %89 = tpu.matmul %86, %88, %cst_63 {dimension_numbers = #tpu.dot_dimension_numbers<[1], [0], [0], [1], [0, 0, 1, 1], [], []>} : vector<8x80xf32>, vector<80x120xf32>, vector<8x120xf32> -> vector<8x120xf32>
    %90 = vector.extract_strided_slice %85 {offsets = [8, 0], sizes = [8, 80], strides = [1, 1]} : vector<40x80xf32> to vector<8x80xf32>
    %c1_64 = arith.constant 1 : index
    %c0_65 = arith.constant 0 : index
    %c0_66 = arith.constant 0 : index
    %91 = vector.load %arg8[%c1_64, %c0_65, %c0_66] : memref<5x80x120xf32, #tpu.memory_space<vmem>>, vector<1x80x120xf32>
    %92 = vector.shape_cast %91 : vector<1x80x120xf32> to vector<80x120xf32>
    %cst_67 = arith.constant dense<0.000000e+00> : vector<8x120xf32>
    %93 = tpu.matmul %90, %92, %cst_67 {dimension_numbers = #tpu.dot_dimension_numbers<[1], [0], [0], [1], [0, 0, 1, 1], [], []>} : vector<8x80xf32>, vector<80x120xf32>, vector<8x120xf32> -> vector<8x120xf32>
    %94 = arith.addf %89, %93 : vector<8x120xf32>
    %95 = vector.extract_strided_slice %85 {offsets = [16, 0], sizes = [8, 80], strides = [1, 1]} : vector<40x80xf32> to vector<8x80xf32>
    %c2_68 = arith.constant 2 : index
    %c0_69 = arith.constant 0 : index
    %c0_70 = arith.constant 0 : index
    %96 = vector.load %arg8[%c2_68, %c0_69, %c0_70] : memref<5x80x120xf32, #tpu.memory_space<vmem>>, vector<1x80x120xf32>
    %97 = vector.shape_cast %96 : vector<1x80x120xf32> to vector<80x120xf32>
    %cst_71 = arith.constant dense<0.000000e+00> : vector<8x120xf32>
    %98 = tpu.matmul %95, %97, %cst_71 {dimension_numbers = #tpu.dot_dimension_numbers<[1], [0], [0], [1], [0, 0, 1, 1], [], []>} : vector<8x80xf32>, vector<80x120xf32>, vector<8x120xf32> -> vector<8x120xf32>
    %99 = arith.addf %94, %98 : vector<8x120xf32>
    %100 = vector.extract_strided_slice %85 {offsets = [24, 0], sizes = [8, 80], strides = [1, 1]} : vector<40x80xf32> to vector<8x80xf32>
    %c3_72 = arith.constant 3 : index
    %c0_73 = arith.constant 0 : index
    %c0_74 = arith.constant 0 : index
    %101 = vector.load %arg8[%c3_72, %c0_73, %c0_74] : memref<5x80x120xf32, #tpu.memory_space<vmem>>, vector<1x80x120xf32>
    %102 = vector.shape_cast %101 : vector<1x80x120xf32> to vector<80x120xf32>
    %cst_75 = arith.constant dense<0.000000e+00> : vector<8x120xf32>
    %103 = tpu.matmul %100, %102, %cst_75 {dimension_numbers = #tpu.dot_dimension_numbers<[1], [0], [0], [1], [0, 0, 1, 1], [], []>} : vector<8x80xf32>, vector<80x120xf32>, vector<8x120xf32> -> vector<8x120xf32>
    %104 = arith.addf %99, %103 : vector<8x120xf32>
    %105 = vector.extract_strided_slice %85 {offsets = [32, 0], sizes = [8, 80], strides = [1, 1]} : vector<40x80xf32> to vector<8x80xf32>
    %c4_76 = arith.constant 4 : index
    %c0_77 = arith.constant 0 : index
    %c0_78 = arith.constant 0 : index
    %106 = vector.load %arg8[%c4_76, %c0_77, %c0_78] : memref<5x80x120xf32, #tpu.memory_space<vmem>>, vector<1x80x120xf32>
    %107 = vector.shape_cast %106 : vector<1x80x120xf32> to vector<80x120xf32>
    %cst_79 = arith.constant dense<0.000000e+00> : vector<8x120xf32>
    %108 = tpu.matmul %105, %107, %cst_79 {dimension_numbers = #tpu.dot_dimension_numbers<[1], [0], [0], [1], [0, 0, 1, 1], [], []>} : vector<8x80xf32>, vector<80x120xf32>, vector<8x120xf32> -> vector<8x120xf32>
    %109 = arith.addf %104, %108 : vector<8x120xf32>
    %c0_80 = arith.constant 0 : index
    %c0_81 = arith.constant 0 : index
    %110 = vector.load %arg9[%c0_80, %c0_81] : memref<1x120xf32, #tpu.memory_space<vmem>>, vector<1x120xf32>
    %111 = vector.broadcast %110 : vector<1x120xf32> to vector<8x120xf32>
    %112 = arith.addf %109, %111 : vector<8x120xf32>
    %cst_82 = arith.constant 0.000000e+00 : f32
    %113 = vector.broadcast %cst_82 : f32 to vector<8x120xf32>
    %114 = arith.maximumf %112, %113 : vector<8x120xf32>
    %c0_83 = arith.constant 0 : index
    %c0_84 = arith.constant 0 : index
    %115 = vector.load %arg10[%c0_83, %c0_84] : memref<120x84xf32, #tpu.memory_space<vmem>>, vector<120x84xf32>
    %cst_85 = arith.constant dense<0.000000e+00> : vector<8x84xf32>
    %116 = tpu.matmul %114, %115, %cst_85 {dimension_numbers = #tpu.dot_dimension_numbers<[1], [0], [0], [1], [0, 0, 1, 1], [], []>} : vector<8x120xf32>, vector<120x84xf32>, vector<8x84xf32> -> vector<8x84xf32>
    %c0_86 = arith.constant 0 : index
    %c0_87 = arith.constant 0 : index
    %117 = vector.load %arg11[%c0_86, %c0_87] : memref<1x84xf32, #tpu.memory_space<vmem>>, vector<1x84xf32>
    %118 = vector.broadcast %117 : vector<1x84xf32> to vector<8x84xf32>
    %119 = arith.addf %116, %118 : vector<8x84xf32>
    %cst_88 = arith.constant 0.000000e+00 : f32
    %120 = vector.broadcast %cst_88 : f32 to vector<8x84xf32>
    %121 = arith.maximumf %119, %120 : vector<8x84xf32>
    %c0_89 = arith.constant 0 : index
    %c0_90 = arith.constant 0 : index
    %122 = vector.load %arg12[%c0_89, %c0_90] : memref<84x128xf32, #tpu.memory_space<vmem>>, vector<84x128xf32>
    %cst_91 = arith.constant dense<0.000000e+00> : vector<8x128xf32>
    %123 = tpu.matmul %121, %122, %cst_91 {dimension_numbers = #tpu.dot_dimension_numbers<[1], [0], [0], [1], [0, 0, 1, 1], [], []>} : vector<8x84xf32>, vector<84x128xf32>, vector<8x128xf32> -> vector<8x128xf32>
    %c0_92 = arith.constant 0 : index
    %c0_93 = arith.constant 0 : index
    %124 = vector.load %arg13[%c0_92, %c0_93] : memref<1x128xf32, #tpu.memory_space<vmem>>, vector<1x128xf32>
    %125 = vector.broadcast %124 : vector<1x128xf32> to vector<8x128xf32>
    %126 = arith.addf %123, %125 : vector<8x128xf32>
    %c0_94 = arith.constant 0 : index
    %c0_95 = arith.constant 0 : index
    %127 = vector.load %arg14[%c0_94, %c0_95] : memref<8x128xf32, #tpu.memory_space<vmem>>, vector<8x128xf32>
    tpu.vector_store %arg14[%c0_94, %c0_95], %126 {strides = array<i32>} : memref<8x128xf32, #tpu.memory_space<vmem>>, vector<8x128xf32>,
    return
  }
  func.func @transform_0(%arg0: i32) -> (i32, i32, i32) {
    %c0_i32 = arith.constant 0 : i32
    %c0_i32_0 = arith.constant 0 : i32
    %c0_i32_1 = arith.constant 0 : i32
    return %c0_i32, %arg0, %c0_i32_0 : i32, i32, i32
  }
  func.func @transform_1(%arg0: i32) -> (i32, i32, i32) {
    %c0_i32 = arith.constant 0 : i32
    %c0_i32_0 = arith.constant 0 : i32
    %c0_i32_1 = arith.constant 0 : i32
    %c0_i32_2 = arith.constant 0 : i32
    return %c0_i32, %c0_i32_0, %c0_i32_1 : i32, i32, i32
  }
  func.func @transform_2(%arg0: i32) -> (i32, i32) {
    %c0_i32 = arith.constant 0 : i32
    %c0_i32_0 = arith.constant 0 : i32
    %c0_i32_1 = arith.constant 0 : i32
    return %c0_i32, %c0_i32_0 : i32, i32
  }
  func.func @transform_3(%arg0: i32) -> (i32, i32, i32) {
    %c0_i32 = arith.constant 0 : i32
    %c0_i32_0 = arith.constant 0 : i32
    %c0_i32_1 = arith.constant 0 : i32
    %c0_i32_2 = arith.constant 0 : i32
    return %c0_i32, %c0_i32_0, %c0_i32_1 : i32, i32, i32
  }
  func.func @transform_4(%arg0: i32) -> (i32, i32, i32) {
    %c0_i32 = arith.constant 0 : i32
    %c0_i32_0 = arith.constant 0 : i32
    %c0_i32_1 = arith.constant 0 : i32
    %c0_i32_2 = arith.constant 0 : i32
    return %c0_i32, %c0_i32_0, %c0_i32_1 : i32, i32, i32
  }
  func.func @transform_5(%arg0: i32) -> (i32, i32) {
    %c0_i32 = arith.constant 0 : i32
    %c0_i32_0 = arith.constant 0 : i32
    %c0_i32_1 = arith.constant 0 : i32
    return %c0_i32, %c0_i32_0 : i32, i32
  }
  func.func @transform_6(%arg0: i32) -> (i32, i32, i32) {
    %c0_i32 = arith.constant 0 : i32
    %c0_i32_0 = arith.constant 0 : i32
    %c0_i32_1 = arith.constant 0 : i32
    %c0_i32_2 = arith.constant 0 : i32
    return %c0_i32, %c0_i32_0, %c0_i32_1 : i32, i32, i32
  }
  func.func @transform_7(%arg0: i32) -> (i32, i32, i32) {
    %c0_i32 = arith.constant 0 : i32
    %c0_i32_0 = arith.constant 0 : i32
    %c0_i32_1 = arith.constant 0 : i32
    %c0_i32_2 = arith.constant 0 : i32
    return %c0_i32, %c0_i32_0, %c0_i32_1 : i32, i32, i32
  }
  func.func @transform_8(%arg0: i32) -> (i32, i32) {
    %c0_i32 = arith.constant 0 : i32
    %c0_i32_0 = arith.constant 0 : i32
    %c0_i32_1 = arith.constant 0 : i32
    return %c0_i32, %c0_i32_0 : i32, i32
  }
  func.func @transform_9(%arg0: i32) -> (i32, i32) {
    %c0_i32 = arith.constant 0 : i32
    %c0_i32_0 = arith.constant 0 : i32
    %c0_i32_1 = arith.constant 0 : i32
    return %c0_i32, %c0_i32_0 : i32, i32
  }
  func.func @transform_10(%arg0: i32) -> (i32, i32) {
    %c0_i32 = arith.constant 0 : i32
    %c0_i32_0 = arith.constant 0 : i32
    %c0_i32_1 = arith.constant 0 : i32
    return %c0_i32, %c0_i32_0 : i32, i32
  }
  func.func @transform_11(%arg0: i32) -> (i32, i32) {
    %c0_i32 = arith.constant 0 : i32
    %c0_i32_0 = arith.constant 0 : i32
    %c0_i32_1 = arith.constant 0 : i32
    return %c0_i32, %c0_i32_0 : i32, i32
  }
  func.func @transform_12(%arg0: i32) -> (i32, i32) {
    %c0_i32 = arith.constant 0 : i32
    %c0_i32_0 = arith.constant 0 : i32
    %c0_i32_1 = arith.constant 0 : i32
    return %c0_i32, %c0_i32_0 : i32, i32
  }
  func.func @transform_13(%arg0: i32) -> (i32, i32) {
    %c0_i32 = arith.constant 0 : i32
    %c0_i32_0 = arith.constant 0 : i32
    return %arg0, %c0_i32 : i32, i32
  }
}

</mosaic_0001>

<llo_original>
// kernel: cnn_forward.1
$region0: #{cnn_forward.1}
  #allocation0 [shape = 'u32[]', space=smem, size = 0x4, offset = 0x4, fixed_abs, tag = 'smem constant byte address 0x4 - core index']
  #allocation1 [shape = 'u32[144,128]{1,0:T(1,128)}', space=vmem, size = 0x12000, scoped, tag = 'internal scratch']
  %s0 = inlined_call_operand.vmem [shape: f32[28,8,28], index: 0, kind: input, shape index: {}]
  %s1 = inlined_call_operand.vmem [shape: f32[5,28,144], index: 1, kind: input, shape index: {}]
  %s2 = inlined_call_operand.vmem [shape: f32[1,144], index: 2, kind: input, shape index: {}]
  %s3 = inlined_call_operand.vmem [shape: f32[2,144,84], index: 3, kind: input, shape index: {}]
  %s4 = inlined_call_operand.vmem [shape: f32[5,84,160], index: 4, kind: input, shape index: {}]
  %s5 = inlined_call_operand.vmem [shape: f32[1,160], index: 5, kind: input, shape index: {}]
  %s6 = inlined_call_operand.vmem [shape: f32[2,160,80], index: 6, kind: input, shape index: {}]
  %s7 = inlined_call_operand.vmem [shape: f32[5,80,120], index: 7, kind: input, shape index: {}]
  %s8 = inlined_call_operand.vmem [shape: f32[1,120], index: 8, kind: input, shape index: {}]
  %s9 = inlined_call_operand.vmem [shape: f32[120,84], index: 9, kind: input, shape index: {}]
  %s10 = inlined_call_operand.vmem [shape: f32[1,84], index: 10, kind: input, shape index: {}]
  %s11 = inlined_call_operand.vmem [shape: f32[84,128], index: 11, kind: input, shape index: {}]
  %s12 = inlined_call_operand.vmem [shape: f32[1,128], index: 12, kind: input, shape index: {}]
  %s13 = inlined_call_operand.vmem [shape: f32[8,128], index: 13, kind: output, shape index: {}]
  %s14 = sld [smem:[#allocation0]]
  $region62: #{cnn_forward.1} parent=0
    _
  %s16 = ssub.s32 1, %s14
  %s17 = scalar_select 0, %s16, %s14
  // Predicated region
  $region2: #{cnn_forward.1} parent=0 // pred_check
    _
  $region3: #{cnn_forward.1} parent=0 // pred_check_branch
    %19 = sbr.rel (0) target = $region5
  $region4: #{cnn_forward.1} parent=0 // pred_region
    _
  $region5: #{cnn_forward.1} parent=0 // pred_fallthru
    _
  // Predicated region
  $region6: #{cnn_forward.1} parent=0 // pred_check
    _
  $region7: #{cnn_forward.1} parent=0 // pred_check_branch
    %21 = sbr.rel (0) target = $region9
  $region8: #{cnn_forward.1} parent=0 // pred_region
    _
  $region9: #{cnn_forward.1} parent=0 // pred_fallthru
    _
  // Predicated region
  $region10: #{cnn_forward.1} parent=0 // pred_check
    _
  $region11: #{cnn_forward.1} parent=0 // pred_check_branch
    %23 = sbr.rel (0) target = $region13
  $region12: #{cnn_forward.1} parent=0 // pred_region
    _
  $region13: #{cnn_forward.1} parent=0 // pred_fallthru
    _
  // Predicated region
  $region14: #{cnn_forward.1} parent=0 // pred_check
    _
  $region15: #{cnn_forward.1} parent=0 // pred_check_branch
    %25 = sbr.rel (0) target = $region17
  $region16: #{cnn_forward.1} parent=0 // pred_region
    _
  $region17: #{cnn_forward.1} parent=0 // pred_fallthru
    _
  // Predicated region
  $region18: #{cnn_forward.1} parent=0 // pred_check
    _
  $region19: #{cnn_forward.1} parent=0 // pred_check_branch
    %27 = sbr.rel (0) target = $region21
  $region20: #{cnn_forward.1} parent=0 // pred_region
    _
  $region21: #{cnn_forward.1} parent=0 // pred_fallthru
    _
  // Predicated region
  $region22: #{cnn_forward.1} parent=0 // pred_check
    _
  $region23: #{cnn_forward.1} parent=0 // pred_check_branch
    %29 = sbr.rel (0) target = $region25
  $region24: #{cnn_forward.1} parent=0 // pred_region
    _
  $region25: #{cnn_forward.1} parent=0 // pred_fallthru
    _
  // Predicated region
  $region26: #{cnn_forward.1} parent=0 // pred_check
    _
  $region27: #{cnn_forward.1} parent=0 // pred_check_branch
    %31 = sbr.rel (0) target = $region29
  $region28: #{cnn_forward.1} parent=0 // pred_region
    _
  $region29: #{cnn_forward.1} parent=0 // pred_fallthru
    _
  // Predicated region
  $region30: #{cnn_forward.1} parent=0 // pred_check
    _
  $region31: #{cnn_forward.1} parent=0 // pred_check_branch
    %33 = sbr.rel (0) target = $region33
  $region32: #{cnn_forward.1} parent=0 // pred_region
    _
  $region33: #{cnn_forward.1} parent=0 // pred_fallthru
    _
  // Predicated region
  $region34: #{cnn_forward.1} parent=0 // pred_check
    _
  $region35: #{cnn_forward.1} parent=0 // pred_check_branch
    %35 = sbr.rel (0) target = $region37
  $region36: #{cnn_forward.1} parent=0 // pred_region
    _
  $region37: #{cnn_forward.1} parent=0 // pred_fallthru
    _
  // Predicated region
  $region38: #{cnn_forward.1} parent=0 // pred_check
    _
  $region39: #{cnn_forward.1} parent=0 // pred_check_branch
    %37 = sbr.rel (0) target = $region41
  $region40: #{cnn_forward.1} parent=0 // pred_region
    _
  $region41: #{cnn_forward.1} parent=0 // pred_fallthru
    _
  // Predicated region
  $region42: #{cnn_forward.1} parent=0 // pred_check
    _
  $region43: #{cnn_forward.1} parent=0 // pred_check_branch
    %39 = sbr.rel (0) target = $region45
  $region44: #{cnn_forward.1} parent=0 // pred_region
    _
  $region45: #{cnn_forward.1} parent=0 // pred_fallthru
    _
  // Predicated region
  $region46: #{cnn_forward.1} parent=0 // pred_check
    _
  $region47: #{cnn_forward.1} parent=0 // pred_check_branch
    %41 = sbr.rel (0) target = $region49
  $region48: #{cnn_forward.1} parent=0 // pred_region
    _
  $region49: #{cnn_forward.1} parent=0 // pred_fallthru
    _
  // Predicated region
  $region50: #{cnn_forward.1} parent=0 // pred_check
    _
  $region51: #{cnn_forward.1} parent=0 // pred_check_branch
    %43 = sbr.rel (0) target = $region53
  $region52: #{cnn_forward.1} parent=0 // pred_region
    _
  $region53: #{cnn_forward.1} parent=0 // pred_fallthru
    _
  %v44 = vld [vmem:[%s0] sm:$0xff]
  %v45 = vld [vmem:[%s0 + $0x8] sm:$0xff]
  %v46 = vld [vmem:[%s0 + $0x10] sm:$0xff]
  %v47 = vld [vmem:[%s0 + $0x18] sm:$0xff]
  %v48 = vld [vmem:[%s0 + $0x20] sm:$0xff]
  %v49 = vld [vmem:[%s0 + $0x28] sm:$0xff]
  %v50 = vld [vmem:[%s0 + $0x30] sm:$0xff]
  %v51 = vld [vmem:[%s0 + $0x38] sm:$0xff]
  %v52 = vld [vmem:[%s0 + $0x40] sm:$0xff]
  %v53 = vld [vmem:[%s0 + $0x48] sm:$0xff]
  %v54 = vld [vmem:[%s0 + $0x50] sm:$0xff]
  %v55 = vld [vmem:[%s0 + $0x58] sm:$0xff]
  %v56 = vld [vmem:[%s0 + $0x60] sm:$0xff]
  %v57 = vld [vmem:[%s0 + $0x68] sm:$0xff]
  %v58 = vld [vmem:[%s0 + $0x70] sm:$0xff]
  %v59 = vld [vmem:[%s0 + $0x78] sm:$0xff]
  %v60 = vld [vmem:[%s0 + $0x80] sm:$0xff]
  %v61 = vld [vmem:[%s0 + $0x88] sm:$0xff]
  %v62 = vld [vmem:[%s0 + $0x90] sm:$0xff]
  %v63 = vld [vmem:[%s0 + $0x98] sm:$0xff]
  %v64 = vld [vmem:[%s0 + $0xa0] sm:$0xff]
  %v65 = vld [vmem:[%s0 + $0xa8] sm:$0xff]
  %v66 = vld [vmem:[%s0 + $0xb0] sm:$0xff]
  %v67 = vld [vmem:[%s0 + $0xb8] sm:$0xff]
  %v68 = vld [vmem:[%s0 + $0xc0] sm:$0xff]
  %v69 = vld [vmem:[%s0 + $0xc8] sm:$0xff]
  %v70 = vld [vmem:[%s0 + $0xd0] sm:$0xff]
  %v71 = vld [vmem:[%s0 + $0xd8] sm:$0xff]
  %v72 = vld [vmem:[%s1] sm:$0xff]
  %v73 = vld [vmem:[%s1 + $0x8] sm:$0xff]
  %v74 = vld [vmem:[%s1 + $0x10] sm:$0xff]
  %v75 = vld [vmem:[%s1 + $0x18] sm:$0xff]
  %v76 = vld [vmem:[%s1 + $0x20] sm:$0xff]
  %v77 = vld [vmem:[%s1 + $0x28] sm:$0xff]
  %v78 = vld [vmem:[%s1 + $0x30] sm:$0xf]
  %v79 = vld [vmem:[%s1 + $0x38] sm:$0xf]
  %s80 = scalar_lea.vmem %s1, 64
  %v81 = vld [vmem:[%s80] sm:$0xff]
  %v82 = vld [vmem:[%s80 + $0x8] sm:$0xff]
  %v83 = vld [vmem:[%s80 + $0x10] sm:$0xff]
  %v84 = vld [vmem:[%s80 + $0x18] sm:$0xff]
  %v85 = vld [vmem:[%s80 + $0x20] sm:$0xff]
  %v86 = vld [vmem:[%s80 + $0x28] sm:$0xff]
  %v87 = vld [vmem:[%s80 + $0x30] sm:$0xf]
  %v88 = vld [vmem:[%s80 + $0x38] sm:$0xf]
  %vm89 = vcmask 228352
  %v91 = vsel %vm89, %v45, 0
  %v94 = vsel %vm89, %v46, 0
  %v97 = vsel %vm89, %v47, 0
  %v100 = vsel %vm89, %v48, 0
  %v103 = vsel %vm89, %v49, 0
  %v106 = vsel %vm89, %v50, 0
  %v109 = vsel %vm89, %v51, 0
  %v112 = vsel %vm89, %v52, 0
  %v115 = vsel %vm89, %v53, 0
  %v118 = vsel %vm89, %v54, 0
  %v121 = vsel %vm89, %v55, 0
  %v124 = vsel %vm89, %v56, 0
  %v127 = vsel %vm89, %v57, 0
  %v130 = vsel %vm89, %v58, 0
  %v133 = vsel %vm89, %v59, 0
  %v136 = vsel %vm89, %v60, 0
  %v139 = vsel %vm89, %v61, 0
  %v142 = vsel %vm89, %v62, 0
  %v145 = vsel %vm89, %v63, 0
  %v148 = vsel %vm89, %v64, 0
  %v151 = vsel %vm89, %v65, 0
  %v154 = vsel %vm89, %v66, 0
  %v157 = vsel %vm89, %v67, 0
  %v160 = vsel %vm89, %v68, 0
  %vm162 = vcmask 1043456
  %v164 = vsel %vm162, %v87, 0
  %v167 = vsel %vm162, %v88, 0
  %169 = vmatprep.subr.mxu0 0.0
  %170 = vmatpush1.msra.mxu0 0.0
  %171 = vmatprep.subr.mxu0 0.0
  %172 = vmatpush1.msra.mxu0 0.0
  %173 = vmatprep.subr.mxu0 0.0
  %174 = vmatpush1.msra.mxu0 0.0
  %175 = vmatprep.subr.mxu0 0.0
  %176 = vmatpush1.msra.mxu0 0.0
  %177 = vmatprep.subr.mxu0 0.0
  %178 = vmatpush1.msra.mxu0 0.0
  %179 = vmatprep.subr.mxu0 0.0
  %180 = vmatpush1.msra.mxu0 0.0
  %181 = vmatprep.subr.mxu0 0.0
  %182 = vmatpush1.msra.mxu0 0.0
  %183 = vmatprep.subr.mxu0 0.0
  %184 = vmatpush1.msra.mxu0 0.0
  %185 = vmatprep.subr.mxu0 0.0
  %186 = vmatpush1.msra.mxu0 0.0
  %187 = vmatprep.subr.mxu0 0.0
  %188 = vmatpush1.msra.mxu0 0.0
  %189 = vmatprep.subr.mxu0 0.0
  %190 = vmatpush1.msra.mxu0 0.0
  %191 = vmatprep.subr.mxu0 0.0
  %192 = vmatpush1.msra.mxu0 0.0
  %193 = vmatprep.subr.mxu0 %v167
  %194 = vmatpush1.msra.mxu0 %v164
  %195 = vmatprep.subr.mxu0 %v86
  %196 = vmatpush1.msra.mxu0 %v85
  %197 = vmatprep.subr.mxu0 %v84
  %198 = vmatpush1.msra.mxu0 %v83
  %199 = vmatprep.subr.mxu0 %v82
  %200 = vmatpush1.msra.mxu0 %v81
  %201 = vmatprep.subr.mxu0 0.0
  %202 = vmatpush2.msra.mxu0 0.0
  %203 = vmatprep.subr.mxu0 0.0
  %204 = vmatpush2.msra.mxu0 0.0
  %205 = vmatprep.subr.mxu0 0.0
  %206 = vmatpush2.msra.mxu0 0.0
  %207 = vmatprep.subr.mxu0 0.0
  %208 = vmatpush2.msra.mxu0 0.0
  %209 = vmatprep.subr.mxu0 0.0
  %210 = vmatpush2.msra.mxu0 0.0
  %211 = vmatprep.subr.mxu0 0.0
  %212 = vmatpush2.msra.mxu0 0.0
  %213 = vmatprep.subr.mxu0 0.0
  %214 = vmatpush2.msra.mxu0 0.0
  %215 = vmatprep.subr.mxu0 0.0
  %216 = vmatpush2.msra.mxu0 0.0
  %217 = vmatprep.subr.mxu0 0.0
  %218 = vmatpush2.msra.mxu0 0.0
  %219 = vmatprep.subr.mxu0 0.0
  %220 = vmatpush2.msra.mxu0 0.0
  %221 = vmatprep.subr.mxu0 0.0
  %222 = vmatpush2.msra.mxu0 0.0
  %223 = vmatprep.subr.mxu0 0.0
  %224 = vmatpush2.msra.mxu0 0.0
  %225 = vmatprep.subr.mxu0 0.0
  %226 = vmatpush2.msra.mxu0 0.0
  %227 = vmatprep.subr.mxu0 0.0
  %228 = vmatpush2.msra.mxu0 0.0
  %229 = vmatprep.subr.mxu0 0.0
  %230 = vmatpush2.msra.mxu0 0.0
  %231 = vmatprep.subr.mxu0 0.0
  %232 = vmatpush2.msra.mxu0 0.0
  %233 = vmatprep.mubr.f32.mxu0 0.0
  %234 = vmatmul.mubr.f32.gmra.mxu0 %v91
  %v235 = vpop.f32.mrf.mxu0
  %v236 = vadd.f32 0.0, %v235
  %v237 = vpop.f32.mrf.mxu0
  %v238 = vadd.f32 0.0, %v237
  %239 = vmatprep.mubr.f32.mxu0 0.0
  %240 = vmatmul.mubr.f32.gmra.mxu0 %v94
  %v241 = vpop.f32.mrf.mxu0
  %v242 = vadd.f32 0.0, %v241
  %v243 = vpop.f32.mrf.mxu0
  %v244 = vadd.f32 0.0, %v243
  %245 = vmatprep.mubr.f32.mxu0 0.0
  %246 = vmatmul.mubr.f32.gmra.mxu0 %v97
  %v247 = vpop.f32.mrf.mxu0
  %v248 = vadd.f32 0.0, %v247
  %v249 = vpop.f32.mrf.mxu0
  %v250 = vadd.f32 0.0, %v249
  %251 = vmatprep.mubr.f32.mxu0 0.0
  %252 = vmatmul.mubr.f32.gmra.mxu0 %v100
  %v253 = vpop.f32.mrf.mxu0
  %v254 = vadd.f32 0.0, %v253
  %v255 = vpop.f32.mrf.mxu0
  %v256 = vadd.f32 0.0, %v255
  %257 = vmatprep.mubr.f32.mxu0 0.0
  %258 = vmatmul.mubr.f32.gmra.mxu0 %v103
  %v259 = vpop.f32.mrf.mxu0
  %v260 = vadd.f32 0.0, %v259
  %v261 = vpop.f32.mrf.mxu0
  %v262 = vadd.f32 0.0, %v261
  %263 = vmatprep.mubr.f32.mxu0 0.0
  %264 = vmatmul.mubr.f32.gmra.mxu0 %v106
  %v265 = vpop.f32.mrf.mxu0
  %v266 = vadd.f32 0.0, %v265
  %v267 = vpop.f32.mrf.mxu0
  %v268 = vadd.f32 0.0, %v267
  %269 = vmatprep.mubr.f32.mxu0 0.0
  %270 = vmatmul.mubr.f32.gmra.mxu0 %v109
  %v271 = vpop.f32.mrf.mxu0
  %v272 = vadd.f32 0.0, %v271
  %v273 = vpop.f32.mrf.mxu0
  %v274 = vadd.f32 0.0, %v273
  %275 = vmatprep.mubr.f32.mxu0 0.0
  %276 = vmatmul.mubr.f32.gmra.mxu0 %v112
  %v277 = vpop.f32.mrf.mxu0
  %v278 = vadd.f32 0.0, %v277
  %v279 = vpop.f32.mrf.mxu0
  %v280 = vadd.f32 0.0, %v279
  %281 = vmatprep.mubr.f32.mxu0 0.0
  %282 = vmatmul.mubr.f32.gmra.mxu0 %v115
  %v283 = vpop.f32.mrf.mxu0
  %v284 = vadd.f32 0.0, %v283
  %v285 = vpop.f32.mrf.mxu0
  %v286 = vadd.f32 0.0, %v285
  %287 = vmatprep.mubr.f32.mxu0 0.0
  %288 = vmatmul.mubr.f32.gmra.mxu0 %v118
  %v289 = vpop.f32.mrf.mxu0
  %v290 = vadd.f32 0.0, %v289
  %v291 = vpop.f32.mrf.mxu0
  %v292 = vadd.f32 0.0, %v291
  %293 = vmatprep.mubr.f32.mxu0 0.0
  %294 = vmatmul.mubr.f32.gmra.mxu0 %v121
  %v295 = vpop.f32.mrf.mxu0
  %v296 = vadd.f32 0.0, %v295
  %v297 = vpop.f32.mrf.mxu0
  %v298 = vadd.f32 0.0, %v297
  %299 = vmatprep.mubr.f32.mxu0 0.0
  %300 = vmatmul.mubr.f32.gmra.mxu0 %v124
  %v301 = vpop.f32.mrf.mxu0
  %v302 = vadd.f32 0.0, %v301
  %v303 = vpop.f32.mrf.mxu0
  %v304 = vadd.f32 0.0, %v303
  %305 = vmatprep.mubr.f32.mxu0 0.0
  %306 = vmatmul.mubr.f32.gmra.mxu0 %v127
  %v307 = vpop.f32.mrf.mxu0
  %v308 = vadd.f32 0.0, %v307
  %v309 = vpop.f32.mrf.mxu0
  %v310 = vadd.f32 0.0, %v309
  %311 = vmatprep.mubr.f32.mxu0 0.0
  %312 = vmatmul.mubr.f32.gmra.mxu0 %v130
  %v313 = vpop.f32.mrf.mxu0
  %v314 = vadd.f32 0.0, %v313
  %v315 = vpop.f32.mrf.mxu0
  %v316 = vadd.f32 0.0, %v315
  %317 = vmatprep.mubr.f32.mxu0 0.0
  %318 = vmatmul.mubr.f32.gmra.mxu0 %v133
  %v319 = vpop.f32.mrf.mxu0
  %v320 = vadd.f32 0.0, %v319
  %v321 = vpop.f32.mrf.mxu0
  %v322 = vadd.f32 0.0, %v321
  %323 = vmatprep.mubr.f32.mxu0 0.0
  %324 = vmatmul.mubr.f32.gmra.mxu0 %v136
  %v325 = vpop.f32.mrf.mxu0
  %v326 = vadd.f32 0.0, %v325
  %v327 = vpop.f32.mrf.mxu0
  %v328 = vadd.f32 0.0, %v327
  %329 = vmatprep.mubr.f32.mxu0 0.0
  %330 = vmatmul.mubr.f32.gmra.mxu0 %v139
  %v331 = vpop.f32.mrf.mxu0
  %v332 = vadd.f32 0.0, %v331
  %v333 = vpop.f32.mrf.mxu0
  %v334 = vadd.f32 0.0, %v333
  %335 = vmatprep.mubr.f32.mxu0 0.0
  %336 = vmatmul.mubr.f32.gmra.mxu0 %v142
  %v337 = vpop.f32.mrf.mxu0
  %v338 = vadd.f32 0.0, %v337
  %v339 = vpop.f32.mrf.mxu0
  %v340 = vadd.f32 0.0, %v339
  %341 = vmatprep.mubr.f32.mxu0 0.0
  %342 = vmatmul.mubr.f32.gmra.mxu0 %v145
  %v343 = vpop.f32.mrf.mxu0
  %v344 = vadd.f32 0.0, %v343
  %v345 = vpop.f32.mrf.mxu0
  %v346 = vadd.f32 0.0, %v345
  %347 = vmatprep.mubr.f32.mxu0 0.0
  %348 = vmatmul.mubr.f32.gmra.mxu0 %v148
  %v349 = vpop.f32.mrf.mxu0
  %v350 = vadd.f32 0.0, %v349
  %v351 = vpop.f32.mrf.mxu0
  %v352 = vadd.f32 0.0, %v351
  %353 = vmatprep.mubr.f32.mxu0 0.0
  %354 = vmatmul.mubr.f32.gmra.mxu0 %v151
  %v355 = vpop.f32.mrf.mxu0
  %v356 = vadd.f32 0.0, %v355
  %v357 = vpop.f32.mrf.mxu0
  %v358 = vadd.f32 0.0, %v357
  %359 = vmatprep.mubr.f32.mxu0 0.0
  %360 = vmatmul.mubr.f32.gmra.mxu0 %v154
  %v361 = vpop.f32.mrf.mxu0
  %v362 = vadd.f32 0.0, %v361
  %v363 = vpop.f32.mrf.mxu0
  %v364 = vadd.f32 0.0, %v363
  %365 = vmatprep.mubr.f32.mxu0 0.0
  %366 = vmatmul.mubr.f32.gmra.mxu0 %v157
  %v367 = vpop.f32.mrf.mxu0
  %v368 = vadd.f32 0.0, %v367
  %v369 = vpop.f32.mrf.mxu0
  %v370 = vadd.f32 0.0, %v369
  %371 = vmatprep.mubr.f32.mxu0 0.0
  %372 = vmatmul.mubr.f32.gmra.mxu0 %v160
  %v373 = vpop.f32.mrf.mxu0
  %v374 = vadd.f32 0.0, %v373
  %v375 = vpop.f32.mrf.mxu0
  %v376 = vadd.f32 0.0, %v375
  %377 = vdwg.mxu0
  %v379 = vsel %vm89, %v44, 0
  %v382 = vsel %vm162, %v78, 0
  %v385 = vsel %vm162, %v79, 0
  %387 = vmatprep.subr.mxu0 0.0
  %388 = vmatpush1.msra.mxu0 0.0
  %389 = vmatprep.subr.mxu0 0.0
  %390 = vmatpush1.msra.mxu0 0.0
  %391 = vmatprep.subr.mxu0 0.0
  %392 = vmatpush1.msra.mxu0 0.0
  %393 = vmatprep.subr.mxu0 0.0
  %394 = vmatpush1.msra.mxu0 0.0
  %395 = vmatprep.subr.mxu0 0.0
  %396 = vmatpush1.msra.mxu0 0.0
  %397 = vmatprep.subr.mxu0 0.0
  %398 = vmatpush1.msra.mxu0 0.0
  %399 = vmatprep.subr.mxu0 0.0
  %400 = vmatpush1.msra.mxu0 0.0
  %401 = vmatprep.subr.mxu0 0.0
  %402 = vmatpush1.msra.mxu0 0.0
  %403 = vmatprep.subr.mxu0 0.0
  %404 = vmatpush1.msra.mxu0 0.0
  %405 = vmatprep.subr.mxu0 0.0
  %406 = vmatpush1.msra.mxu0 0.0
  %407 = vmatprep.subr.mxu0 0.0
  %408 = vmatpush1.msra.mxu0 0.0
  %409 = vmatprep.subr.mxu0 0.0
  %410 = vmatpush1.msra.mxu0 0.0
  %411 = vmatprep.subr.mxu0 %v385
  %412 = vmatpush1.msra.mxu0 %v382
  %413 = vmatprep.subr.mxu0 %v77
  %414 = vmatpush1.msra.mxu0 %v76
  %415 = vmatprep.subr.mxu0 %v75
  %416 = vmatpush1.msra.mxu0 %v74
  %417 = vmatprep.subr.mxu0 %v73
  %418 = vmatpush1.msra.mxu0 %v72
  %419 = vmatprep.subr.mxu0 0.0
  %420 = vmatpush2.msra.mxu0 0.0
  %421 = vmatprep.subr.mxu0 0.0
  %422 = vmatpush2.msra.mxu0 0.0
  %423 = vmatprep.subr.mxu0 0.0
  %424 = vmatpush2.msra.mxu0 0.0
  %425 = vmatprep.subr.mxu0 0.0
  %426 = vmatpush2.msra.mxu0 0.0
  %427 = vmatprep.subr.mxu0 0.0
  %428 = vmatpush2.msra.mxu0 0.0
  %429 = vmatprep.subr.mxu0 0.0
  %430 = vmatpush2.msra.mxu0 0.0
  %431 = vmatprep.subr.mxu0 0.0
  %432 = vmatpush2.msra.mxu0 0.0
  %433 = vmatprep.subr.mxu0 0.0
  %434 = vmatpush2.msra.mxu0 0.0
  %435 = vmatprep.subr.mxu0 0.0
  %436 = vmatpush2.msra.mxu0 0.0
  %437 = vmatprep.subr.mxu0 0.0
  %438 = vmatpush2.msra.mxu0 0.0
  %439 = vmatprep.subr.mxu0 0.0
  %440 = vmatpush2.msra.mxu0 0.0
  %441 = vmatprep.subr.mxu0 0.0
  %442 = vmatpush2.msra.mxu0 0.0
  %443 = vmatprep.subr.mxu0 0.0
  %444 = vmatpush2.msra.mxu0 0.0
  %445 = vmatprep.subr.mxu0 0.0
  %446 = vmatpush2.msra.mxu0 0.0
  %447 = vmatprep.subr.mxu0 0.0
  %448 = vmatpush2.msra.mxu0 0.0
  %449 = vmatprep.subr.mxu0 0.0
  %450 = vmatpush2.msra.mxu0 0.0
  %451 = vmatprep.mubr.f32.mxu0 0.0
  %452 = vmatmul.mubr.f32.gmra.mxu0 %v379
  %v453 = vpop.f32.mrf.mxu0
  %v454 = vadd.f32 %v236, %v453
  %v455 = vpop.f32.mrf.mxu0
  %v456 = vadd.f32 %v238, %v455
  %457 = vmatprep.mubr.f32.mxu0 0.0
  %458 = vmatmul.mubr.f32.gmra.mxu0 %v91
  %v459 = vpop.f32.mrf.mxu0
  %v460 = vadd.f32 %v242, %v459
  %v461 = vpop.f32.mrf.mxu0
  %v462 = vadd.f32 %v244, %v461
  %463 = vmatprep.mubr.f32.mxu0 0.0
  %464 = vmatmul.mubr.f32.gmra.mxu0 %v94
  %v465 = vpop.f32.mrf.mxu0
  %v466 = vadd.f32 %v248, %v465
  %v467 = vpop.f32.mrf.mxu0
  %v468 = vadd.f32 %v250, %v467
  %469 = vmatprep.mubr.f32.mxu0 0.0
  %470 = vmatmul.mubr.f32.gmra.mxu0 %v97
  %v471 = vpop.f32.mrf.mxu0
  %v472 = vadd.f32 %v254, %v471
  %v473 = vpop.f32.mrf.mxu0
  %v474 = vadd.f32 %v256, %v473
  %475 = vmatprep.mubr.f32.mxu0 0.0
  %476 = vmatmul.mubr.f32.gmra.mxu0 %v100
  %v477 = vpop.f32.mrf.mxu0
  %v478 = vadd.f32 %v260, %v477
  %v479 = vpop.f32.mrf.mxu0
  %v480 = vadd.f32 %v262, %v479
  %481 = vmatprep.mubr.f32.mxu0 0.0
  %482 = vmatmul.mubr.f32.gmra.mxu0 %v103
  %v483 = vpop.f32.mrf.mxu0
  %v484 = vadd.f32 %v266, %v483
  %v485 = vpop.f32.mrf.mxu0
  %v486 = vadd.f32 %v268, %v485
  %487 = vmatprep.mubr.f32.mxu0 0.0
  %488 = vmatmul.mubr.f32.gmra.mxu0 %v106
  %v489 = vpop.f32.mrf.mxu0
  %v490 = vadd.f32 %v272, %v489
  %v491 = vpop.f32.mrf.mxu0
  %v492 = vadd.f32 %v274, %v491
  %493 = vmatprep.mubr.f32.mxu0 0.0
  %494 = vmatmul.mubr.f32.gmra.mxu0 %v109
  %v495 = vpop.f32.mrf.mxu0
  %v496 = vadd.f32 %v278, %v495
  %v497 = vpop.f32.mrf.mxu0
  %v498 = vadd.f32 %v280, %v497
  %499 = vmatprep.mubr.f32.mxu0 0.0
  %500 = vmatmul.mubr.f32.gmra.mxu0 %v112
  %v501 = vpop.f32.mrf.mxu0
  %v502 = vadd.f32 %v284, %v501
  %v503 = vpop.f32.mrf.mxu0
  %v504 = vadd.f32 %v286, %v503
  %505 = vmatprep.mubr.f32.mxu0 0.0
  %506 = vmatmul.mubr.f32.gmra.mxu0 %v115
  %v507 = vpop.f32.mrf.mxu0
  %v508 = vadd.f32 %v290, %v507
  %v509 = vpop.f32.mrf.mxu0
  %v510 = vadd.f32 %v292, %v509
  %511 = vmatprep.mubr.f32.mxu0 0.0
  %512 = vmatmul.mubr.f32.gmra.mxu0 %v118
  %v513 = vpop.f32.mrf.mxu0
  %v514 = vadd.f32 %v296, %v513
  %v515 = vpop.f32.mrf.mxu0
  %v516 = vadd.f32 %v298, %v515
  %517 = vmatprep.mubr.f32.mxu0 0.0
  %518 = vmatmul.mubr.f32.gmra.mxu0 %v121
  %v519 = vpop.f32.mrf.mxu0
  %v520 = vadd.f32 %v302, %v519
  %v521 = vpop.f32.mrf.mxu0
  %v522 = vadd.f32 %v304, %v521
  %523 = vmatprep.mubr.f32.mxu0 0.0
  %524 = vmatmul.mubr.f32.gmra.mxu0 %v124
  %v525 = vpop.f32.mrf.mxu0
  %v526 = vadd.f32 %v308, %v525
  %v527 = vpop.f32.mrf.mxu0
  %v528 = vadd.f32 %v310, %v527
  %529 = vmatprep.mubr.f32.mxu0 0.0
  %530 = vmatmul.mubr.f32.gmra.mxu0 %v127
  %v531 = vpop.f32.mrf.mxu0
  %v532 = vadd.f32 %v314, %v531
  %v533 = vpop.f32.mrf.mxu0
  %v534 = vadd.f32 %v316, %v533
  %535 = vmatprep.mubr.f32.mxu0 0.0
  %536 = vmatmul.mubr.f32.gmra.mxu0 %v130
  %v537 = vpop.f32.mrf.mxu0
  %v538 = vadd.f32 %v320, %v537
  %v539 = vpop.f32.mrf.mxu0
  %v540 = vadd.f32 %v322, %v539
  %541 = vmatprep.mubr.f32.mxu0 0.0
  %542 = vmatmul.mubr.f32.gmra.mxu0 %v133
  %v543 = vpop.f32.mrf.mxu0
  %v544 = vadd.f32 %v326, %v543
  %v545 = vpop.f32.mrf.mxu0
  %v546 = vadd.f32 %v328, %v545
  %547 = vmatprep.mubr.f32.mxu0 0.0
  %548 = vmatmul.mubr.f32.gmra.mxu0 %v136
  %v549 = vpop.f32.mrf.mxu0
  %v550 = vadd.f32 %v332, %v549
  %v551 = vpop.f32.mrf.mxu0
  %v552 = vadd.f32 %v334, %v551
  %553 = vmatprep.mubr.f32.mxu0 0.0
  %554 = vmatmul.mubr.f32.gmra.mxu0 %v139
  %v555 = vpop.f32.mrf.mxu0
  %v556 = vadd.f32 %v338, %v555
  %v557 = vpop.f32.mrf.mxu0
  %v558 = vadd.f32 %v340, %v557
  %559 = vmatprep.mubr.f32.mxu0 0.0
  %560 = vmatmul.mubr.f32.gmra.mxu0 %v142
  %v561 = vpop.f32.mrf.mxu0
  %v562 = vadd.f32 %v344, %v561
  %v563 = vpop.f32.mrf.mxu0
  %v564 = vadd.f32 %v346, %v563
  %565 = vmatprep.mubr.f32.mxu0 0.0
  %566 = vmatmul.mubr.f32.gmra.mxu0 %v145
  %v567 = vpop.f32.mrf.mxu0
  %v568 = vadd.f32 %v350, %v567
  %v569 = vpop.f32.mrf.mxu0
  %v570 = vadd.f32 %v352, %v569
  %571 = vmatprep.mubr.f32.mxu0 0.0
  %572 = vmatmul.mubr.f32.gmra.mxu0 %v148
  %v573 = vpop.f32.mrf.mxu0
  %v574 = vadd.f32 %v356, %v573
  %v575 = vpop.f32.mrf.mxu0
  %v576 = vadd.f32 %v358, %v575
  %577 = vmatprep.mubr.f32.mxu0 0.0
  %578 = vmatmul.mubr.f32.gmra.mxu0 %v151
  %v579 = vpop.f32.mrf.mxu0
  %v580 = vadd.f32 %v362, %v579
  %v581 = vpop.f32.mrf.mxu0
  %v582 = vadd.f32 %v364, %v581
  %583 = vmatprep.mubr.f32.mxu0 0.0
  %584 = vmatmul.mubr.f32.gmra.mxu0 %v154
  %v585 = vpop.f32.mrf.mxu0
  %v586 = vadd.f32 %v368, %v585
  %v587 = vpop.f32.mrf.mxu0
  %v588 = vadd.f32 %v370, %v587
  %589 = vmatprep.mubr.f32.mxu0 0.0
  %590 = vmatmul.mubr.f32.gmra.mxu0 %v157
  %v591 = vpop.f32.mrf.mxu0
  %v592 = vadd.f32 %v374, %v591
  %v593 = vpop.f32.mrf.mxu0
  %v594 = vadd.f32 %v376, %v593
  %595 = vdwg.mxu0
  %s596 = scalar_lea.vmem %s1, 128
  %v597 = vld [vmem:[%s596] sm:$0xff]
  %v598 = vld [vmem:[%s596 + $0x8] sm:$0xff]
  %v599 = vld [vmem:[%s596 + $0x10] sm:$0xff]
  %v600 = vld [vmem:[%s596 + $0x18] sm:$0xff]
  %v601 = vld [vmem:[%s596 + $0x20] sm:$0xff]
  %v602 = vld [vmem:[%s596 + $0x28] sm:$0xff]
  %v603 = vld [vmem:[%s596 + $0x30] sm:$0xf]
  %v604 = vld [vmem:[%s596 + $0x38] sm:$0xf]
  %v606 = vsel %vm89, %v69, 0
  %v609 = vsel %vm162, %v603, 0
  %v612 = vsel %vm162, %v604, 0
  %614 = vmatprep.subr.mxu0 0.0
  %615 = vmatpush1.msra.mxu0 0.0
  %616 = vmatprep.subr.mxu0 0.0
  %617 = vmatpush1.msra.mxu0 0.0
  %618 = vmatprep.subr.mxu0 0.0
  %619 = vmatpush1.msra.mxu0 0.0
  %620 = vmatprep.subr.mxu0 0.0
  %621 = vmatpush1.msra.mxu0 0.0
  %622 = vmatprep.subr.mxu0 0.0
  %623 = vmatpush1.msra.mxu0 0.0
  %624 = vmatprep.subr.mxu0 0.0
  %625 = vmatpush1.msra.mxu0 0.0
  %626 = vmatprep.subr.mxu0 0.0
  %627 = vmatpush1.msra.mxu0 0.0
  %628 = vmatprep.subr.mxu0 0.0
  %629 = vmatpush1.msra.mxu0 0.0
  %630 = vmatprep.subr.mxu0 0.0
  %631 = vmatpush1.msra.mxu0 0.0
  %632 = vmatprep.subr.mxu0 0.0
  %633 = vmatpush1.msra.mxu0 0.0
  %634 = vmatprep.subr.mxu0 0.0
  %635 = vmatpush1.msra.mxu0 0.0
  %636 = vmatprep.subr.mxu0 0.0
  %637 = vmatpush1.msra.mxu0 0.0
  %638 = vmatprep.subr.mxu0 %v612
  %639 = vmatpush1.msra.mxu0 %v609
  %640 = vmatprep.subr.mxu0 %v602
  %641 = vmatpush1.msra.mxu0 %v601
  %642 = vmatprep.subr.mxu0 %v600
  %643 = vmatpush1.msra.mxu0 %v599
  %644 = vmatprep.subr.mxu0 %v598
  %645 = vmatpush1.msra.mxu0 %v597
  %646 = vmatprep.subr.mxu0 0.0
  %647 = vmatpush2.msra.mxu0 0.0
  %648 = vmatprep.subr.mxu0 0.0
  %649 = vmatpush2.msra.mxu0 0.0
  %650 = vmatprep.subr.mxu0 0.0
  %651 = vmatpush2.msra.mxu0 0.0
  %652 = vmatprep.subr.mxu0 0.0
  %653 = vmatpush2.msra.mxu0 0.0
  %654 = vmatprep.subr.mxu0 0.0
  %655 = vmatpush2.msra.mxu0 0.0
  %656 = vmatprep.subr.mxu0 0.0
  %657 = vmatpush2.msra.mxu0 0.0
  %658 = vmatprep.subr.mxu0 0.0
  %659 = vmatpush2.msra.mxu0 0.0
  %660 = vmatprep.subr.mxu0 0.0
  %661 = vmatpush2.msra.mxu0 0.0
  %662 = vmatprep.subr.mxu0 0.0
  %663 = vmatpush2.msra.mxu0 0.0
  %664 = vmatprep.subr.mxu0 0.0
  %665 = vmatpush2.msra.mxu0 0.0
  %666 = vmatprep.subr.mxu0 0.0
  %667 = vmatpush2.msra.mxu0 0.0
  %668 = vmatprep.subr.mxu0 0.0
  %669 = vmatpush2.msra.mxu0 0.0
  %670 = vmatprep.subr.mxu0 0.0
  %671 = vmatpush2.msra.mxu0 0.0
  %672 = vmatprep.subr.mxu0 0.0
  %673 = vmatpush2.msra.mxu0 0.0
  %674 = vmatprep.subr.mxu0 0.0
  %675 = vmatpush2.msra.mxu0 0.0
  %676 = vmatprep.subr.mxu0 0.0
  %677 = vmatpush2.msra.mxu0 0.0
  %678 = vmatprep.mubr.f32.mxu0 0.0
  %679 = vmatmul.mubr.f32.gmra.mxu0 %v94
  %v680 = vpop.f32.mrf.mxu0
  %v681 = vadd.f32 0.0, %v680
  %v682 = vpop.f32.mrf.mxu0
  %v683 = vadd.f32 0.0, %v682
  %684 = vmatprep.mubr.f32.mxu0 0.0
  %685 = vmatmul.mubr.f32.gmra.mxu0 %v97
  %v686 = vpop.f32.mrf.mxu0
  %v687 = vadd.f32 0.0, %v686
  %v688 = vpop.f32.mrf.mxu0
  %v689 = vadd.f32 0.0, %v688
  %690 = vmatprep.mubr.f32.mxu0 0.0
  %691 = vmatmul.mubr.f32.gmra.mxu0 %v100
  %v692 = vpop.f32.mrf.mxu0
  %v693 = vadd.f32 0.0, %v692
  %v694 = vpop.f32.mrf.mxu0
  %v695 = vadd.f32 0.0, %v694
  %696 = vmatprep.mubr.f32.mxu0 0.0
  %697 = vmatmul.mubr.f32.gmra.mxu0 %v103
  %v698 = vpop.f32.mrf.mxu0
  %v699 = vadd.f32 0.0, %v698
  %v700 = vpop.f32.mrf.mxu0
  %v701 = vadd.f32 0.0, %v700
  %702 = vmatprep.mubr.f32.mxu0 0.0
  %703 = vmatmul.mubr.f32.gmra.mxu0 %v106
  %v704 = vpop.f32.mrf.mxu0
  %v705 = vadd.f32 0.0, %v704
  %v706 = vpop.f32.mrf.mxu0
  %v707 = vadd.f32 0.0, %v706
  %708 = vmatprep.mubr.f32.mxu0 0.0
  %709 = vmatmul.mubr.f32.gmra.mxu0 %v109
  %v710 = vpop.f32.mrf.mxu0
  %v711 = vadd.f32 0.0, %v710
  %v712 = vpop.f32.mrf.mxu0
  %v713 = vadd.f32 0.0, %v712
  %714 = vmatprep.mubr.f32.mxu0 0.0
  %715 = vmatmul.mubr.f32.gmra.mxu0 %v112
  %v716 = vpop.f32.mrf.mxu0
  %v717 = vadd.f32 0.0, %v716
  %v718 = vpop.f32.mrf.mxu0
  %v719 = vadd.f32 0.0, %v718
  %720 = vmatprep.mubr.f32.mxu0 0.0
  %721 = vmatmul.mubr.f32.gmra.mxu0 %v115
  %v722 = vpop.f32.mrf.mxu0
  %v723 = vadd.f32 0.0, %v722
  %v724 = vpop.f32.mrf.mxu0
  %v725 = vadd.f32 0.0, %v724
  %726 = vmatprep.mubr.f32.mxu0 0.0
  %727 = vmatmul.mubr.f32.gmra.mxu0 %v118
  %v728 = vpop.f32.mrf.mxu0
  %v729 = vadd.f32 0.0, %v728
  %v730 = vpop.f32.mrf.mxu0
  %v731 = vadd.f32 0.0, %v730
  %732 = vmatprep.mubr.f32.mxu0 0.0
  %733 = vmatmul.mubr.f32.gmra.mxu0 %v121
  %v734 = vpop.f32.mrf.mxu0
  %v735 = vadd.f32 0.0, %v734
  %v736 = vpop.f32.mrf.mxu0
  %v737 = vadd.f32 0.0, %v736
  %738 = vmatprep.mubr.f32.mxu0 0.0
  %739 = vmatmul.mubr.f32.gmra.mxu0 %v124
  %v740 = vpop.f32.mrf.mxu0
  %v741 = vadd.f32 0.0, %v740
  %v742 = vpop.f32.mrf.mxu0
  %v743 = vadd.f32 0.0, %v742
  %744 = vmatprep.mubr.f32.mxu0 0.0
  %745 = vmatmul.mubr.f32.gmra.mxu0 %v127
  %v746 = vpop.f32.mrf.mxu0
  %v747 = vadd.f32 0.0, %v746
  %v748 = vpop.f32.mrf.mxu0
  %v749 = vadd.f32 0.0, %v748
  %750 = vmatprep.mubr.f32.mxu0 0.0
  %751 = vmatmul.mubr.f32.gmra.mxu0 %v130
  %v752 = vpop.f32.mrf.mxu0
  %v753 = vadd.f32 0.0, %v752
  %v754 = vpop.f32.mrf.mxu0
  %v755 = vadd.f32 0.0, %v754
  %756 = vmatprep.mubr.f32.mxu0 0.0
  %757 = vmatmul.mubr.f32.gmra.mxu0 %v133
  %v758 = vpop.f32.mrf.mxu0
  %v759 = vadd.f32 0.0, %v758
  %v760 = vpop.f32.mrf.mxu0
  %v761 = vadd.f32 0.0, %v760
  %762 = vmatprep.mubr.f32.mxu0 0.0
  %763 = vmatmul.mubr.f32.gmra.mxu0 %v136
  %v764 = vpop.f32.mrf.mxu0
  %v765 = vadd.f32 0.0, %v764
  %v766 = vpop.f32.mrf.mxu0
  %v767 = vadd.f32 0.0, %v766
  %768 = vmatprep.mubr.f32.mxu0 0.0
  %769 = vmatmul.mubr.f32.gmra.mxu0 %v139
  %v770 = vpop.f32.mrf.mxu0
  %v771 = vadd.f32 0.0, %v770
  %v772 = vpop.f32.mrf.mxu0
  %v773 = vadd.f32 0.0, %v772
  %774 = vmatprep.mubr.f32.mxu0 0.0
  %775 = vmatmul.mubr.f32.gmra.mxu0 %v142
  %v776 = vpop.f32.mrf.mxu0
  %v777 = vadd.f32 0.0, %v776
  %v778 = vpop.f32.mrf.mxu0
  %v779 = vadd.f32 0.0, %v778
  %780 = vmatprep.mubr.f32.mxu0 0.0
  %781 = vmatmul.mubr.f32.gmra.mxu0 %v145
  %v782 = vpop.f32.mrf.mxu0
  %v783 = vadd.f32 0.0, %v782
  %v784 = vpop.f32.mrf.mxu0
  %v785 = vadd.f32 0.0, %v784
  %786 = vmatprep.mubr.f32.mxu0 0.0
  %787 = vmatmul.mubr.f32.gmra.mxu0 %v148
  %v788 = vpop.f32.mrf.mxu0
  %v789 = vadd.f32 0.0, %v788
  %v790 = vpop.f32.mrf.mxu0
  %v791 = vadd.f32 0.0, %v790
  %792 = vmatprep.mubr.f32.mxu0 0.0
  %793 = vmatmul.mubr.f32.gmra.mxu0 %v151
  %v794 = vpop.f32.mrf.mxu0
  %v795 = vadd.f32 0.0, %v794
  %v796 = vpop.f32.mrf.mxu0
  %v797 = vadd.f32 0.0, %v796
  %798 = vmatprep.mubr.f32.mxu0 0.0
  %799 = vmatmul.mubr.f32.gmra.mxu0 %v154
  %v800 = vpop.f32.mrf.mxu0
  %v801 = vadd.f32 0.0, %v800
  %v802 = vpop.f32.mrf.mxu0
  %v803 = vadd.f32 0.0, %v802
  %804 = vmatprep.mubr.f32.mxu0 0.0
  %805 = vmatmul.mubr.f32.gmra.mxu0 %v157
  %v806 = vpop.f32.mrf.mxu0
  %v807 = vadd.f32 0.0, %v806
  %v808 = vpop.f32.mrf.mxu0
  %v809 = vadd.f32 0.0, %v808
  %810 = vmatprep.mubr.f32.mxu0 0.0
  %811 = vmatmul.mubr.f32.gmra.mxu0 %v160
  %v812 = vpop.f32.mrf.mxu0
  %v813 = vadd.f32 0.0, %v812
  %v814 = vpop.f32.mrf.mxu0
  %v815 = vadd.f32 0.0, %v814
  %816 = vmatprep.mubr.f32.mxu0 0.0
  %817 = vmatmul.mubr.f32.gmra.mxu0 %v606
  %v818 = vpop.f32.mrf.mxu0
  %v819 = vadd.f32 0.0, %v818
  %v820 = vpop.f32.mrf.mxu0
  %v821 = vadd.f32 0.0, %v820
  %822 = vdwg.mxu0
  %v823 = vadd.f32 %v454, %v681
  %v824 = vadd.f32 %v456, %v683
  %v825 = vadd.f32 %v460, %v687
  %v826 = vadd.f32 %v462, %v689
  %v827 = vadd.f32 %v466, %v693
  %v828 = vadd.f32 %v468, %v695
  %v829 = vadd.f32 %v472, %v699
  %v830 = vadd.f32 %v474, %v701
  %v831 = vadd.f32 %v478, %v705
  %v832 = vadd.f32 %v480, %v707
  %v833 = vadd.f32 %v484, %v711
  %v834 = vadd.f32 %v486, %v713
  %v835 = vadd.f32 %v490, %v717
  %v836 = vadd.f32 %v492, %v719
  %v837 = vadd.f32 %v496, %v723
  %v838 = vadd.f32 %v498, %v725
  %v839 = vadd.f32 %v502, %v729
  %v840 = vadd.f32 %v504, %v731
  %v841 = vadd.f32 %v508, %v735
  %v842 = vadd.f32 %v510, %v737
  %v843 = vadd.f32 %v514, %v741
  %v844 = vadd.f32 %v516, %v743
  %v845 = vadd.f32 %v520, %v747
  %v846 = vadd.f32 %v522, %v749
  %v847 = vadd.f32 %v526, %v753
  %v848 = vadd.f32 %v528, %v755
  %v849 = vadd.f32 %v532, %v759
  %v850 = vadd.f32 %v534, %v761
  %v851 = vadd.f32 %v538, %v765
  %v852 = vadd.f32 %v540, %v767
  %v853 = vadd.f32 %v544, %v771
  %v854 = vadd.f32 %v546, %v773
  %v855 = vadd.f32 %v550, %v777
  %v856 = vadd.f32 %v552, %v779
  %v857 = vadd.f32 %v556, %v783
  %v858 = vadd.f32 %v558, %v785
  %v859 = vadd.f32 %v562, %v789
  %v860 = vadd.f32 %v564, %v791
  %v861 = vadd.f32 %v568, %v795
  %v862 = vadd.f32 %v570, %v797
  %v863 = vadd.f32 %v574, %v801
  %v864 = vadd.f32 %v576, %v803
  %v865 = vadd.f32 %v580, %v807
  %v866 = vadd.f32 %v582, %v809
  %v867 = vadd.f32 %v586, %v813
  %v868 = vadd.f32 %v588, %v815
  %v869 = vadd.f32 %v592, %v819
  %v870 = vadd.f32 %v594, %v821
  %s871 = scalar_lea.vmem %s1, 192
  %v872 = vld [vmem:[%s871] sm:$0xff]
  %v873 = vld [vmem:[%s871 + $0x8] sm:$0xff]
  %v874 = vld [vmem:[%s871 + $0x10] sm:$0xff]
  %v875 = vld [vmem:[%s871 + $0x18] sm:$0xff]
  %v876 = vld [vmem:[%s871 + $0x20] sm:$0xff]
  %v877 = vld [vmem:[%s871 + $0x28] sm:$0xff]
  %v878 = vld [vmem:[%s871 + $0x30] sm:$0xf]
  %v879 = vld [vmem:[%s871 + $0x38] sm:$0xf]
  %v881 = vsel %vm89, %v70, 0
  %v884 = vsel %vm162, %v878, 0
  %v887 = vsel %vm162, %v879, 0
  %889 = vmatprep.subr.mxu0 0.0
  %890 = vmatpush1.msra.mxu0 0.0
  %891 = vmatprep.subr.mxu0 0.0
  %892 = vmatpush1.msra.mxu0 0.0
  %893 = vmatprep.subr.mxu0 0.0
  %894 = vmatpush1.msra.mxu0 0.0
  %895 = vmatprep.subr.mxu0 0.0
  %896 = vmatpush1.msra.mxu0 0.0
  %897 = vmatprep.subr.mxu0 0.0
  %898 = vmatpush1.msra.mxu0 0.0
  %899 = vmatprep.subr.mxu0 0.0
  %900 = vmatpush1.msra.mxu0 0.0
  %901 = vmatprep.subr.mxu0 0.0
  %902 = vmatpush1.msra.mxu0 0.0
  %903 = vmatprep.subr.mxu0 0.0
  %904 = vmatpush1.msra.mxu0 0.0
  %905 = vmatprep.subr.mxu0 0.0
  %906 = vmatpush1.msra.mxu0 0.0
  %907 = vmatprep.subr.mxu0 0.0
  %908 = vmatpush1.msra.mxu0 0.0
  %909 = vmatprep.subr.mxu0 0.0
  %910 = vmatpush1.msra.mxu0 0.0
  %911 = vmatprep.subr.mxu0 0.0
  %912 = vmatpush1.msra.mxu0 0.0
  %913 = vmatprep.subr.mxu0 %v887
  %914 = vmatpush1.msra.mxu0 %v884
  %915 = vmatprep.subr.mxu0 %v877
  %916 = vmatpush1.msra.mxu0 %v876
  %917 = vmatprep.subr.mxu0 %v875
  %918 = vmatpush1.msra.mxu0 %v874
  %919 = vmatprep.subr.mxu0 %v873
  %920 = vmatpush1.msra.mxu0 %v872
  %921 = vmatprep.subr.mxu0 0.0
  %922 = vmatpush2.msra.mxu0 0.0
  %923 = vmatprep.subr.mxu0 0.0
  %924 = vmatpush2.msra.mxu0 0.0
  %925 = vmatprep.subr.mxu0 0.0
  %926 = vmatpush2.msra.mxu0 0.0
  %927 = vmatprep.subr.mxu0 0.0
  %928 = vmatpush2.msra.mxu0 0.0
  %929 = vmatprep.subr.mxu0 0.0
  %930 = vmatpush2.msra.mxu0 0.0
  %931 = vmatprep.subr.mxu0 0.0
  %932 = vmatpush2.msra.mxu0 0.0
  %933 = vmatprep.subr.mxu0 0.0
  %934 = vmatpush2.msra.mxu0 0.0
  %935 = vmatprep.subr.mxu0 0.0
  %936 = vmatpush2.msra.mxu0 0.0
  %937 = vmatprep.subr.mxu0 0.0
  %938 = vmatpush2.msra.mxu0 0.0
  %939 = vmatprep.subr.mxu0 0.0
  %940 = vmatpush2.msra.mxu0 0.0
  %941 = vmatprep.subr.mxu0 0.0
  %942 = vmatpush2.msra.mxu0 0.0
  %943 = vmatprep.subr.mxu0 0.0
  %944 = vmatpush2.msra.mxu0 0.0
  %945 = vmatprep.subr.mxu0 0.0
  %946 = vmatpush2.msra.mxu0 0.0
  %947 = vmatprep.subr.mxu0 0.0
  %948 = vmatpush2.msra.mxu0 0.0
  %949 = vmatprep.subr.mxu0 0.0
  %950 = vmatpush2.msra.mxu0 0.0
  %951 = vmatprep.subr.mxu0 0.0
  %952 = vmatpush2.msra.mxu0 0.0
  %953 = vmatprep.mubr.f32.mxu0 0.0
  %954 = vmatmul.mubr.f32.gmra.mxu0 %v97
  %v955 = vpop.f32.mrf.mxu0
  %v956 = vadd.f32 0.0, %v955
  %v957 = vpop.f32.mrf.mxu0
  %v958 = vadd.f32 0.0, %v957
  %959 = vmatprep.mubr.f32.mxu0 0.0
  %960 = vmatmul.mubr.f32.gmra.mxu0 %v100
  %v961 = vpop.f32.mrf.mxu0
  %v962 = vadd.f32 0.0, %v961
  %v963 = vpop.f32.mrf.mxu0
  %v964 = vadd.f32 0.0, %v963
  %965 = vmatprep.mubr.f32.mxu0 0.0
  %966 = vmatmul.mubr.f32.gmra.mxu0 %v103
  %v967 = vpop.f32.mrf.mxu0
  %v968 = vadd.f32 0.0, %v967
  %v969 = vpop.f32.mrf.mxu0
  %v970 = vadd.f32 0.0, %v969
  %971 = vmatprep.mubr.f32.mxu0 0.0
  %972 = vmatmul.mubr.f32.gmra.mxu0 %v106
  %v973 = vpop.f32.mrf.mxu0
  %v974 = vadd.f32 0.0, %v973
  %v975 = vpop.f32.mrf.mxu0
  %v976 = vadd.f32 0.0, %v975
  %977 = vmatprep.mubr.f32.mxu0 0.0
  %978 = vmatmul.mubr.f32.gmra.mxu0 %v109
  %v979 = vpop.f32.mrf.mxu0
  %v980 = vadd.f32 0.0, %v979
  %v981 = vpop.f32.mrf.mxu0
  %v982 = vadd.f32 0.0, %v981
  %983 = vmatprep.mubr.f32.mxu0 0.0
  %984 = vmatmul.mubr.f32.gmra.mxu0 %v112
  %v985 = vpop.f32.mrf.mxu0
  %v986 = vadd.f32 0.0, %v985
  %v987 = vpop.f32.mrf.mxu0
  %v988 = vadd.f32 0.0, %v987
  %989 = vmatprep.mubr.f32.mxu0 0.0
  %990 = vmatmul.mubr.f32.gmra.mxu0 %v115
  %v991 = vpop.f32.mrf.mxu0
  %v992 = vadd.f32 0.0, %v991
  %v993 = vpop.f32.mrf.mxu0
  %v994 = vadd.f32 0.0, %v993
  %995 = vmatprep.mubr.f32.mxu0 0.0
  %996 = vmatmul.mubr.f32.gmra.mxu0 %v118
  %v997 = vpop.f32.mrf.mxu0
  %v998 = vadd.f32 0.0, %v997
  %v999 = vpop.f32.mrf.mxu0
  %v1000 = vadd.f32 0.0, %v999
  %1001 = vmatprep.mubr.f32.mxu0 0.0
  %1002 = vmatmul.mubr.f32.gmra.mxu0 %v121
  %v1003 = vpop.f32.mrf.mxu0
  %v1004 = vadd.f32 0.0, %v1003
  %v1005 = vpop.f32.mrf.mxu0
  %v1006 = vadd.f32 0.0, %v1005
  %1007 = vmatprep.mubr.f32.mxu0 0.0
  %1008 = vmatmul.mubr.f32.gmra.mxu0 %v124
  %v1009 = vpop.f32.mrf.mxu0
  %v1010 = vadd.f32 0.0, %v1009
  %v1011 = vpop.f32.mrf.mxu0
  %v1012 = vadd.f32 0.0, %v1011
  %1013 = vmatprep.mubr.f32.mxu0 0.0
  %1014 = vmatmul.mubr.f32.gmra.mxu0 %v127
  %v1015 = vpop.f32.mrf.mxu0
  %v1016 = vadd.f32 0.0, %v1015
  %v1017 = vpop.f32.mrf.mxu0
  %v1018 = vadd.f32 0.0, %v1017
  %1019 = vmatprep.mubr.f32.mxu0 0.0
  %1020 = vmatmul.mubr.f32.gmra.mxu0 %v130
  %v1021 = vpop.f32.mrf.mxu0
  %v1022 = vadd.f32 0.0, %v1021
  %v1023 = vpop.f32.mrf.mxu0
  %v1024 = vadd.f32 0.0, %v1023
  %1025 = vmatprep.mubr.f32.mxu0 0.0
  %1026 = vmatmul.mubr.f32.gmra.mxu0 %v133
  %v1027 = vpop.f32.mrf.mxu0
  %v1028 = vadd.f32 0.0, %v1027
  %v1029 = vpop.f32.mrf.mxu0
  %v1030 = vadd.f32 0.0, %v1029
  %1031 = vmatprep.mubr.f32.mxu0 0.0
  %1032 = vmatmul.mubr.f32.gmra.mxu0 %v136
  %v1033 = vpop.f32.mrf.mxu0
  %v1034 = vadd.f32 0.0, %v1033
  %v1035 = vpop.f32.mrf.mxu0
  %v1036 = vadd.f32 0.0, %v1035
  %1037 = vmatprep.mubr.f32.mxu0 0.0
  %1038 = vmatmul.mubr.f32.gmra.mxu0 %v139
  %v1039 = vpop.f32.mrf.mxu0
  %v1040 = vadd.f32 0.0, %v1039
  %v1041 = vpop.f32.mrf.mxu0
  %v1042 = vadd.f32 0.0, %v1041
  %1043 = vmatprep.mubr.f32.mxu0 0.0
  %1044 = vmatmul.mubr.f32.gmra.mxu0 %v142
  %v1045 = vpop.f32.mrf.mxu0
  %v1046 = vadd.f32 0.0, %v1045
  %v1047 = vpop.f32.mrf.mxu0
  %v1048 = vadd.f32 0.0, %v1047
  %1049 = vmatprep.mubr.f32.mxu0 0.0
  %1050 = vmatmul.mubr.f32.gmra.mxu0 %v145
  %v1051 = vpop.f32.mrf.mxu0
  %v1052 = vadd.f32 0.0, %v1051
  %v1053 = vpop.f32.mrf.mxu0
  %v1054 = vadd.f32 0.0, %v1053
  %1055 = vmatprep.mubr.f32.mxu0 0.0
  %1056 = vmatmul.mubr.f32.gmra.mxu0 %v148
  %v1057 = vpop.f32.mrf.mxu0
  %v1058 = vadd.f32 0.0, %v1057
  %v1059 = vpop.f32.mrf.mxu0
  %v1060 = vadd.f32 0.0, %v1059
  %1061 = vmatprep.mubr.f32.mxu0 0.0
  %1062 = vmatmul.mubr.f32.gmra.mxu0 %v151
  %v1063 = vpop.f32.mrf.mxu0
  %v1064 = vadd.f32 0.0, %v1063
  %v1065 = vpop.f32.mrf.mxu0
  %v1066 = vadd.f32 0.0, %v1065
  %1067 = vmatprep.mubr.f32.mxu0 0.0
  %1068 = vmatmul.mubr.f32.gmra.mxu0 %v154
  %v1069 = vpop.f32.mrf.mxu0
  %v1070 = vadd.f32 0.0, %v1069
  %v1071 = vpop.f32.mrf.mxu0
  %v1072 = vadd.f32 0.0, %v1071
  %1073 = vmatprep.mubr.f32.mxu0 0.0
  %1074 = vmatmul.mubr.f32.gmra.mxu0 %v157
  %v1075 = vpop.f32.mrf.mxu0
  %v1076 = vadd.f32 0.0, %v1075
  %v1077 = vpop.f32.mrf.mxu0
  %v1078 = vadd.f32 0.0, %v1077
  %1079 = vmatprep.mubr.f32.mxu0 0.0
  %1080 = vmatmul.mubr.f32.gmra.mxu0 %v160
  %v1081 = vpop.f32.mrf.mxu0
  %v1082 = vadd.f32 0.0, %v1081
  %v1083 = vpop.f32.mrf.mxu0
  %v1084 = vadd.f32 0.0, %v1083
  %1085 = vmatprep.mubr.f32.mxu0 0.0
  %1086 = vmatmul.mubr.f32.gmra.mxu0 %v606
  %v1087 = vpop.f32.mrf.mxu0
  %v1088 = vadd.f32 0.0, %v1087
  %v1089 = vpop.f32.mrf.mxu0
  %v1090 = vadd.f32 0.0, %v1089
  %1091 = vmatprep.mubr.f32.mxu0 0.0
  %1092 = vmatmul.mubr.f32.gmra.mxu0 %v881
  %v1093 = vpop.f32.mrf.mxu0
  %v1094 = vadd.f32 0.0, %v1093
  %v1095 = vpop.f32.mrf.mxu0
  %v1096 = vadd.f32 0.0, %v1095
  %1097 = vdwg.mxu0
  %v1098 = vadd.f32 %v823, %v956
  %v1099 = vadd.f32 %v824, %v958
  %v1100 = vadd.f32 %v825, %v962
  %v1101 = vadd.f32 %v826, %v964
  %v1102 = vadd.f32 %v827, %v968
  %v1103 = vadd.f32 %v828, %v970
  %v1104 = vadd.f32 %v829, %v974
  %v1105 = vadd.f32 %v830, %v976
  %v1106 = vadd.f32 %v831, %v980
  %v1107 = vadd.f32 %v832, %v982
  %v1108 = vadd.f32 %v833, %v986
  %v1109 = vadd.f32 %v834, %v988
  %v1110 = vadd.f32 %v835, %v992
  %v1111 = vadd.f32 %v836, %v994
  %v1112 = vadd.f32 %v837, %v998
  %v1113 = vadd.f32 %v838, %v1000
  %v1114 = vadd.f32 %v839, %v1004
  %v1115 = vadd.f32 %v840, %v1006
  %v1116 = vadd.f32 %v841, %v1010
  %v1117 = vadd.f32 %v842, %v1012
  %v1118 = vadd.f32 %v843, %v1016
  %v1119 = vadd.f32 %v844, %v1018
  %v1120 = vadd.f32 %v845, %v1022
  %v1121 = vadd.f32 %v846, %v1024
  %v1122 = vadd.f32 %v847, %v1028
  %v1123 = vadd.f32 %v848, %v1030
  %v1124 = vadd.f32 %v849, %v1034
  %v1125 = vadd.f32 %v850, %v1036
  %v1126 = vadd.f32 %v851, %v1040
  %v1127 = vadd.f32 %v852, %v1042
  %v1128 = vadd.f32 %v853, %v1046
  %v1129 = vadd.f32 %v854, %v1048
  %v1130 = vadd.f32 %v855, %v1052
  %v1131 = vadd.f32 %v856, %v1054
  %v1132 = vadd.f32 %v857, %v1058
  %v1133 = vadd.f32 %v858, %v1060
  %v1134 = vadd.f32 %v859, %v1064
  %v1135 = vadd.f32 %v860, %v1066
  %v1136 = vadd.f32 %v861, %v1070
  %v1137 = vadd.f32 %v862, %v1072
  %v1138 = vadd.f32 %v863, %v1076
  %v1139 = vadd.f32 %v864, %v1078
  %v1140 = vadd.f32 %v865, %v1082
  %v1141 = vadd.f32 %v866, %v1084
  %v1142 = vadd.f32 %v867, %v1088
  %v1143 = vadd.f32 %v868, %v1090
  %v1144 = vadd.f32 %v869, %v1094
  %v1145 = vadd.f32 %v870, %v1096
  %s1146 = scalar_lea.vmem %s1, 256
  %v1147 = vld [vmem:[%s1146] sm:$0xff]
  %v1148 = vld [vmem:[%s1146 + $0x8] sm:$0xff]
  %v1149 = vld [vmem:[%s1146 + $0x10] sm:$0xff]
  %v1150 = vld [vmem:[%s1146 + $0x18] sm:$0xff]
  %v1151 = vld [vmem:[%s1146 + $0x20] sm:$0xff]
  %v1152 = vld [vmem:[%s1146 + $0x28] sm:$0xff]
  %v1153 = vld [vmem:[%s1146 + $0x30] sm:$0xf]
  %v1154 = vld [vmem:[%s1146 + $0x38] sm:$0xf]
  %v1156 = vsel %vm89, %v71, 0
  %v1159 = vsel %vm162, %v1153, 0
  %v1162 = vsel %vm162, %v1154, 0
  %1164 = vmatprep.subr.mxu0 0.0
  %1165 = vmatpush1.msra.mxu0 0.0
  %1166 = vmatprep.subr.mxu0 0.0
  %1167 = vmatpush1.msra.mxu0 0.0
  %1168 = vmatprep.subr.mxu0 0.0
  %1169 = vmatpush1.msra.mxu0 0.0
  %1170 = vmatprep.subr.mxu0 0.0
  %1171 = vmatpush1.msra.mxu0 0.0
  %1172 = vmatprep.subr.mxu0 0.0
  %1173 = vmatpush1.msra.mxu0 0.0
  %1174 = vmatprep.subr.mxu0 0.0
  %1175 = vmatpush1.msra.mxu0 0.0
  %1176 = vmatprep.subr.mxu0 0.0
  %1177 = vmatpush1.msra.mxu0 0.0
  %1178 = vmatprep.subr.mxu0 0.0
  %1179 = vmatpush1.msra.mxu0 0.0
  %1180 = vmatprep.subr.mxu0 0.0
  %1181 = vmatpush1.msra.mxu0 0.0
  %1182 = vmatprep.subr.mxu0 0.0
  %1183 = vmatpush1.msra.mxu0 0.0
  %1184 = vmatprep.subr.mxu0 0.0
  %1185 = vmatpush1.msra.mxu0 0.0
  %1186 = vmatprep.subr.mxu0 0.0
  %1187 = vmatpush1.msra.mxu0 0.0
  %1188 = vmatprep.subr.mxu0 %v1162
  %1189 = vmatpush1.msra.mxu0 %v1159
  %1190 = vmatprep.subr.mxu0 %v1152
  %1191 = vmatpush1.msra.mxu0 %v1151
  %1192 = vmatprep.subr.mxu0 %v1150
  %1193 = vmatpush1.msra.mxu0 %v1149
  %1194 = vmatprep.subr.mxu0 %v1148
  %1195 = vmatpush1.msra.mxu0 %v1147
  %1196 = vmatprep.subr.mxu0 0.0
  %1197 = vmatpush2.msra.mxu0 0.0
  %1198 = vmatprep.subr.mxu0 0.0
  %1199 = vmatpush2.msra.mxu0 0.0
  %1200 = vmatprep.subr.mxu0 0.0
  %1201 = vmatpush2.msra.mxu0 0.0
  %1202 = vmatprep.subr.mxu0 0.0
  %1203 = vmatpush2.msra.mxu0 0.0
  %1204 = vmatprep.subr.mxu0 0.0
  %1205 = vmatpush2.msra.mxu0 0.0
  %1206 = vmatprep.subr.mxu0 0.0
  %1207 = vmatpush2.msra.mxu0 0.0
  %1208 = vmatprep.subr.mxu0 0.0
  %1209 = vmatpush2.msra.mxu0 0.0
  %1210 = vmatprep.subr.mxu0 0.0
  %1211 = vmatpush2.msra.mxu0 0.0
  %1212 = vmatprep.subr.mxu0 0.0
  %1213 = vmatpush2.msra.mxu0 0.0
  %1214 = vmatprep.subr.mxu0 0.0
  %1215 = vmatpush2.msra.mxu0 0.0
  %1216 = vmatprep.subr.mxu0 0.0
  %1217 = vmatpush2.msra.mxu0 0.0
  %1218 = vmatprep.subr.mxu0 0.0
  %1219 = vmatpush2.msra.mxu0 0.0
  %1220 = vmatprep.subr.mxu0 0.0
  %1221 = vmatpush2.msra.mxu0 0.0
  %1222 = vmatprep.subr.mxu0 0.0
  %1223 = vmatpush2.msra.mxu0 0.0
  %1224 = vmatprep.subr.mxu0 0.0
  %1225 = vmatpush2.msra.mxu0 0.0
  %1226 = vmatprep.subr.mxu0 0.0
  %1227 = vmatpush2.msra.mxu0 0.0
  %1228 = vmatprep.mubr.f32.mxu0 0.0
  %1229 = vmatmul.mubr.f32.gmra.mxu0 %v100
  %v1230 = vpop.f32.mrf.mxu0
  %v1231 = vadd.f32 0.0, %v1230
  %v1232 = vpop.f32.mrf.mxu0
  %v1233 = vadd.f32 0.0, %v1232
  %1234 = vmatprep.mubr.f32.mxu0 0.0
  %1235 = vmatmul.mubr.f32.gmra.mxu0 %v103
  %v1236 = vpop.f32.mrf.mxu0
  %v1237 = vadd.f32 0.0, %v1236
  %v1238 = vpop.f32.mrf.mxu0
  %v1239 = vadd.f32 0.0, %v1238
  %1240 = vmatprep.mubr.f32.mxu0 0.0
  %1241 = vmatmul.mubr.f32.gmra.mxu0 %v106
  %v1242 = vpop.f32.mrf.mxu0
  %v1243 = vadd.f32 0.0, %v1242
  %v1244 = vpop.f32.mrf.mxu0
  %v1245 = vadd.f32 0.0, %v1244
  %1246 = vmatprep.mubr.f32.mxu0 0.0
  %1247 = vmatmul.mubr.f32.gmra.mxu0 %v109
  %v1248 = vpop.f32.mrf.mxu0
  %v1249 = vadd.f32 0.0, %v1248
  %v1250 = vpop.f32.mrf.mxu0
  %v1251 = vadd.f32 0.0, %v1250
  %1252 = vmatprep.mubr.f32.mxu0 0.0
  %1253 = vmatmul.mubr.f32.gmra.mxu0 %v112
  %v1254 = vpop.f32.mrf.mxu0
  %v1255 = vadd.f32 0.0, %v1254
  %v1256 = vpop.f32.mrf.mxu0
  %v1257 = vadd.f32 0.0, %v1256
  %1258 = vmatprep.mubr.f32.mxu0 0.0
  %1259 = vmatmul.mubr.f32.gmra.mxu0 %v115
  %v1260 = vpop.f32.mrf.mxu0
  %v1261 = vadd.f32 0.0, %v1260
  %v1262 = vpop.f32.mrf.mxu0
  %v1263 = vadd.f32 0.0, %v1262
  %1264 = vmatprep.mubr.f32.mxu0 0.0
  %1265 = vmatmul.mubr.f32.gmra.mxu0 %v118
  %v1266 = vpop.f32.mrf.mxu0
  %v1267 = vadd.f32 0.0, %v1266
  %v1268 = vpop.f32.mrf.mxu0
  %v1269 = vadd.f32 0.0, %v1268
  %1270 = vmatprep.mubr.f32.mxu0 0.0
  %1271 = vmatmul.mubr.f32.gmra.mxu0 %v121
  %v1272 = vpop.f32.mrf.mxu0
  %v1273 = vadd.f32 0.0, %v1272
  %v1274 = vpop.f32.mrf.mxu0
  %v1275 = vadd.f32 0.0, %v1274
  %1276 = vmatprep.mubr.f32.mxu0 0.0
  %1277 = vmatmul.mubr.f32.gmra.mxu0 %v124
  %v1278 = vpop.f32.mrf.mxu0
  %v1279 = vadd.f32 0.0, %v1278
  %v1280 = vpop.f32.mrf.mxu0
  %v1281 = vadd.f32 0.0, %v1280
  %1282 = vmatprep.mubr.f32.mxu0 0.0
  %1283 = vmatmul.mubr.f32.gmra.mxu0 %v127
  %v1284 = vpop.f32.mrf.mxu0
  %v1285 = vadd.f32 0.0, %v1284
  %v1286 = vpop.f32.mrf.mxu0
  %v1287 = vadd.f32 0.0, %v1286
  %1288 = vmatprep.mubr.f32.mxu0 0.0
  %1289 = vmatmul.mubr.f32.gmra.mxu0 %v130
  %v1290 = vpop.f32.mrf.mxu0
  %v1291 = vadd.f32 0.0, %v1290
  %v1292 = vpop.f32.mrf.mxu0
  %v1293 = vadd.f32 0.0, %v1292
  %1294 = vmatprep.mubr.f32.mxu0 0.0
  %1295 = vmatmul.mubr.f32.gmra.mxu0 %v133
  %v1296 = vpop.f32.mrf.mxu0
  %v1297 = vadd.f32 0.0, %v1296
  %v1298 = vpop.f32.mrf.mxu0
  %v1299 = vadd.f32 0.0, %v1298
  %1300 = vmatprep.mubr.f32.mxu0 0.0
  %1301 = vmatmul.mubr.f32.gmra.mxu0 %v136
  %v1302 = vpop.f32.mrf.mxu0
  %v1303 = vadd.f32 0.0, %v1302
  %v1304 = vpop.f32.mrf.mxu0
  %v1305 = vadd.f32 0.0, %v1304
  %1306 = vmatprep.mubr.f32.mxu0 0.0
  %1307 = vmatmul.mubr.f32.gmra.mxu0 %v139
  %v1308 = vpop.f32.mrf.mxu0
  %v1309 = vadd.f32 0.0, %v1308
  %v1310 = vpop.f32.mrf.mxu0
  %v1311 = vadd.f32 0.0, %v1310
  %1312 = vmatprep.mubr.f32.mxu0 0.0
  %1313 = vmatmul.mubr.f32.gmra.mxu0 %v142
  %v1314 = vpop.f32.mrf.mxu0
  %v1315 = vadd.f32 0.0, %v1314
  %v1316 = vpop.f32.mrf.mxu0
  %v1317 = vadd.f32 0.0, %v1316
  %1318 = vmatprep.mubr.f32.mxu0 0.0
  %1319 = vmatmul.mubr.f32.gmra.mxu0 %v145
  %v1320 = vpop.f32.mrf.mxu0
  %v1321 = vadd.f32 0.0, %v1320
  %v1322 = vpop.f32.mrf.mxu0
  %v1323 = vadd.f32 0.0, %v1322
  %1324 = vmatprep.mubr.f32.mxu0 0.0
  %1325 = vmatmul.mubr.f32.gmra.mxu0 %v148
  %v1326 = vpop.f32.mrf.mxu0
  %v1327 = vadd.f32 0.0, %v1326
  %v1328 = vpop.f32.mrf.mxu0
  %v1329 = vadd.f32 0.0, %v1328
  %1330 = vmatprep.mubr.f32.mxu0 0.0
  %1331 = vmatmul.mubr.f32.gmra.mxu0 %v151
  %v1332 = vpop.f32.mrf.mxu0
  %v1333 = vadd.f32 0.0, %v1332
  %v1334 = vpop.f32.mrf.mxu0
  %v1335 = vadd.f32 0.0, %v1334
  %1336 = vmatprep.mubr.f32.mxu0 0.0
  %1337 = vmatmul.mubr.f32.gmra.mxu0 %v154
  %v1338 = vpop.f32.mrf.mxu0
  %v1339 = vadd.f32 0.0, %v1338
  %v1340 = vpop.f32.mrf.mxu0
  %v1341 = vadd.f32 0.0, %v1340
  %1342 = vmatprep.mubr.f32.mxu0 0.0
  %1343 = vmatmul.mubr.f32.gmra.mxu0 %v157
  %v1344 = vpop.f32.mrf.mxu0
  %v1345 = vadd.f32 0.0, %v1344
  %v1346 = vpop.f32.mrf.mxu0
  %v1347 = vadd.f32 0.0, %v1346
  %1348 = vmatprep.mubr.f32.mxu0 0.0
  %1349 = vmatmul.mubr.f32.gmra.mxu0 %v160
  %v1350 = vpop.f32.mrf.mxu0
  %v1351 = vadd.f32 0.0, %v1350
  %v1352 = vpop.f32.mrf.mxu0
  %v1353 = vadd.f32 0.0, %v1352
  %1354 = vmatprep.mubr.f32.mxu0 0.0
  %1355 = vmatmul.mubr.f32.gmra.mxu0 %v606
  %v1356 = vpop.f32.mrf.mxu0
  %v1357 = vadd.f32 0.0, %v1356
  %v1358 = vpop.f32.mrf.mxu0
  %v1359 = vadd.f32 0.0, %v1358
  %1360 = vmatprep.mubr.f32.mxu0 0.0
  %1361 = vmatmul.mubr.f32.gmra.mxu0 %v881
  %v1362 = vpop.f32.mrf.mxu0
  %v1363 = vadd.f32 0.0, %v1362
  %v1364 = vpop.f32.mrf.mxu0
  %v1365 = vadd.f32 0.0, %v1364
  %1366 = vmatprep.mubr.f32.mxu0 0.0
  %1367 = vmatmul.mubr.f32.gmra.mxu0 %v1156
  %v1368 = vpop.f32.mrf.mxu0
  %v1369 = vadd.f32 0.0, %v1368
  %v1370 = vpop.f32.mrf.mxu0
  %v1371 = vadd.f32 0.0, %v1370
  %1372 = vdwg.mxu0
  %v1373 = vadd.f32 %v1098, %v1231
  %v1374 = vadd.f32 %v1099, %v1233
  %v1375 = vadd.f32 %v1100, %v1237
  %v1376 = vadd.f32 %v1101, %v1239
  %v1377 = vadd.f32 %v1102, %v1243
  %v1378 = vadd.f32 %v1103, %v1245
  %v1379 = vadd.f32 %v1104, %v1249
  %v1380 = vadd.f32 %v1105, %v1251
  %v1381 = vadd.f32 %v1106, %v1255
  %v1382 = vadd.f32 %v1107, %v1257
  %v1383 = vadd.f32 %v1108, %v1261
  %v1384 = vadd.f32 %v1109, %v1263
  %v1385 = vadd.f32 %v1110, %v1267
  %v1386 = vadd.f32 %v1111, %v1269
  %v1387 = vadd.f32 %v1112, %v1273
  %v1388 = vadd.f32 %v1113, %v1275
  %v1389 = vadd.f32 %v1114, %v1279
  %v1390 = vadd.f32 %v1115, %v1281
  %v1391 = vadd.f32 %v1116, %v1285
  %v1392 = vadd.f32 %v1117, %v1287
  %v1393 = vadd.f32 %v1118, %v1291
  %v1394 = vadd.f32 %v1119, %v1293
  %v1395 = vadd.f32 %v1120, %v1297
  %v1396 = vadd.f32 %v1121, %v1299
  %v1397 = vadd.f32 %v1122, %v1303
  %v1398 = vadd.f32 %v1123, %v1305
  %v1399 = vadd.f32 %v1124, %v1309
  %v1400 = vadd.f32 %v1125, %v1311
  %v1401 = vadd.f32 %v1126, %v1315
  %v1402 = vadd.f32 %v1127, %v1317
  %v1403 = vadd.f32 %v1128, %v1321
  %v1404 = vadd.f32 %v1129, %v1323
  %v1405 = vadd.f32 %v1130, %v1327
  %v1406 = vadd.f32 %v1131, %v1329
  %v1407 = vadd.f32 %v1132, %v1333
  %v1408 = vadd.f32 %v1133, %v1335
  %v1409 = vadd.f32 %v1134, %v1339
  %v1410 = vadd.f32 %v1135, %v1341
  %v1411 = vadd.f32 %v1136, %v1345
  %v1412 = vadd.f32 %v1137, %v1347
  %v1413 = vadd.f32 %v1138, %v1351
  %v1414 = vadd.f32 %v1139, %v1353
  %v1415 = vadd.f32 %v1140, %v1357
  %v1416 = vadd.f32 %v1141, %v1359
  %v1417 = vadd.f32 %v1142, %v1363
  %v1418 = vadd.f32 %v1143, %v1365
  %v1419 = vadd.f32 %v1144, %v1369
  %v1420 = vadd.f32 %v1145, %v1371
  %v1421 = vld [vmem:[%s2] sm:$0x3]
  %v1423 = vlaneseq
  %v1424 = vshrl.u32 %v1423, 7
  %v1425 = vsub.s32 0, %v1424
  %v1426 = vrot.slane %v1421, %v1425
  %v1427 = vlaneseq
  %v1428 = vshrl.u32 %v1427, 7
  %v1429 = vsub.s32 1, %v1428
  %v1430 = vrot.slane %v1421, %v1429
  %v1433 = vadd.f32 %v1373, %v1426
  %v1434 = vadd.f32 %v1374, %v1430
  %v1435 = vadd.f32 %v1375, %v1426
  %v1436 = vadd.f32 %v1376, %v1430
  %v1437 = vadd.f32 %v1377, %v1426
  %v1438 = vadd.f32 %v1378, %v1430
  %v1439 = vadd.f32 %v1379, %v1426
  %v1440 = vadd.f32 %v1380, %v1430
  %v1441 = vadd.f32 %v1381, %v1426
  %v1442 = vadd.f32 %v1382, %v1430
  %v1443 = vadd.f32 %v1383, %v1426
  %v1444 = vadd.f32 %v1384, %v1430
  %v1445 = vadd.f32 %v1385, %v1426
  %v1446 = vadd.f32 %v1386, %v1430
  %v1447 = vadd.f32 %v1387, %v1426
  %v1448 = vadd.f32 %v1388, %v1430
  %v1449 = vadd.f32 %v1389, %v1426
  %v1450 = vadd.f32 %v1390, %v1430
  %v1451 = vadd.f32 %v1391, %v1426
  %v1452 = vadd.f32 %v1392, %v1430
  %v1453 = vadd.f32 %v1393, %v1426
  %v1454 = vadd.f32 %v1394, %v1430
  %v1455 = vadd.f32 %v1395, %v1426
  %v1456 = vadd.f32 %v1396, %v1430
  %v1457 = vadd.f32 %v1397, %v1426
  %v1458 = vadd.f32 %v1398, %v1430
  %v1459 = vadd.f32 %v1399, %v1426
  %v1460 = vadd.f32 %v1400, %v1430
  %v1461 = vadd.f32 %v1401, %v1426
  %v1462 = vadd.f32 %v1402, %v1430
  %v1463 = vadd.f32 %v1403, %v1426
  %v1464 = vadd.f32 %v1404, %v1430
  %v1465 = vadd.f32 %v1405, %v1426
  %v1466 = vadd.f32 %v1406, %v1430
  %v1467 = vadd.f32 %v1407, %v1426
  %v1468 = vadd.f32 %v1408, %v1430
  %v1469 = vadd.f32 %v1409, %v1426
  %v1470 = vadd.f32 %v1410, %v1430
  %v1471 = vadd.f32 %v1411, %v1426
  %v1472 = vadd.f32 %v1412, %v1430
  %v1473 = vadd.f32 %v1413, %v1426
  %v1474 = vadd.f32 %v1414, %v1430
  %v1475 = vadd.f32 %v1415, %v1426
  %v1476 = vadd.f32 %v1416, %v1430
  %v1477 = vadd.f32 %v1417, %v1426
  %v1478 = vadd.f32 %v1418, %v1430
  %v1479 = vadd.f32 %v1419, %v1426
  %v1480 = vadd.f32 %v1420, %v1430
  %v1481 = vmax.f32 %v1433, 0.0
  %v1482 = vmax.f32 %v1434, 0.0
  %v1483 = vmax.f32 %v1435, 0.0
  %v1484 = vmax.f32 %v1436, 0.0
  %v1485 = vmax.f32 %v1437, 0.0
  %v1486 = vmax.f32 %v1438, 0.0
  %v1487 = vmax.f32 %v1439, 0.0
  %v1488 = vmax.f32 %v1440, 0.0
  %v1489 = vmax.f32 %v1441, 0.0
  %v1490 = vmax.f32 %v1442, 0.0
  %v1491 = vmax.f32 %v1443, 0.0
  %v1492 = vmax.f32 %v1444, 0.0
  %v1493 = vmax.f32 %v1445, 0.0
  %v1494 = vmax.f32 %v1446, 0.0
  %v1495 = vmax.f32 %v1447, 0.0
  %v1496 = vmax.f32 %v1448, 0.0
  %v1497 = vmax.f32 %v1449, 0.0
  %v1498 = vmax.f32 %v1450, 0.0
  %v1499 = vmax.f32 %v1451, 0.0
  %v1500 = vmax.f32 %v1452, 0.0
  %v1501 = vmax.f32 %v1453, 0.0
  %v1502 = vmax.f32 %v1454, 0.0
  %v1503 = vmax.f32 %v1455, 0.0
  %v1504 = vmax.f32 %v1456, 0.0
  %v1505 = vmax.f32 %v1457, 0.0
  %v1506 = vmax.f32 %v1458, 0.0
  %v1507 = vmax.f32 %v1459, 0.0
  %v1508 = vmax.f32 %v1460, 0.0
  %v1509 = vmax.f32 %v1461, 0.0
  %v1510 = vmax.f32 %v1462, 0.0
  %v1511 = vmax.f32 %v1463, 0.0
  %v1512 = vmax.f32 %v1464, 0.0
  %v1513 = vmax.f32 %v1465, 0.0
  %v1514 = vmax.f32 %v1466, 0.0
  %v1515 = vmax.f32 %v1467, 0.0
  %v1516 = vmax.f32 %v1468, 0.0
  %v1517 = vmax.f32 %v1469, 0.0
  %v1518 = vmax.f32 %v1470, 0.0
  %v1519 = vmax.f32 %v1471, 0.0
  %v1520 = vmax.f32 %v1472, 0.0
  %v1521 = vmax.f32 %v1473, 0.0
  %v1522 = vmax.f32 %v1474, 0.0
  %v1523 = vmax.f32 %v1475, 0.0
  %v1524 = vmax.f32 %v1476, 0.0
  %v1525 = vmax.f32 %v1477, 0.0
  %v1526 = vmax.f32 %v1478, 0.0
  %v1527 = vmax.f32 %v1479, 0.0
  %v1528 = vmax.f32 %v1480, 0.0
  %v1529 = vmax.f32 %v1481, %v1483
  %v1530 = vmax.f32 %v1482, %v1484
  %v1531 = vmax.f32 %v1485, %v1487
  %v1532 = vmax.f32 %v1486, %v1488
  %v1533 = vmax.f32 %v1489, %v1491
  %v1534 = vmax.f32 %v1490, %v1492
  %v1535 = vmax.f32 %v1493, %v1495
  %v1536 = vmax.f32 %v1494, %v1496
  %v1537 = vmax.f32 %v1497, %v1499
  %v1538 = vmax.f32 %v1498, %v1500
  %v1539 = vmax.f32 %v1501, %v1503
  %v1540 = vmax.f32 %v1502, %v1504
  %v1541 = vmax.f32 %v1505, %v1507
  %v1542 = vmax.f32 %v1506, %v1508
  %v1543 = vmax.f32 %v1509, %v1511
  %v1544 = vmax.f32 %v1510, %v1512
  %v1545 = vmax.f32 %v1513, %v1515
  %v1546 = vmax.f32 %v1514, %v1516
  %v1547 = vmax.f32 %v1517, %v1519
  %v1548 = vmax.f32 %v1518, %v1520
  %v1549 = vmax.f32 %v1521, %v1523
  %v1550 = vmax.f32 %v1522, %v1524
  %v1551 = vmax.f32 %v1525, %v1527
  %v1552 = vmax.f32 %v1526, %v1528
  %v1553 = vld [vmem:[%s3] sm:$0xff]
  %v1554 = vld [vmem:[%s3 + $0x8] sm:$0xff]
  %v1555 = vld [vmem:[%s3 + $0x10] sm:$0xff]
  %v1556 = vld [vmem:[%s3 + $0x18] sm:$0xff]
  %v1557 = vld [vmem:[%s3 + $0x20] sm:$0xff]
  %v1558 = vld [vmem:[%s3 + $0x28] sm:$0xff]
  %v1559 = vld [vmem:[%s3 + $0x30] sm:$0xff]
  %v1560 = vld [vmem:[%s3 + $0x38] sm:$0xff]
  %v1561 = vld [vmem:[%s3 + $0x40] sm:$0xff]
  %v1562 = vld [vmem:[%s3 + $0x48] sm:$0xff]
  %v1563 = vld [vmem:[%s3 + $0x50] sm:$0xff]
  %v1564 = vld [vmem:[%s3 + $0x58] sm:$0xff]
  %v1565 = vld [vmem:[%s3 + $0x60] sm:$0xff]
  %v1566 = vld [vmem:[%s3 + $0x68] sm:$0xff]
  %v1567 = vld [vmem:[%s3 + $0x70] sm:$0xff]
  %v1568 = vld [vmem:[%s3 + $0x78] sm:$0xff]
  %v1569 = vld [vmem:[%s3 + $0x80] sm:$0xff]
  %v1570 = vld [vmem:[%s3 + $0x88] sm:$0xff]
  %vm1571 = vcmask 130048
  %v1573 = vsel %vm1571, %v1530, 0
  %v1576 = vsel %vm1571, %v1532, 0
  %v1579 = vsel %vm1571, %v1534, 0
  %v1582 = vsel %vm1571, %v1536, 0
  %v1585 = vsel %vm1571, %v1538, 0
  %v1588 = vsel %vm1571, %v1540, 0
  %v1591 = vsel %vm1571, %v1542, 0
  %v1594 = vsel %vm1571, %v1544, 0
  %v1597 = vsel %vm1571, %v1546, 0
  %v1600 = vsel %vm1571, %v1548, 0
  %v1603 = vsel %vm1571, %v1550, 0
  %v1606 = vsel %vm1571, %v1552, 0
  %1608 = vmatprep.subr.mxu0 0.0
  %1609 = vmatpush1.msra.mxu0 %v1568
  %1610 = vmatprep.subr.mxu0 0.0
  %1611 = vmatpush1.msra.mxu0 %v1567
  %1612 = vmatprep.subr.mxu0 0.0
  %1613 = vmatpush1.msra.mxu0 %v1566
  %1614 = vmatprep.subr.mxu0 0.0
  %1615 = vmatpush1.msra.mxu0 %v1565
  %1616 = vmatprep.subr.mxu0 0.0
  %1617 = vmatpush1.msra.mxu0 %v1564
  %1618 = vmatprep.subr.mxu0 0.0
  %1619 = vmatpush1.msra.mxu0 %v1563
  %1620 = vmatprep.subr.mxu0 0.0
  %1621 = vmatpush1.msra.mxu0 %v1562
  %1622 = vmatprep.subr.mxu0 0.0
  %1623 = vmatpush1.msra.mxu0 %v1561
  %1624 = vmatprep.subr.mxu0 0.0
  %1625 = vmatpush1.msra.mxu0 %v1560
  %1626 = vmatprep.subr.mxu0 0.0
  %1627 = vmatpush1.msra.mxu0 %v1559
  %1628 = vmatprep.subr.mxu0 0.0
  %1629 = vmatpush1.msra.mxu0 %v1558
  %1630 = vmatprep.subr.mxu0 0.0
  %1631 = vmatpush1.msra.mxu0 %v1557
  %1632 = vmatprep.subr.mxu0 0.0
  %1633 = vmatpush1.msra.mxu0 %v1556
  %1634 = vmatprep.subr.mxu0 0.0
  %1635 = vmatpush1.msra.mxu0 %v1555
  %1636 = vmatprep.subr.mxu0 0.0
  %1637 = vmatpush1.msra.mxu0 %v1554
  %1638 = vmatprep.subr.mxu0 0.0
  %1639 = vmatpush1.msra.mxu0 %v1553
  %1640 = vmatprep.subr.mxu0 0.0
  %1641 = vmatpush2.msra.mxu0 0.0
  %1642 = vmatprep.subr.mxu0 0.0
  %1643 = vmatpush2.msra.mxu0 0.0
  %1644 = vmatprep.subr.mxu0 0.0
  %1645 = vmatpush2.msra.mxu0 0.0
  %1646 = vmatprep.subr.mxu0 0.0
  %1647 = vmatpush2.msra.mxu0 0.0
  %1648 = vmatprep.subr.mxu0 0.0
  %1649 = vmatpush2.msra.mxu0 0.0
  %1650 = vmatprep.subr.mxu0 0.0
  %1651 = vmatpush2.msra.mxu0 0.0
  %1652 = vmatprep.subr.mxu0 0.0
  %1653 = vmatpush2.msra.mxu0 0.0
  %1654 = vmatprep.subr.mxu0 0.0
  %1655 = vmatpush2.msra.mxu0 0.0
  %1656 = vmatprep.subr.mxu0 0.0
  %1657 = vmatpush2.msra.mxu0 0.0
  %1658 = vmatprep.subr.mxu0 0.0
  %1659 = vmatpush2.msra.mxu0 0.0
  %1660 = vmatprep.subr.mxu0 0.0
  %1661 = vmatpush2.msra.mxu0 0.0
  %1662 = vmatprep.subr.mxu0 0.0
  %1663 = vmatpush2.msra.mxu0 0.0
  %1664 = vmatprep.subr.mxu0 0.0
  %1665 = vmatpush2.msra.mxu0 0.0
  %1666 = vmatprep.subr.mxu0 0.0
  %1667 = vmatpush2.msra.mxu0 0.0
  %1668 = vmatprep.subr.mxu0 0.0
  %1669 = vmatpush2.msra.mxu0 %v1570
  %1670 = vmatprep.subr.mxu0 0.0
  %1671 = vmatpush2.msra.mxu0 %v1569
  %1672 = vmatprep.mubr.f32.mxu0 %v1573
  %1673 = vmatmul.mubr.f32.gmra.mxu0 %v1529
  %v1674 = vpop.f32.mrf.mxu0
  %v1675 = vadd.f32 0.0, %v1674
  %v1676 = vpop.f32.mrf.mxu0
  %1677 = vmatprep.mubr.f32.mxu0 %v1576
  %1678 = vmatmul.mubr.f32.gmra.mxu0 %v1531
  %v1679 = vpop.f32.mrf.mxu0
  %v1680 = vadd.f32 0.0, %v1679
  %v1681 = vpop.f32.mrf.mxu0
  %1682 = vmatprep.mubr.f32.mxu0 %v1579
  %1683 = vmatmul.mubr.f32.gmra.mxu0 %v1533
  %v1684 = vpop.f32.mrf.mxu0
  %v1685 = vadd.f32 0.0, %v1684
  %v1686 = vpop.f32.mrf.mxu0
  %1687 = vmatprep.mubr.f32.mxu0 %v1582
  %1688 = vmatmul.mubr.f32.gmra.mxu0 %v1535
  %v1689 = vpop.f32.mrf.mxu0
  %v1690 = vadd.f32 0.0, %v1689
  %v1691 = vpop.f32.mrf.mxu0
  %1692 = vmatprep.mubr.f32.mxu0 %v1585
  %1693 = vmatmul.mubr.f32.gmra.mxu0 %v1537
  %v1694 = vpop.f32.mrf.mxu0
  %v1695 = vadd.f32 0.0, %v1694
  %v1696 = vpop.f32.mrf.mxu0
  %1697 = vmatprep.mubr.f32.mxu0 %v1588
  %1698 = vmatmul.mubr.f32.gmra.mxu0 %v1539
  %v1699 = vpop.f32.mrf.mxu0
  %v1700 = vadd.f32 0.0, %v1699
  %v1701 = vpop.f32.mrf.mxu0
  %1702 = vmatprep.mubr.f32.mxu0 %v1591
  %1703 = vmatmul.mubr.f32.gmra.mxu0 %v1541
  %v1704 = vpop.f32.mrf.mxu0
  %v1705 = vadd.f32 0.0, %v1704
  %v1706 = vpop.f32.mrf.mxu0
  %1707 = vmatprep.mubr.f32.mxu0 %v1594
  %1708 = vmatmul.mubr.f32.gmra.mxu0 %v1543
  %v1709 = vpop.f32.mrf.mxu0
  %v1710 = vadd.f32 0.0, %v1709
  %v1711 = vpop.f32.mrf.mxu0
  %1712 = vmatprep.mubr.f32.mxu0 %v1597
  %1713 = vmatmul.mubr.f32.gmra.mxu0 %v1545
  %v1714 = vpop.f32.mrf.mxu0
  %v1715 = vadd.f32 0.0, %v1714
  %v1716 = vpop.f32.mrf.mxu0
  %1717 = vmatprep.mubr.f32.mxu0 %v1600
  %1718 = vmatmul.mubr.f32.gmra.mxu0 %v1547
  %v1719 = vpop.f32.mrf.mxu0
  %v1720 = vadd.f32 0.0, %v1719
  %v1721 = vpop.f32.mrf.mxu0
  %1722 = vmatprep.mubr.f32.mxu0 %v1603
  %1723 = vmatmul.mubr.f32.gmra.mxu0 %v1549
  %v1724 = vpop.f32.mrf.mxu0
  %v1725 = vadd.f32 0.0, %v1724
  %v1726 = vpop.f32.mrf.mxu0
  %1727 = vmatprep.mubr.f32.mxu0 %v1606
  %1728 = vmatmul.mubr.f32.gmra.mxu0 %v1551
  %v1729 = vpop.f32.mrf.mxu0
  %v1730 = vadd.f32 0.0, %v1729
  %v1731 = vpop.f32.mrf.mxu0
  %1732 = vdwg.mxu0
  %s1733 = scalar_lea.vmem %s3, 144
  %v1734 = vld [vmem:[%s1733] sm:$0xff]
  %v1735 = vld [vmem:[%s1733 + $0x8] sm:$0xff]
  %v1736 = vld [vmem:[%s1733 + $0x10] sm:$0xff]
  %v1737 = vld [vmem:[%s1733 + $0x18] sm:$0xff]
  %v1738 = vld [vmem:[%s1733 + $0x20] sm:$0xff]
  %v1739 = vld [vmem:[%s1733 + $0x28] sm:$0xff]
  %v1740 = vld [vmem:[%s1733 + $0x30] sm:$0xff]
  %v1741 = vld [vmem:[%s1733 + $0x38] sm:$0xff]
  %v1742 = vld [vmem:[%s1733 + $0x40] sm:$0xff]
  %v1743 = vld [vmem:[%s1733 + $0x48] sm:$0xff]
  %v1744 = vld [vmem:[%s1733 + $0x50] sm:$0xff]
  %v1745 = vld [vmem:[%s1733 + $0x58] sm:$0xff]
  %v1746 = vld [vmem:[%s1733 + $0x60] sm:$0xff]
  %v1747 = vld [vmem:[%s1733 + $0x68] sm:$0xff]
  %v1748 = vld [vmem:[%s1733 + $0x70] sm:$0xff]
  %v1749 = vld [vmem:[%s1733 + $0x78] sm:$0xff]
  %v1750 = vld [vmem:[%s1733 + $0x80] sm:$0xff]
  %v1751 = vld [vmem:[%s1733 + $0x88] sm:$0xff]
  %1752 = vmatprep.subr.mxu0 0.0
  %1753 = vmatpush1.msra.mxu0 %v1749
  %1754 = vmatprep.subr.mxu0 0.0
  %1755 = vmatpush1.msra.mxu0 %v1748
  %1756 = vmatprep.subr.mxu0 0.0
  %1757 = vmatpush1.msra.mxu0 %v1747
  %1758 = vmatprep.subr.mxu0 0.0
  %1759 = vmatpush1.msra.mxu0 %v1746
  %1760 = vmatprep.subr.mxu0 0.0
  %1761 = vmatpush1.msra.mxu0 %v1745
  %1762 = vmatprep.subr.mxu0 0.0
  %1763 = vmatpush1.msra.mxu0 %v1744
  %1764 = vmatprep.subr.mxu0 0.0
  %1765 = vmatpush1.msra.mxu0 %v1743
  %1766 = vmatprep.subr.mxu0 0.0
  %1767 = vmatpush1.msra.mxu0 %v1742
  %1768 = vmatprep.subr.mxu0 0.0
  %1769 = vmatpush1.msra.mxu0 %v1741
  %1770 = vmatprep.subr.mxu0 0.0
  %1771 = vmatpush1.msra.mxu0 %v1740
  %1772 = vmatprep.subr.mxu0 0.0
  %1773 = vmatpush1.msra.mxu0 %v1739
  %1774 = vmatprep.subr.mxu0 0.0
  %1775 = vmatpush1.msra.mxu0 %v1738
  %1776 = vmatprep.subr.mxu0 0.0
  %1777 = vmatpush1.msra.mxu0 %v1737
  %1778 = vmatprep.subr.mxu0 0.0
  %1779 = vmatpush1.msra.mxu0 %v1736
  %1780 = vmatprep.subr.mxu0 0.0
  %1781 = vmatpush1.msra.mxu0 %v1735
  %1782 = vmatprep.subr.mxu0 0.0
  %1783 = vmatpush1.msra.mxu0 %v1734
  %1784 = vmatprep.subr.mxu0 0.0
  %1785 = vmatpush2.msra.mxu0 0.0
  %1786 = vmatprep.subr.mxu0 0.0
  %1787 = vmatpush2.msra.mxu0 0.0
  %1788 = vmatprep.subr.mxu0 0.0
  %1789 = vmatpush2.msra.mxu0 0.0
  %1790 = vmatprep.subr.mxu0 0.0
  %1791 = vmatpush2.msra.mxu0 0.0
  %1792 = vmatprep.subr.mxu0 0.0
  %1793 = vmatpush2.msra.mxu0 0.0
  %1794 = vmatprep.subr.mxu0 0.0
  %1795 = vmatpush2.msra.mxu0 0.0
  %1796 = vmatprep.subr.mxu0 0.0
  %1797 = vmatpush2.msra.mxu0 0.0
  %1798 = vmatprep.subr.mxu0 0.0
  %1799 = vmatpush2.msra.mxu0 0.0
  %1800 = vmatprep.subr.mxu0 0.0
  %1801 = vmatpush2.msra.mxu0 0.0
  %1802 = vmatprep.subr.mxu0 0.0
  %1803 = vmatpush2.msra.mxu0 0.0
  %1804 = vmatprep.subr.mxu0 0.0
  %1805 = vmatpush2.msra.mxu0 0.0
  %1806 = vmatprep.subr.mxu0 0.0
  %1807 = vmatpush2.msra.mxu0 0.0
  %1808 = vmatprep.subr.mxu0 0.0
  %1809 = vmatpush2.msra.mxu0 0.0
  %1810 = vmatprep.subr.mxu0 0.0
  %1811 = vmatpush2.msra.mxu0 0.0
  %1812 = vmatprep.subr.mxu0 0.0
  %1813 = vmatpush2.msra.mxu0 %v1751
  %1814 = vmatprep.subr.mxu0 0.0
  %1815 = vmatpush2.msra.mxu0 %v1750
  %1816 = vmatprep.mubr.f32.mxu0 %v1573
  %1817 = vmatmul.mubr.f32.gmra.mxu0 %v1529
  %v1818 = vpop.f32.mrf.mxu0
  %v1819 = vadd.f32 0.0, %v1818
  %v1820 = vpop.f32.mrf.mxu0
  %1821 = vmatprep.mubr.f32.mxu0 %v1576
  %1822 = vmatmul.mubr.f32.gmra.mxu0 %v1531
  %v1823 = vpop.f32.mrf.mxu0
  %v1824 = vadd.f32 0.0, %v1823
  %v1825 = vpop.f32.mrf.mxu0
  %1826 = vmatprep.mubr.f32.mxu0 %v1579
  %1827 = vmatmul.mubr.f32.gmra.mxu0 %v1533
  %v1828 = vpop.f32.mrf.mxu0
  %v1829 = vadd.f32 0.0, %v1828
  %v1830 = vpop.f32.mrf.mxu0
  %1831 = vmatprep.mubr.f32.mxu0 %v1582
  %1832 = vmatmul.mubr.f32.gmra.mxu0 %v1535
  %v1833 = vpop.f32.mrf.mxu0
  %v1834 = vadd.f32 0.0, %v1833
  %v1835 = vpop.f32.mrf.mxu0
  %1836 = vmatprep.mubr.f32.mxu0 %v1585
  %1837 = vmatmul.mubr.f32.gmra.mxu0 %v1537
  %v1838 = vpop.f32.mrf.mxu0
  %v1839 = vadd.f32 0.0, %v1838
  %v1840 = vpop.f32.mrf.mxu0
  %1841 = vmatprep.mubr.f32.mxu0 %v1588
  %1842 = vmatmul.mubr.f32.gmra.mxu0 %v1539
  %v1843 = vpop.f32.mrf.mxu0
  %v1844 = vadd.f32 0.0, %v1843
  %v1845 = vpop.f32.mrf.mxu0
  %1846 = vmatprep.mubr.f32.mxu0 %v1591
  %1847 = vmatmul.mubr.f32.gmra.mxu0 %v1541
  %v1848 = vpop.f32.mrf.mxu0
  %v1849 = vadd.f32 0.0, %v1848
  %v1850 = vpop.f32.mrf.mxu0
  %1851 = vmatprep.mubr.f32.mxu0 %v1594
  %1852 = vmatmul.mubr.f32.gmra.mxu0 %v1543
  %v1853 = vpop.f32.mrf.mxu0
  %v1854 = vadd.f32 0.0, %v1853
  %v1855 = vpop.f32.mrf.mxu0
  %1856 = vmatprep.mubr.f32.mxu0 %v1597
  %1857 = vmatmul.mubr.f32.gmra.mxu0 %v1545
  %v1858 = vpop.f32.mrf.mxu0
  %v1859 = vadd.f32 0.0, %v1858
  %v1860 = vpop.f32.mrf.mxu0
  %1861 = vmatprep.mubr.f32.mxu0 %v1600
  %1862 = vmatmul.mubr.f32.gmra.mxu0 %v1547
  %v1863 = vpop.f32.mrf.mxu0
  %v1864 = vadd.f32 0.0, %v1863
  %v1865 = vpop.f32.mrf.mxu0
  %1866 = vmatprep.mubr.f32.mxu0 %v1603
  %1867 = vmatmul.mubr.f32.gmra.mxu0 %v1549
  %v1868 = vpop.f32.mrf.mxu0
  %v1869 = vadd.f32 0.0, %v1868
  %v1870 = vpop.f32.mrf.mxu0
  %1871 = vmatprep.mubr.f32.mxu0 %v1606
  %1872 = vmatmul.mubr.f32.gmra.mxu0 %v1551
  %v1873 = vpop.f32.mrf.mxu0
  %v1874 = vadd.f32 0.0, %v1873
  %v1875 = vpop.f32.mrf.mxu0
  %1876 = vdwg.mxu0
  %v1877 = vmax.f32 %v1675, %v1819
  %v1878 = vmax.f32 %v1680, %v1824
  %v1879 = vmax.f32 %v1685, %v1829
  %v1880 = vmax.f32 %v1690, %v1834
  %v1881 = vmax.f32 %v1695, %v1839
  %v1882 = vmax.f32 %v1700, %v1844
  %v1883 = vmax.f32 %v1705, %v1849
  %v1884 = vmax.f32 %v1710, %v1854
  %v1885 = vmax.f32 %v1715, %v1859
  %v1886 = vmax.f32 %v1720, %v1864
  %v1887 = vmax.f32 %v1725, %v1869
  %v1888 = vmax.f32 %v1730, %v1874
  %v1889 = vld [vmem:[%s4] sm:$0xff]
  %v1890 = vld [vmem:[%s4 + $0x8] sm:$0xff]
  %v1891 = vld [vmem:[%s4 + $0x10] sm:$0xff]
  %v1892 = vld [vmem:[%s4 + $0x18] sm:$0xff]
  %v1893 = vld [vmem:[%s4 + $0x20] sm:$0xff]
  %v1894 = vld [vmem:[%s4 + $0x28] sm:$0xff]
  %v1895 = vld [vmem:[%s4 + $0x30] sm:$0xff]
  %v1896 = vld [vmem:[%s4 + $0x38] sm:$0xff]
  %v1897 = vld [vmem:[%s4 + $0x40] sm:$0xff]
  %v1898 = vld [vmem:[%s4 + $0x48] sm:$0xff]
  %v1899 = vld [vmem:[%s4 + $0x50] sm:$0xff]
  %v1900 = vld [vmem:[%s4 + $0x58] sm:$0xff]
  %v1901 = vld [vmem:[%s4 + $0x60] sm:$0xff]
  %v1902 = vld [vmem:[%s4 + $0x68] sm:$0xff]
  %v1903 = vld [vmem:[%s4 + $0x70] sm:$0xff]
  %v1904 = vld [vmem:[%s4 + $0x78] sm:$0xff]
  %v1905 = vld [vmem:[%s4 + $0x80] sm:$0xff]
  %v1906 = vld [vmem:[%s4 + $0x88] sm:$0xff]
  %v1907 = vld [vmem:[%s4 + $0x90] sm:$0xff]
  %v1908 = vld [vmem:[%s4 + $0x98] sm:$0xff]
  %v1909 = vld [vmem:[%s4 + $0xa0] sm:$0xf]
  %v1910 = vld [vmem:[%s4 + $0xa8] sm:$0xf]
  %s1911 = scalar_lea.vmem %s4, 176
  %v1912 = vld [vmem:[%s1911] sm:$0xff]
  %v1913 = vld [vmem:[%s1911 + $0x8] sm:$0xff]
  %v1914 = vld [vmem:[%s1911 + $0x10] sm:$0xff]
  %v1915 = vld [vmem:[%s1911 + $0x18] sm:$0xff]
  %v1916 = vld [vmem:[%s1911 + $0x20] sm:$0xff]
  %v1917 = vld [vmem:[%s1911 + $0x28] sm:$0xff]
  %v1918 = vld [vmem:[%s1911 + $0x30] sm:$0xff]
  %v1919 = vld [vmem:[%s1911 + $0x38] sm:$0xff]
  %v1920 = vld [vmem:[%s1911 + $0x40] sm:$0xff]
  %v1921 = vld [vmem:[%s1911 + $0x48] sm:$0xff]
  %v1922 = vld [vmem:[%s1911 + $0x50] sm:$0xff]
  %v1923 = vld [vmem:[%s1911 + $0x58] sm:$0xff]
  %v1924 = vld [vmem:[%s1911 + $0x60] sm:$0xff]
  %v1925 = vld [vmem:[%s1911 + $0x68] sm:$0xff]
  %v1926 = vld [vmem:[%s1911 + $0x70] sm:$0xff]
  %v1927 = vld [vmem:[%s1911 + $0x78] sm:$0xff]
  %v1928 = vld [vmem:[%s1911 + $0x80] sm:$0xff]
  %v1929 = vld [vmem:[%s1911 + $0x88] sm:$0xff]
  %v1930 = vld [vmem:[%s1911 + $0x90] sm:$0xff]
  %v1931 = vld [vmem:[%s1911 + $0x98] sm:$0xff]
  %v1932 = vld [vmem:[%s1911 + $0xa0] sm:$0xf]
  %v1933 = vld [vmem:[%s1911 + $0xa8] sm:$0xf]
  %vm1934 = vcmask 687104
  %v1936 = vsel %vm1934, %v1877, 0
  %v1939 = vsel %vm1934, %v1878, 0
  %v1942 = vsel %vm1934, %v1879, 0
  %v1945 = vsel %vm1934, %v1880, 0
  %v1948 = vsel %vm1934, %v1881, 0
  %v1951 = vsel %vm1934, %v1882, 0
  %v1954 = vsel %vm1934, %v1883, 0
  %v1957 = vsel %vm1934, %v1884, 0
  %v1960 = vsel %vm1934, %v1885, 0
  %v1963 = vsel %vm1934, %v1886, 0
  %v1966 = vsel %vm162, %v1932, 0
  %v1969 = vsel %vm162, %v1933, 0
  %1971 = vmatprep.subr.mxu0 0.0
  %1972 = vmatpush1.msra.mxu0 0.0
  %1973 = vmatprep.subr.mxu0 0.0
  %1974 = vmatpush1.msra.mxu0 0.0
  %1975 = vmatprep.subr.mxu0 0.0
  %1976 = vmatpush1.msra.mxu0 0.0
  %1977 = vmatprep.subr.mxu0 0.0
  %1978 = vmatpush1.msra.mxu0 0.0
  %1979 = vmatprep.subr.mxu0 0.0
  %1980 = vmatpush1.msra.mxu0 0.0
  %1981 = vmatprep.subr.mxu0 %v1969
  %1982 = vmatpush1.msra.mxu0 %v1966
  %1983 = vmatprep.subr.mxu0 %v1931
  %1984 = vmatpush1.msra.mxu0 %v1930
  %1985 = vmatprep.subr.mxu0 %v1929
  %1986 = vmatpush1.msra.mxu0 %v1928
  %1987 = vmatprep.subr.mxu0 %v1927
  %1988 = vmatpush1.msra.mxu0 %v1926
  %1989 = vmatprep.subr.mxu0 %v1925
  %1990 = vmatpush1.msra.mxu0 %v1924
  %1991 = vmatprep.subr.mxu0 %v1923
  %1992 = vmatpush1.msra.mxu0 %v1922
  %1993 = vmatprep.subr.mxu0 %v1921
  %1994 = vmatpush1.msra.mxu0 %v1920
  %1995 = vmatprep.subr.mxu0 %v1919
  %1996 = vmatpush1.msra.mxu0 %v1918
  %1997 = vmatprep.subr.mxu0 %v1917
  %1998 = vmatpush1.msra.mxu0 %v1916
  %1999 = vmatprep.subr.mxu0 %v1915
  %2000 = vmatpush1.msra.mxu0 %v1914
  %2001 = vmatprep.subr.mxu0 %v1913
  %2002 = vmatpush1.msra.mxu0 %v1912
  %2003 = vmatprep.subr.mxu0 0.0
  %2004 = vmatpush2.msra.mxu0 0.0
  %2005 = vmatprep.subr.mxu0 0.0
  %2006 = vmatpush2.msra.mxu0 0.0
  %2007 = vmatprep.subr.mxu0 0.0
  %2008 = vmatpush2.msra.mxu0 0.0
  %2009 = vmatprep.subr.mxu0 0.0
  %2010 = vmatpush2.msra.mxu0 0.0
  %2011 = vmatprep.subr.mxu0 0.0
  %2012 = vmatpush2.msra.mxu0 0.0
  %2013 = vmatprep.subr.mxu0 0.0
  %2014 = vmatpush2.msra.mxu0 0.0
  %2015 = vmatprep.subr.mxu0 0.0
  %2016 = vmatpush2.msra.mxu0 0.0
  %2017 = vmatprep.subr.mxu0 0.0
  %2018 = vmatpush2.msra.mxu0 0.0
  %2019 = vmatprep.subr.mxu0 0.0
  %2020 = vmatpush2.msra.mxu0 0.0
  %2021 = vmatprep.subr.mxu0 0.0
  %2022 = vmatpush2.msra.mxu0 0.0
  %2023 = vmatprep.subr.mxu0 0.0
  %2024 = vmatpush2.msra.mxu0 0.0
  %2025 = vmatprep.subr.mxu0 0.0
  %2026 = vmatpush2.msra.mxu0 0.0
  %2027 = vmatprep.subr.mxu0 0.0
  %2028 = vmatpush2.msra.mxu0 0.0
  %2029 = vmatprep.subr.mxu0 0.0
  %2030 = vmatpush2.msra.mxu0 0.0
  %2031 = vmatprep.subr.mxu0 0.0
  %2032 = vmatpush2.msra.mxu0 0.0
  %2033 = vmatprep.subr.mxu0 0.0
  %2034 = vmatpush2.msra.mxu0 0.0
  %2035 = vmatprep.mubr.f32.mxu0 0.0
  %2036 = vmatmul.mubr.f32.gmra.mxu0 %v1936
  %v2037 = vpop.f32.mrf.mxu0
  %v2038 = vadd.f32 0.0, %v2037
  %v2039 = vpop.f32.mrf.mxu0
  %v2040 = vadd.f32 0.0, %v2039
  %2041 = vmatprep.mubr.f32.mxu0 0.0
  %2042 = vmatmul.mubr.f32.gmra.mxu0 %v1939
  %v2043 = vpop.f32.mrf.mxu0
  %v2044 = vadd.f32 0.0, %v2043
  %v2045 = vpop.f32.mrf.mxu0
  %v2046 = vadd.f32 0.0, %v2045
  %2047 = vmatprep.mubr.f32.mxu0 0.0
  %2048 = vmatmul.mubr.f32.gmra.mxu0 %v1942
  %v2049 = vpop.f32.mrf.mxu0
  %v2050 = vadd.f32 0.0, %v2049
  %v2051 = vpop.f32.mrf.mxu0
  %v2052 = vadd.f32 0.0, %v2051
  %2053 = vmatprep.mubr.f32.mxu0 0.0
  %2054 = vmatmul.mubr.f32.gmra.mxu0 %v1945
  %v2055 = vpop.f32.mrf.mxu0
  %v2056 = vadd.f32 0.0, %v2055
  %v2057 = vpop.f32.mrf.mxu0
  %v2058 = vadd.f32 0.0, %v2057
  %2059 = vmatprep.mubr.f32.mxu0 0.0
  %2060 = vmatmul.mubr.f32.gmra.mxu0 %v1948
  %v2061 = vpop.f32.mrf.mxu0
  %v2062 = vadd.f32 0.0, %v2061
  %v2063 = vpop.f32.mrf.mxu0
  %v2064 = vadd.f32 0.0, %v2063
  %2065 = vmatprep.mubr.f32.mxu0 0.0
  %2066 = vmatmul.mubr.f32.gmra.mxu0 %v1951
  %v2067 = vpop.f32.mrf.mxu0
  %v2068 = vadd.f32 0.0, %v2067
  %v2069 = vpop.f32.mrf.mxu0
  %v2070 = vadd.f32 0.0, %v2069
  %2071 = vmatprep.mubr.f32.mxu0 0.0
  %2072 = vmatmul.mubr.f32.gmra.mxu0 %v1954
  %v2073 = vpop.f32.mrf.mxu0
  %v2074 = vadd.f32 0.0, %v2073
  %v2075 = vpop.f32.mrf.mxu0
  %v2076 = vadd.f32 0.0, %v2075
  %2077 = vmatprep.mubr.f32.mxu0 0.0
  %2078 = vmatmul.mubr.f32.gmra.mxu0 %v1957
  %v2079 = vpop.f32.mrf.mxu0
  %v2080 = vadd.f32 0.0, %v2079
  %v2081 = vpop.f32.mrf.mxu0
  %v2082 = vadd.f32 0.0, %v2081
  %2083 = vmatprep.mubr.f32.mxu0 0.0
  %2084 = vmatmul.mubr.f32.gmra.mxu0 %v1960
  %v2085 = vpop.f32.mrf.mxu0
  %v2086 = vadd.f32 0.0, %v2085
  %v2087 = vpop.f32.mrf.mxu0
  %v2088 = vadd.f32 0.0, %v2087
  %2089 = vmatprep.mubr.f32.mxu0 0.0
  %2090 = vmatmul.mubr.f32.gmra.mxu0 %v1963
  %v2091 = vpop.f32.mrf.mxu0
  %v2092 = vadd.f32 0.0, %v2091
  %v2093 = vpop.f32.mrf.mxu0
  %v2094 = vadd.f32 0.0, %v2093
  %2095 = vdwg.mxu0
  %v2097 = vsel %vm1934, 0.0, 0
  %v2100 = vsel %vm162, %v1909, 0
  %v2103 = vsel %vm162, %v1910, 0
  %2105 = vmatprep.subr.mxu0 0.0
  %2106 = vmatpush1.msra.mxu0 0.0
  %2107 = vmatprep.subr.mxu0 0.0
  %2108 = vmatpush1.msra.mxu0 0.0
  %2109 = vmatprep.subr.mxu0 0.0
  %2110 = vmatpush1.msra.mxu0 0.0
  %2111 = vmatprep.subr.mxu0 0.0
  %2112 = vmatpush1.msra.mxu0 0.0
  %2113 = vmatprep.subr.mxu0 0.0
  %2114 = vmatpush1.msra.mxu0 0.0
  %2115 = vmatprep.subr.mxu0 %v2103
  %2116 = vmatpush1.msra.mxu0 %v2100
  %2117 = vmatprep.subr.mxu0 %v1908
  %2118 = vmatpush1.msra.mxu0 %v1907
  %2119 = vmatprep.subr.mxu0 %v1906
  %2120 = vmatpush1.msra.mxu0 %v1905
  %2121 = vmatprep.subr.mxu0 %v1904
  %2122 = vmatpush1.msra.mxu0 %v1903
  %2123 = vmatprep.subr.mxu0 %v1902
  %2124 = vmatpush1.msra.mxu0 %v1901
  %2125 = vmatprep.subr.mxu0 %v1900
  %2126 = vmatpush1.msra.mxu0 %v1899
  %2127 = vmatprep.subr.mxu0 %v1898
  %2128 = vmatpush1.msra.mxu0 %v1897
  %2129 = vmatprep.subr.mxu0 %v1896
  %2130 = vmatpush1.msra.mxu0 %v1895
  %2131 = vmatprep.subr.mxu0 %v1894
  %2132 = vmatpush1.msra.mxu0 %v1893
  %2133 = vmatprep.subr.mxu0 %v1892
  %2134 = vmatpush1.msra.mxu0 %v1891
  %2135 = vmatprep.subr.mxu0 %v1890
  %2136 = vmatpush1.msra.mxu0 %v1889
  %2137 = vmatprep.subr.mxu0 0.0
  %2138 = vmatpush2.msra.mxu0 0.0
  %2139 = vmatprep.subr.mxu0 0.0
  %2140 = vmatpush2.msra.mxu0 0.0
  %2141 = vmatprep.subr.mxu0 0.0
  %2142 = vmatpush2.msra.mxu0 0.0
  %2143 = vmatprep.subr.mxu0 0.0
  %2144 = vmatpush2.msra.mxu0 0.0
  %2145 = vmatprep.subr.mxu0 0.0
  %2146 = vmatpush2.msra.mxu0 0.0
  %2147 = vmatprep.subr.mxu0 0.0
  %2148 = vmatpush2.msra.mxu0 0.0
  %2149 = vmatprep.subr.mxu0 0.0
  %2150 = vmatpush2.msra.mxu0 0.0
  %2151 = vmatprep.subr.mxu0 0.0
  %2152 = vmatpush2.msra.mxu0 0.0
  %2153 = vmatprep.subr.mxu0 0.0
  %2154 = vmatpush2.msra.mxu0 0.0
  %2155 = vmatprep.subr.mxu0 0.0
  %2156 = vmatpush2.msra.mxu0 0.0
  %2157 = vmatprep.subr.mxu0 0.0
  %2158 = vmatpush2.msra.mxu0 0.0
  %2159 = vmatprep.subr.mxu0 0.0
  %2160 = vmatpush2.msra.mxu0 0.0
  %2161 = vmatprep.subr.mxu0 0.0
  %2162 = vmatpush2.msra.mxu0 0.0
  %2163 = vmatprep.subr.mxu0 0.0
  %2164 = vmatpush2.msra.mxu0 0.0
  %2165 = vmatprep.subr.mxu0 0.0
  %2166 = vmatpush2.msra.mxu0 0.0
  %2167 = vmatprep.subr.mxu0 0.0
  %2168 = vmatpush2.msra.mxu0 0.0
  %2169 = vmatprep.mubr.f32.mxu0 0.0
  %2170 = vmatmul.mubr.f32.gmra.mxu0 %v2097
  %v2171 = vpop.f32.mrf.mxu0
  %v2172 = vadd.f32 %v2038, %v2171
  %v2173 = vpop.f32.mrf.mxu0
  %v2174 = vadd.f32 %v2040, %v2173
  %2175 = vmatprep.mubr.f32.mxu0 0.0
  %2176 = vmatmul.mubr.f32.gmra.mxu0 %v1936
  %v2177 = vpop.f32.mrf.mxu0
  %v2178 = vadd.f32 %v2044, %v2177
  %v2179 = vpop.f32.mrf.mxu0
  %v2180 = vadd.f32 %v2046, %v2179
  %2181 = vmatprep.mubr.f32.mxu0 0.0
  %2182 = vmatmul.mubr.f32.gmra.mxu0 %v1939
  %v2183 = vpop.f32.mrf.mxu0
  %v2184 = vadd.f32 %v2050, %v2183
  %v2185 = vpop.f32.mrf.mxu0
  %v2186 = vadd.f32 %v2052, %v2185
  %2187 = vmatprep.mubr.f32.mxu0 0.0
  %2188 = vmatmul.mubr.f32.gmra.mxu0 %v1942
  %v2189 = vpop.f32.mrf.mxu0
  %v2190 = vadd.f32 %v2056, %v2189
  %v2191 = vpop.f32.mrf.mxu0
  %v2192 = vadd.f32 %v2058, %v2191
  %2193 = vmatprep.mubr.f32.mxu0 0.0
  %2194 = vmatmul.mubr.f32.gmra.mxu0 %v1945
  %v2195 = vpop.f32.mrf.mxu0
  %v2196 = vadd.f32 %v2062, %v2195
  %v2197 = vpop.f32.mrf.mxu0
  %v2198 = vadd.f32 %v2064, %v2197
  %2199 = vmatprep.mubr.f32.mxu0 0.0
  %2200 = vmatmul.mubr.f32.gmra.mxu0 %v1948
  %v2201 = vpop.f32.mrf.mxu0
  %v2202 = vadd.f32 %v2068, %v2201
  %v2203 = vpop.f32.mrf.mxu0
  %v2204 = vadd.f32 %v2070, %v2203
  %2205 = vmatprep.mubr.f32.mxu0 0.0
  %2206 = vmatmul.mubr.f32.gmra.mxu0 %v1951
  %v2207 = vpop.f32.mrf.mxu0
  %v2208 = vadd.f32 %v2074, %v2207
  %v2209 = vpop.f32.mrf.mxu0
  %v2210 = vadd.f32 %v2076, %v2209
  %2211 = vmatprep.mubr.f32.mxu0 0.0
  %2212 = vmatmul.mubr.f32.gmra.mxu0 %v1954
  %v2213 = vpop.f32.mrf.mxu0
  %v2214 = vadd.f32 %v2080, %v2213
  %v2215 = vpop.f32.mrf.mxu0
  %v2216 = vadd.f32 %v2082, %v2215
  %2217 = vmatprep.mubr.f32.mxu0 0.0
  %2218 = vmatmul.mubr.f32.gmra.mxu0 %v1957
  %v2219 = vpop.f32.mrf.mxu0
  %v2220 = vadd.f32 %v2086, %v2219
  %v2221 = vpop.f32.mrf.mxu0
  %v2222 = vadd.f32 %v2088, %v2221
  %2223 = vmatprep.mubr.f32.mxu0 0.0
  %2224 = vmatmul.mubr.f32.gmra.mxu0 %v1960
  %v2225 = vpop.f32.mrf.mxu0
  %v2226 = vadd.f32 %v2092, %v2225
  %v2227 = vpop.f32.mrf.mxu0
  %v2228 = vadd.f32 %v2094, %v2227
  %2229 = vdwg.mxu0
  %s2230 = scalar_lea.vmem %s4, 352
  %v2231 = vld [vmem:[%s2230] sm:$0xff]
  %v2232 = vld [vmem:[%s2230 + $0x8] sm:$0xff]
  %v2233 = vld [vmem:[%s2230 + $0x10] sm:$0xff]
  %v2234 = vld [vmem:[%s2230 + $0x18] sm:$0xff]
  %v2235 = vld [vmem:[%s2230 + $0x20] sm:$0xff]
  %v2236 = vld [vmem:[%s2230 + $0x28] sm:$0xff]
  %v2237 = vld [vmem:[%s2230 + $0x30] sm:$0xff]
  %v2238 = vld [vmem:[%s2230 + $0x38] sm:$0xff]
  %v2239 = vld [vmem:[%s2230 + $0x40] sm:$0xff]
  %v2240 = vld [vmem:[%s2230 + $0x48] sm:$0xff]
  %v2241 = vld [vmem:[%s2230 + $0x50] sm:$0xff]
  %v2242 = vld [vmem:[%s2230 + $0x58] sm:$0xff]
  %v2243 = vld [vmem:[%s2230 + $0x60] sm:$0xff]
  %v2244 = vld [vmem:[%s2230 + $0x68] sm:$0xff]
  %v2245 = vld [vmem:[%s2230 + $0x70] sm:$0xff]
  %v2246 = vld [vmem:[%s2230 + $0x78] sm:$0xff]
  %v2247 = vld [vmem:[%s2230 + $0x80] sm:$0xff]
  %v2248 = vld [vmem:[%s2230 + $0x88] sm:$0xff]
  %v2249 = vld [vmem:[%s2230 + $0x90] sm:$0xff]
  %v2250 = vld [vmem:[%s2230 + $0x98] sm:$0xff]
  %v2251 = vld [vmem:[%s2230 + $0xa0] sm:$0xf]
  %v2252 = vld [vmem:[%s2230 + $0xa8] sm:$0xf]
  %v2254 = vsel %vm1934, %v1887, 0
  %v2257 = vsel %vm162, %v2251, 0
  %v2260 = vsel %vm162, %v2252, 0
  %2262 = vmatprep.subr.mxu0 0.0
  %2263 = vmatpush1.msra.mxu0 0.0
  %2264 = vmatprep.subr.mxu0 0.0
  %2265 = vmatpush1.msra.mxu0 0.0
  %2266 = vmatprep.subr.mxu0 0.0
  %2267 = vmatpush1.msra.mxu0 0.0
  %2268 = vmatprep.subr.mxu0 0.0
  %2269 = vmatpush1.msra.mxu0 0.0
  %2270 = vmatprep.subr.mxu0 0.0
  %2271 = vmatpush1.msra.mxu0 0.0
  %2272 = vmatprep.subr.mxu0 %v2260
  %2273 = vmatpush1.msra.mxu0 %v2257
  %2274 = vmatprep.subr.mxu0 %v2250
  %2275 = vmatpush1.msra.mxu0 %v2249
  %2276 = vmatprep.subr.mxu0 %v2248
  %2277 = vmatpush1.msra.mxu0 %v2247
  %2278 = vmatprep.subr.mxu0 %v2246
  %2279 = vmatpush1.msra.mxu0 %v2245
  %2280 = vmatprep.subr.mxu0 %v2244
  %2281 = vmatpush1.msra.mxu0 %v2243
  %2282 = vmatprep.subr.mxu0 %v2242
  %2283 = vmatpush1.msra.mxu0 %v2241
  %2284 = vmatprep.subr.mxu0 %v2240
  %2285 = vmatpush1.msra.mxu0 %v2239
  %2286 = vmatprep.subr.mxu0 %v2238
  %2287 = vmatpush1.msra.mxu0 %v2237
  %2288 = vmatprep.subr.mxu0 %v2236
  %2289 = vmatpush1.msra.mxu0 %v2235
  %2290 = vmatprep.subr.mxu0 %v2234
  %2291 = vmatpush1.msra.mxu0 %v2233
  %2292 = vmatprep.subr.mxu0 %v2232
  %2293 = vmatpush1.msra.mxu0 %v2231
  %2294 = vmatprep.subr.mxu0 0.0
  %2295 = vmatpush2.msra.mxu0 0.0
  %2296 = vmatprep.subr.mxu0 0.0
  %2297 = vmatpush2.msra.mxu0 0.0
  %2298 = vmatprep.subr.mxu0 0.0
  %2299 = vmatpush2.msra.mxu0 0.0
  %2300 = vmatprep.subr.mxu0 0.0
  %2301 = vmatpush2.msra.mxu0 0.0
  %2302 = vmatprep.subr.mxu0 0.0
  %2303 = vmatpush2.msra.mxu0 0.0
  %2304 = vmatprep.subr.mxu0 0.0
  %2305 = vmatpush2.msra.mxu0 0.0
  %2306 = vmatprep.subr.mxu0 0.0
  %2307 = vmatpush2.msra.mxu0 0.0
  %2308 = vmatprep.subr.mxu0 0.0
  %2309 = vmatpush2.msra.mxu0 0.0
  %2310 = vmatprep.subr.mxu0 0.0
  %2311 = vmatpush2.msra.mxu0 0.0
  %2312 = vmatprep.subr.mxu0 0.0
  %2313 = vmatpush2.msra.mxu0 0.0
  %2314 = vmatprep.subr.mxu0 0.0
  %2315 = vmatpush2.msra.mxu0 0.0
  %2316 = vmatprep.subr.mxu0 0.0
  %2317 = vmatpush2.msra.mxu0 0.0
  %2318 = vmatprep.subr.mxu0 0.0
  %2319 = vmatpush2.msra.mxu0 0.0
  %2320 = vmatprep.subr.mxu0 0.0
  %2321 = vmatpush2.msra.mxu0 0.0
  %2322 = vmatprep.subr.mxu0 0.0
  %2323 = vmatpush2.msra.mxu0 0.0
  %2324 = vmatprep.subr.mxu0 0.0
  %2325 = vmatpush2.msra.mxu0 0.0
  %2326 = vmatprep.mubr.f32.mxu0 0.0
  %2327 = vmatmul.mubr.f32.gmra.mxu0 %v1939
  %v2328 = vpop.f32.mrf.mxu0
  %v2329 = vadd.f32 0.0, %v2328
  %v2330 = vpop.f32.mrf.mxu0
  %v2331 = vadd.f32 0.0, %v2330
  %2332 = vmatprep.mubr.f32.mxu0 0.0
  %2333 = vmatmul.mubr.f32.gmra.mxu0 %v1942
  %v2334 = vpop.f32.mrf.mxu0
  %v2335 = vadd.f32 0.0, %v2334
  %v2336 = vpop.f32.mrf.mxu0
  %v2337 = vadd.f32 0.0, %v2336
  %2338 = vmatprep.mubr.f32.mxu0 0.0
  %2339 = vmatmul.mubr.f32.gmra.mxu0 %v1945
  %v2340 = vpop.f32.mrf.mxu0
  %v2341 = vadd.f32 0.0, %v2340
  %v2342 = vpop.f32.mrf.mxu0
  %v2343 = vadd.f32 0.0, %v2342
  %2344 = vmatprep.mubr.f32.mxu0 0.0
  %2345 = vmatmul.mubr.f32.gmra.mxu0 %v1948
  %v2346 = vpop.f32.mrf.mxu0
  %v2347 = vadd.f32 0.0, %v2346
  %v2348 = vpop.f32.mrf.mxu0
  %v2349 = vadd.f32 0.0, %v2348
  %2350 = vmatprep.mubr.f32.mxu0 0.0
  %2351 = vmatmul.mubr.f32.gmra.mxu0 %v1951
  %v2352 = vpop.f32.mrf.mxu0
  %v2353 = vadd.f32 0.0, %v2352
  %v2354 = vpop.f32.mrf.mxu0
  %v2355 = vadd.f32 0.0, %v2354
  %2356 = vmatprep.mubr.f32.mxu0 0.0
  %2357 = vmatmul.mubr.f32.gmra.mxu0 %v1954
  %v2358 = vpop.f32.mrf.mxu0
  %v2359 = vadd.f32 0.0, %v2358
  %v2360 = vpop.f32.mrf.mxu0
  %v2361 = vadd.f32 0.0, %v2360
  %2362 = vmatprep.mubr.f32.mxu0 0.0
  %2363 = vmatmul.mubr.f32.gmra.mxu0 %v1957
  %v2364 = vpop.f32.mrf.mxu0
  %v2365 = vadd.f32 0.0, %v2364
  %v2366 = vpop.f32.mrf.mxu0
  %v2367 = vadd.f32 0.0, %v2366
  %2368 = vmatprep.mubr.f32.mxu0 0.0
  %2369 = vmatmul.mubr.f32.gmra.mxu0 %v1960
  %v2370 = vpop.f32.mrf.mxu0
  %v2371 = vadd.f32 0.0, %v2370
  %v2372 = vpop.f32.mrf.mxu0
  %v2373 = vadd.f32 0.0, %v2372
  %2374 = vmatprep.mubr.f32.mxu0 0.0
  %2375 = vmatmul.mubr.f32.gmra.mxu0 %v1963
  %v2376 = vpop.f32.mrf.mxu0
  %v2377 = vadd.f32 0.0, %v2376
  %v2378 = vpop.f32.mrf.mxu0
  %v2379 = vadd.f32 0.0, %v2378
  %2380 = vmatprep.mubr.f32.mxu0 0.0
  %2381 = vmatmul.mubr.f32.gmra.mxu0 %v2254
  %v2382 = vpop.f32.mrf.mxu0
  %v2383 = vadd.f32 0.0, %v2382
  %v2384 = vpop.f32.mrf.mxu0
  %v2385 = vadd.f32 0.0, %v2384
  %2386 = vdwg.mxu0
  %v2387 = vadd.f32 %v2172, %v2329
  %v2388 = vadd.f32 %v2174, %v2331
  %v2389 = vadd.f32 %v2178, %v2335
  %v2390 = vadd.f32 %v2180, %v2337
  %v2391 = vadd.f32 %v2184, %v2341
  %v2392 = vadd.f32 %v2186, %v2343
  %v2393 = vadd.f32 %v2190, %v2347
  %v2394 = vadd.f32 %v2192, %v2349
  %v2395 = vadd.f32 %v2196, %v2353
  %v2396 = vadd.f32 %v2198, %v2355
  %v2397 = vadd.f32 %v2202, %v2359
  %v2398 = vadd.f32 %v2204, %v2361
  %v2399 = vadd.f32 %v2208, %v2365
  %v2400 = vadd.f32 %v2210, %v2367
  %v2401 = vadd.f32 %v2214, %v2371
  %v2402 = vadd.f32 %v2216, %v2373
  %v2403 = vadd.f32 %v2220, %v2377
  %v2404 = vadd.f32 %v2222, %v2379
  %v2405 = vadd.f32 %v2226, %v2383
  %v2406 = vadd.f32 %v2228, %v2385
  %s2407 = scalar_lea.vmem %s4, 528
  %v2408 = vld [vmem:[%s2407] sm:$0xff]
  %v2409 = vld [vmem:[%s2407 + $0x8] sm:$0xff]
  %v2410 = vld [vmem:[%s2407 + $0x10] sm:$0xff]
  %v2411 = vld [vmem:[%s2407 + $0x18] sm:$0xff]
  %v2412 = vld [vmem:[%s2407 + $0x20] sm:$0xff]
  %v2413 = vld [vmem:[%s2407 + $0x28] sm:$0xff]
  %v2414 = vld [vmem:[%s2407 + $0x30] sm:$0xff]
  %v2415 = vld [vmem:[%s2407 + $0x38] sm:$0xff]
  %v2416 = vld [vmem:[%s2407 + $0x40] sm:$0xff]
  %v2417 = vld [vmem:[%s2407 + $0x48] sm:$0xff]
  %v2418 = vld [vmem:[%s2407 + $0x50] sm:$0xff]
  %v2419 = vld [vmem:[%s2407 + $0x58] sm:$0xff]
  %v2420 = vld [vmem:[%s2407 + $0x60] sm:$0xff]
  %v2421 = vld [vmem:[%s2407 + $0x68] sm:$0xff]
  %v2422 = vld [vmem:[%s2407 + $0x70] sm:$0xff]
  %v2423 = vld [vmem:[%s2407 + $0x78] sm:$0xff]
  %v2424 = vld [vmem:[%s2407 + $0x80] sm:$0xff]
  %v2425 = vld [vmem:[%s2407 + $0x88] sm:$0xff]
  %v2426 = vld [vmem:[%s2407 + $0x90] sm:$0xff]
  %v2427 = vld [vmem:[%s2407 + $0x98] sm:$0xff]
  %v2428 = vld [vmem:[%s2407 + $0xa0] sm:$0xf]
  %v2429 = vld [vmem:[%s2407 + $0xa8] sm:$0xf]
  %v2431 = vsel %vm1934, %v1888, 0
  %v2434 = vsel %vm162, %v2428, 0
  %v2437 = vsel %vm162, %v2429, 0
  %2439 = vmatprep.subr.mxu0 0.0
  %2440 = vmatpush1.msra.mxu0 0.0
  %2441 = vmatprep.subr.mxu0 0.0
  %2442 = vmatpush1.msra.mxu0 0.0
  %2443 = vmatprep.subr.mxu0 0.0
  %2444 = vmatpush1.msra.mxu0 0.0
  %2445 = vmatprep.subr.mxu0 0.0
  %2446 = vmatpush1.msra.mxu0 0.0
  %2447 = vmatprep.subr.mxu0 0.0
  %2448 = vmatpush1.msra.mxu0 0.0
  %2449 = vmatprep.subr.mxu0 %v2437
  %2450 = vmatpush1.msra.mxu0 %v2434
  %2451 = vmatprep.subr.mxu0 %v2427
  %2452 = vmatpush1.msra.mxu0 %v2426
  %2453 = vmatprep.subr.mxu0 %v2425
  %2454 = vmatpush1.msra.mxu0 %v2424
  %2455 = vmatprep.subr.mxu0 %v2423
  %2456 = vmatpush1.msra.mxu0 %v2422
  %2457 = vmatprep.subr.mxu0 %v2421
  %2458 = vmatpush1.msra.mxu0 %v2420
  %2459 = vmatprep.subr.mxu0 %v2419
  %2460 = vmatpush1.msra.mxu0 %v2418
  %2461 = vmatprep.subr.mxu0 %v2417
  %2462 = vmatpush1.msra.mxu0 %v2416
  %2463 = vmatprep.subr.mxu0 %v2415
  %2464 = vmatpush1.msra.mxu0 %v2414
  %2465 = vmatprep.subr.mxu0 %v2413
  %2466 = vmatpush1.msra.mxu0 %v2412
  %2467 = vmatprep.subr.mxu0 %v2411
  %2468 = vmatpush1.msra.mxu0 %v2410
  %2469 = vmatprep.subr.mxu0 %v2409
  %2470 = vmatpush1.msra.mxu0 %v2408
  %2471 = vmatprep.subr.mxu0 0.0
  %2472 = vmatpush2.msra.mxu0 0.0
  %2473 = vmatprep.subr.mxu0 0.0
  %2474 = vmatpush2.msra.mxu0 0.0
  %2475 = vmatprep.subr.mxu0 0.0
  %2476 = vmatpush2.msra.mxu0 0.0
  %2477 = vmatprep.subr.mxu0 0.0
  %2478 = vmatpush2.msra.mxu0 0.0
  %2479 = vmatprep.subr.mxu0 0.0
  %2480 = vmatpush2.msra.mxu0 0.0
  %2481 = vmatprep.subr.mxu0 0.0
  %2482 = vmatpush2.msra.mxu0 0.0
  %2483 = vmatprep.subr.mxu0 0.0
  %2484 = vmatpush2.msra.mxu0 0.0
  %2485 = vmatprep.subr.mxu0 0.0
  %2486 = vmatpush2.msra.mxu0 0.0
  %2487 = vmatprep.subr.mxu0 0.0
  %2488 = vmatpush2.msra.mxu0 0.0
  %2489 = vmatprep.subr.mxu0 0.0
  %2490 = vmatpush2.msra.mxu0 0.0
  %2491 = vmatprep.subr.mxu0 0.0
  %2492 = vmatpush2.msra.mxu0 0.0
  %2493 = vmatprep.subr.mxu0 0.0
  %2494 = vmatpush2.msra.mxu0 0.0
  %2495 = vmatprep.subr.mxu0 0.0
  %2496 = vmatpush2.msra.mxu0 0.0
  %2497 = vmatprep.subr.mxu0 0.0
  %2498 = vmatpush2.msra.mxu0 0.0
  %2499 = vmatprep.subr.mxu0 0.0
  %2500 = vmatpush2.msra.mxu0 0.0
  %2501 = vmatprep.subr.mxu0 0.0
  %2502 = vmatpush2.msra.mxu0 0.0
  %2503 = vmatprep.mubr.f32.mxu0 0.0
  %2504 = vmatmul.mubr.f32.gmra.mxu0 %v1942
  %v2505 = vpop.f32.mrf.mxu0
  %v2506 = vadd.f32 0.0, %v2505
  %v2507 = vpop.f32.mrf.mxu0
  %v2508 = vadd.f32 0.0, %v2507
  %2509 = vmatprep.mubr.f32.mxu0 0.0
  %2510 = vmatmul.mubr.f32.gmra.mxu0 %v1945
  %v2511 = vpop.f32.mrf.mxu0
  %v2512 = vadd.f32 0.0, %v2511
  %v2513 = vpop.f32.mrf.mxu0
  %v2514 = vadd.f32 0.0, %v2513
  %2515 = vmatprep.mubr.f32.mxu0 0.0
  %2516 = vmatmul.mubr.f32.gmra.mxu0 %v1948
  %v2517 = vpop.f32.mrf.mxu0
  %v2518 = vadd.f32 0.0, %v2517
  %v2519 = vpop.f32.mrf.mxu0
  %v2520 = vadd.f32 0.0, %v2519
  %2521 = vmatprep.mubr.f32.mxu0 0.0
  %2522 = vmatmul.mubr.f32.gmra.mxu0 %v1951
  %v2523 = vpop.f32.mrf.mxu0
  %v2524 = vadd.f32 0.0, %v2523
  %v2525 = vpop.f32.mrf.mxu0
  %v2526 = vadd.f32 0.0, %v2525
  %2527 = vmatprep.mubr.f32.mxu0 0.0
  %2528 = vmatmul.mubr.f32.gmra.mxu0 %v1954
  %v2529 = vpop.f32.mrf.mxu0
  %v2530 = vadd.f32 0.0, %v2529
  %v2531 = vpop.f32.mrf.mxu0
  %v2532 = vadd.f32 0.0, %v2531
  %2533 = vmatprep.mubr.f32.mxu0 0.0
  %2534 = vmatmul.mubr.f32.gmra.mxu0 %v1957
  %v2535 = vpop.f32.mrf.mxu0
  %v2536 = vadd.f32 0.0, %v2535
  %v2537 = vpop.f32.mrf.mxu0
  %v2538 = vadd.f32 0.0, %v2537
  %2539 = vmatprep.mubr.f32.mxu0 0.0
  %2540 = vmatmul.mubr.f32.gmra.mxu0 %v1960
  %v2541 = vpop.f32.mrf.mxu0
  %v2542 = vadd.f32 0.0, %v2541
  %v2543 = vpop.f32.mrf.mxu0
  %v2544 = vadd.f32 0.0, %v2543
  %2545 = vmatprep.mubr.f32.mxu0 0.0
  %2546 = vmatmul.mubr.f32.gmra.mxu0 %v1963
  %v2547 = vpop.f32.mrf.mxu0
  %v2548 = vadd.f32 0.0, %v2547
  %v2549 = vpop.f32.mrf.mxu0
  %v2550 = vadd.f32 0.0, %v2549
  %2551 = vmatprep.mubr.f32.mxu0 0.0
  %2552 = vmatmul.mubr.f32.gmra.mxu0 %v2254
  %v2553 = vpop.f32.mrf.mxu0
  %v2554 = vadd.f32 0.0, %v2553
  %v2555 = vpop.f32.mrf.mxu0
  %v2556 = vadd.f32 0.0, %v2555
  %2557 = vmatprep.mubr.f32.mxu0 0.0
  %2558 = vmatmul.mubr.f32.gmra.mxu0 %v2431
  %v2559 = vpop.f32.mrf.mxu0
  %v2560 = vadd.f32 0.0, %v2559
  %v2561 = vpop.f32.mrf.mxu0
  %v2562 = vadd.f32 0.0, %v2561
  %2563 = vdwg.mxu0
  %v2564 = vadd.f32 %v2387, %v2506
  %v2565 = vadd.f32 %v2388, %v2508
  %v2566 = vadd.f32 %v2389, %v2512
  %v2567 = vadd.f32 %v2390, %v2514
  %v2568 = vadd.f32 %v2391, %v2518
  %v2569 = vadd.f32 %v2392, %v2520
  %v2570 = vadd.f32 %v2393, %v2524
  %v2571 = vadd.f32 %v2394, %v2526
  %v2572 = vadd.f32 %v2395, %v2530
  %v2573 = vadd.f32 %v2396, %v2532
  %v2574 = vadd.f32 %v2397, %v2536
  %v2575 = vadd.f32 %v2398, %v2538
  %v2576 = vadd.f32 %v2399, %v2542
  %v2577 = vadd.f32 %v2400, %v2544
  %v2578 = vadd.f32 %v2401, %v2548
  %v2579 = vadd.f32 %v2402, %v2550
  %v2580 = vadd.f32 %v2403, %v2554
  %v2581 = vadd.f32 %v2404, %v2556
  %v2582 = vadd.f32 %v2405, %v2560
  %v2583 = vadd.f32 %v2406, %v2562
  %s2584 = scalar_lea.vmem %s4, 704
  %v2585 = vld [vmem:[%s2584] sm:$0xff]
  %v2586 = vld [vmem:[%s2584 + $0x8] sm:$0xff]
  %v2587 = vld [vmem:[%s2584 + $0x10] sm:$0xff]
  %v2588 = vld [vmem:[%s2584 + $0x18] sm:$0xff]
  %v2589 = vld [vmem:[%s2584 + $0x20] sm:$0xff]
  %v2590 = vld [vmem:[%s2584 + $0x28] sm:$0xff]
  %v2591 = vld [vmem:[%s2584 + $0x30] sm:$0xff]
  %v2592 = vld [vmem:[%s2584 + $0x38] sm:$0xff]
  %v2593 = vld [vmem:[%s2584 + $0x40] sm:$0xff]
  %v2594 = vld [vmem:[%s2584 + $0x48] sm:$0xff]
  %v2595 = vld [vmem:[%s2584 + $0x50] sm:$0xff]
  %v2596 = vld [vmem:[%s2584 + $0x58] sm:$0xff]
  %v2597 = vld [vmem:[%s2584 + $0x60] sm:$0xff]
  %v2598 = vld [vmem:[%s2584 + $0x68] sm:$0xff]
  %v2599 = vld [vmem:[%s2584 + $0x70] sm:$0xff]
  %v2600 = vld [vmem:[%s2584 + $0x78] sm:$0xff]
  %v2601 = vld [vmem:[%s2584 + $0x80] sm:$0xff]
  %v2602 = vld [vmem:[%s2584 + $0x88] sm:$0xff]
  %v2603 = vld [vmem:[%s2584 + $0x90] sm:$0xff]
  %v2604 = vld [vmem:[%s2584 + $0x98] sm:$0xff]
  %v2605 = vld [vmem:[%s2584 + $0xa0] sm:$0xf]
  %v2606 = vld [vmem:[%s2584 + $0xa8] sm:$0xf]
  %v2608 = vsel %vm162, %v2605, 0
  %v2611 = vsel %vm162, %v2606, 0
  %2613 = vmatprep.subr.mxu0 0.0
  %2614 = vmatpush1.msra.mxu0 0.0
  %2615 = vmatprep.subr.mxu0 0.0
  %2616 = vmatpush1.msra.mxu0 0.0
  %2617 = vmatprep.subr.mxu0 0.0
  %2618 = vmatpush1.msra.mxu0 0.0
  %2619 = vmatprep.subr.mxu0 0.0
  %2620 = vmatpush1.msra.mxu0 0.0
  %2621 = vmatprep.subr.mxu0 0.0
  %2622 = vmatpush1.msra.mxu0 0.0
  %2623 = vmatprep.subr.mxu0 %v2611
  %2624 = vmatpush1.msra.mxu0 %v2608
  %2625 = vmatprep.subr.mxu0 %v2604
  %2626 = vmatpush1.msra.mxu0 %v2603
  %2627 = vmatprep.subr.mxu0 %v2602
  %2628 = vmatpush1.msra.mxu0 %v2601
  %2629 = vmatprep.subr.mxu0 %v2600
  %2630 = vmatpush1.msra.mxu0 %v2599
  %2631 = vmatprep.subr.mxu0 %v2598
  %2632 = vmatpush1.msra.mxu0 %v2597
  %2633 = vmatprep.subr.mxu0 %v2596
  %2634 = vmatpush1.msra.mxu0 %v2595
  %2635 = vmatprep.subr.mxu0 %v2594
  %2636 = vmatpush1.msra.mxu0 %v2593
  %2637 = vmatprep.subr.mxu0 %v2592
  %2638 = vmatpush1.msra.mxu0 %v2591
  %2639 = vmatprep.subr.mxu0 %v2590
  %2640 = vmatpush1.msra.mxu0 %v2589
  %2641 = vmatprep.subr.mxu0 %v2588
  %2642 = vmatpush1.msra.mxu0 %v2587
  %2643 = vmatprep.subr.mxu0 %v2586
  %2644 = vmatpush1.msra.mxu0 %v2585
  %2645 = vmatprep.subr.mxu0 0.0
  %2646 = vmatpush2.msra.mxu0 0.0
  %2647 = vmatprep.subr.mxu0 0.0
  %2648 = vmatpush2.msra.mxu0 0.0
  %2649 = vmatprep.subr.mxu0 0.0
  %2650 = vmatpush2.msra.mxu0 0.0
  %2651 = vmatprep.subr.mxu0 0.0
  %2652 = vmatpush2.msra.mxu0 0.0
  %2653 = vmatprep.subr.mxu0 0.0
  %2654 = vmatpush2.msra.mxu0 0.0
  %2655 = vmatprep.subr.mxu0 0.0
  %2656 = vmatpush2.msra.mxu0 0.0
  %2657 = vmatprep.subr.mxu0 0.0
  %2658 = vmatpush2.msra.mxu0 0.0
  %2659 = vmatprep.subr.mxu0 0.0
  %2660 = vmatpush2.msra.mxu0 0.0
  %2661 = vmatprep.subr.mxu0 0.0
  %2662 = vmatpush2.msra.mxu0 0.0
  %2663 = vmatprep.subr.mxu0 0.0
  %2664 = vmatpush2.msra.mxu0 0.0
  %2665 = vmatprep.subr.mxu0 0.0
  %2666 = vmatpush2.msra.mxu0 0.0
  %2667 = vmatprep.subr.mxu0 0.0
  %2668 = vmatpush2.msra.mxu0 0.0
  %2669 = vmatprep.subr.mxu0 0.0
  %2670 = vmatpush2.msra.mxu0 0.0
  %2671 = vmatprep.subr.mxu0 0.0
  %2672 = vmatpush2.msra.mxu0 0.0
  %2673 = vmatprep.subr.mxu0 0.0
  %2674 = vmatpush2.msra.mxu0 0.0
  %2675 = vmatprep.subr.mxu0 0.0
  %2676 = vmatpush2.msra.mxu0 0.0
  %2677 = vmatprep.mubr.f32.mxu0 0.0
  %2678 = vmatmul.mubr.f32.gmra.mxu0 %v1945
  %v2679 = vpop.f32.mrf.mxu0
  %v2680 = vadd.f32 0.0, %v2679
  %v2681 = vpop.f32.mrf.mxu0
  %v2682 = vadd.f32 0.0, %v2681
  %2683 = vmatprep.mubr.f32.mxu0 0.0
  %2684 = vmatmul.mubr.f32.gmra.mxu0 %v1948
  %v2685 = vpop.f32.mrf.mxu0
  %v2686 = vadd.f32 0.0, %v2685
  %v2687 = vpop.f32.mrf.mxu0
  %v2688 = vadd.f32 0.0, %v2687
  %2689 = vmatprep.mubr.f32.mxu0 0.0
  %2690 = vmatmul.mubr.f32.gmra.mxu0 %v1951
  %v2691 = vpop.f32.mrf.mxu0
  %v2692 = vadd.f32 0.0, %v2691
  %v2693 = vpop.f32.mrf.mxu0
  %v2694 = vadd.f32 0.0, %v2693
  %2695 = vmatprep.mubr.f32.mxu0 0.0
  %2696 = vmatmul.mubr.f32.gmra.mxu0 %v1954
  %v2697 = vpop.f32.mrf.mxu0
  %v2698 = vadd.f32 0.0, %v2697
  %v2699 = vpop.f32.mrf.mxu0
  %v2700 = vadd.f32 0.0, %v2699
  %2701 = vmatprep.mubr.f32.mxu0 0.0
  %2702 = vmatmul.mubr.f32.gmra.mxu0 %v1957
  %v2703 = vpop.f32.mrf.mxu0
  %v2704 = vadd.f32 0.0, %v2703
  %v2705 = vpop.f32.mrf.mxu0
  %v2706 = vadd.f32 0.0, %v2705
  %2707 = vmatprep.mubr.f32.mxu0 0.0
  %2708 = vmatmul.mubr.f32.gmra.mxu0 %v1960
  %v2709 = vpop.f32.mrf.mxu0
  %v2710 = vadd.f32 0.0, %v2709
  %v2711 = vpop.f32.mrf.mxu0
  %v2712 = vadd.f32 0.0, %v2711
  %2713 = vmatprep.mubr.f32.mxu0 0.0
  %2714 = vmatmul.mubr.f32.gmra.mxu0 %v1963
  %v2715 = vpop.f32.mrf.mxu0
  %v2716 = vadd.f32 0.0, %v2715
  %v2717 = vpop.f32.mrf.mxu0
  %v2718 = vadd.f32 0.0, %v2717
  %2719 = vmatprep.mubr.f32.mxu0 0.0
  %2720 = vmatmul.mubr.f32.gmra.mxu0 %v2254
  %v2721 = vpop.f32.mrf.mxu0
  %v2722 = vadd.f32 0.0, %v2721
  %v2723 = vpop.f32.mrf.mxu0
  %v2724 = vadd.f32 0.0, %v2723
  %2725 = vmatprep.mubr.f32.mxu0 0.0
  %2726 = vmatmul.mubr.f32.gmra.mxu0 %v2431
  %v2727 = vpop.f32.mrf.mxu0
  %v2728 = vadd.f32 0.0, %v2727
  %v2729 = vpop.f32.mrf.mxu0
  %v2730 = vadd.f32 0.0, %v2729
  %2731 = vmatprep.mubr.f32.mxu0 0.0
  %2732 = vmatmul.mubr.f32.gmra.mxu0 %v2097
  %v2733 = vpop.f32.mrf.mxu0
  %v2734 = vadd.f32 0.0, %v2733
  %v2735 = vpop.f32.mrf.mxu0
  %v2736 = vadd.f32 0.0, %v2735
  %2737 = vdwg.mxu0
  %v2738 = vadd.f32 %v2564, %v2680
  %v2739 = vadd.f32 %v2565, %v2682
  %v2740 = vadd.f32 %v2566, %v2686
  %v2741 = vadd.f32 %v2567, %v2688
  %v2742 = vadd.f32 %v2568, %v2692
  %v2743 = vadd.f32 %v2569, %v2694
  %v2744 = vadd.f32 %v2570, %v2698
  %v2745 = vadd.f32 %v2571, %v2700
  %v2746 = vadd.f32 %v2572, %v2704
  %v2747 = vadd.f32 %v2573, %v2706
  %v2748 = vadd.f32 %v2574, %v2710
  %v2749 = vadd.f32 %v2575, %v2712
  %v2750 = vadd.f32 %v2576, %v2716
  %v2751 = vadd.f32 %v2577, %v2718
  %v2752 = vadd.f32 %v2578, %v2722
  %v2753 = vadd.f32 %v2579, %v2724
  %v2754 = vadd.f32 %v2580, %v2728
  %v2755 = vadd.f32 %v2581, %v2730
  %v2756 = vadd.f32 %v2582, %v2734
  %v2757 = vadd.f32 %v2583, %v2736
  %v2758 = vld [vmem:[%s5] sm:$0x3]
  %v2760 = vlaneseq
  %v2761 = vshrl.u32 %v2760, 7
  %v2762 = vsub.s32 0, %v2761
  %v2763 = vrot.slane %v2758, %v2762
  %v2764 = vlaneseq
  %v2765 = vshrl.u32 %v2764, 7
  %v2766 = vsub.s32 1, %v2765
  %v2767 = vrot.slane %v2758, %v2766
  %v2770 = vadd.f32 %v2738, %v2763
  %v2771 = vadd.f32 %v2739, %v2767
  %v2772 = vadd.f32 %v2740, %v2763
  %v2773 = vadd.f32 %v2741, %v2767
  %v2774 = vadd.f32 %v2742, %v2763
  %v2775 = vadd.f32 %v2743, %v2767
  %v2776 = vadd.f32 %v2744, %v2763
  %v2777 = vadd.f32 %v2745, %v2767
  %v2778 = vadd.f32 %v2746, %v2763
  %v2779 = vadd.f32 %v2747, %v2767
  %v2780 = vadd.f32 %v2748, %v2763
  %v2781 = vadd.f32 %v2749, %v2767
  %v2782 = vadd.f32 %v2750, %v2763
  %v2783 = vadd.f32 %v2751, %v2767
  %v2784 = vadd.f32 %v2752, %v2763
  %v2785 = vadd.f32 %v2753, %v2767
  %v2786 = vadd.f32 %v2754, %v2763
  %v2787 = vadd.f32 %v2755, %v2767
  %v2788 = vadd.f32 %v2756, %v2763
  %v2789 = vadd.f32 %v2757, %v2767
  %v2790 = vmax.f32 %v2770, 0.0
  %v2791 = vmax.f32 %v2771, 0.0
  %v2792 = vmax.f32 %v2772, 0.0
  %v2793 = vmax.f32 %v2773, 0.0
  %v2794 = vmax.f32 %v2774, 0.0
  %v2795 = vmax.f32 %v2775, 0.0
  %v2796 = vmax.f32 %v2776, 0.0
  %v2797 = vmax.f32 %v2777, 0.0
  %v2798 = vmax.f32 %v2778, 0.0
  %v2799 = vmax.f32 %v2779, 0.0
  %v2800 = vmax.f32 %v2780, 0.0
  %v2801 = vmax.f32 %v2781, 0.0
  %v2802 = vmax.f32 %v2782, 0.0
  %v2803 = vmax.f32 %v2783, 0.0
  %v2804 = vmax.f32 %v2784, 0.0
  %v2805 = vmax.f32 %v2785, 0.0
  %v2806 = vmax.f32 %v2786, 0.0
  %v2807 = vmax.f32 %v2787, 0.0
  %v2808 = vmax.f32 %v2788, 0.0
  %v2809 = vmax.f32 %v2789, 0.0
  %v2810 = vmax.f32 %v2790, %v2792
  %v2811 = vmax.f32 %v2791, %v2793
  %v2812 = vmax.f32 %v2794, %v2796
  %v2813 = vmax.f32 %v2795, %v2797
  %v2814 = vmax.f32 %v2798, %v2800
  %v2815 = vmax.f32 %v2799, %v2801
  %v2816 = vmax.f32 %v2802, %v2804
  %v2817 = vmax.f32 %v2803, %v2805
  %v2818 = vmax.f32 %v2806, %v2808
  %v2819 = vmax.f32 %v2807, %v2809
  %v2820 = vld [vmem:[%s6] sm:$0xff]
  %v2821 = vld [vmem:[%s6 + $0x8] sm:$0xff]
  %v2822 = vld [vmem:[%s6 + $0x10] sm:$0xff]
  %v2823 = vld [vmem:[%s6 + $0x18] sm:$0xff]
  %v2824 = vld [vmem:[%s6 + $0x20] sm:$0xff]
  %v2825 = vld [vmem:[%s6 + $0x28] sm:$0xff]
  %v2826 = vld [vmem:[%s6 + $0x30] sm:$0xff]
  %v2827 = vld [vmem:[%s6 + $0x38] sm:$0xff]
  %v2828 = vld [vmem:[%s6 + $0x40] sm:$0xff]
  %v2829 = vld [vmem:[%s6 + $0x48] sm:$0xff]
  %v2830 = vld [vmem:[%s6 + $0x50] sm:$0xff]
  %v2831 = vld [vmem:[%s6 + $0x58] sm:$0xff]
  %v2832 = vld [vmem:[%s6 + $0x60] sm:$0xff]
  %v2833 = vld [vmem:[%s6 + $0x68] sm:$0xff]
  %v2834 = vld [vmem:[%s6 + $0x70] sm:$0xff]
  %v2835 = vld [vmem:[%s6 + $0x78] sm:$0xff]
  %v2836 = vld [vmem:[%s6 + $0x80] sm:$0xff]
  %v2837 = vld [vmem:[%s6 + $0x88] sm:$0xff]
  %v2838 = vld [vmem:[%s6 + $0x90] sm:$0xff]
  %v2839 = vld [vmem:[%s6 + $0x98] sm:$0xff]
  %vm2840 = vcmask 261120
  %v2842 = vsel %vm2840, %v2811, 0
  %v2845 = vsel %vm2840, %v2813, 0
  %v2848 = vsel %vm2840, %v2815, 0
  %v2851 = vsel %vm2840, %v2817, 0
  %v2854 = vsel %vm2840, %v2819, 0
  %2856 = vmatprep.subr.mxu0 0.0
  %2857 = vmatpush1.msra.mxu0 %v2835
  %2858 = vmatprep.subr.mxu0 0.0
  %2859 = vmatpush1.msra.mxu0 %v2834
  %2860 = vmatprep.subr.mxu0 0.0
  %2861 = vmatpush1.msra.mxu0 %v2833
  %2862 = vmatprep.subr.mxu0 0.0
  %2863 = vmatpush1.msra.mxu0 %v2832
  %2864 = vmatprep.subr.mxu0 0.0
  %2865 = vmatpush1.msra.mxu0 %v2831
  %2866 = vmatprep.subr.mxu0 0.0
  %2867 = vmatpush1.msra.mxu0 %v2830
  %2868 = vmatprep.subr.mxu0 0.0
  %2869 = vmatpush1.msra.mxu0 %v2829
  %2870 = vmatprep.subr.mxu0 0.0
  %2871 = vmatpush1.msra.mxu0 %v2828
  %2872 = vmatprep.subr.mxu0 0.0
  %2873 = vmatpush1.msra.mxu0 %v2827
  %2874 = vmatprep.subr.mxu0 0.0
  %2875 = vmatpush1.msra.mxu0 %v2826
  %2876 = vmatprep.subr.mxu0 0.0
  %2877 = vmatpush1.msra.mxu0 %v2825
  %2878 = vmatprep.subr.mxu0 0.0
  %2879 = vmatpush1.msra.mxu0 %v2824
  %2880 = vmatprep.subr.mxu0 0.0
  %2881 = vmatpush1.msra.mxu0 %v2823
  %2882 = vmatprep.subr.mxu0 0.0
  %2883 = vmatpush1.msra.mxu0 %v2822
  %2884 = vmatprep.subr.mxu0 0.0
  %2885 = vmatpush1.msra.mxu0 %v2821
  %2886 = vmatprep.subr.mxu0 0.0
  %2887 = vmatpush1.msra.mxu0 %v2820
  %2888 = vmatprep.subr.mxu0 0.0
  %2889 = vmatpush2.msra.mxu0 0.0
  %2890 = vmatprep.subr.mxu0 0.0
  %2891 = vmatpush2.msra.mxu0 0.0
  %2892 = vmatprep.subr.mxu0 0.0
  %2893 = vmatpush2.msra.mxu0 0.0
  %2894 = vmatprep.subr.mxu0 0.0
  %2895 = vmatpush2.msra.mxu0 0.0
  %2896 = vmatprep.subr.mxu0 0.0
  %2897 = vmatpush2.msra.mxu0 0.0
  %2898 = vmatprep.subr.mxu0 0.0
  %2899 = vmatpush2.msra.mxu0 0.0
  %2900 = vmatprep.subr.mxu0 0.0
  %2901 = vmatpush2.msra.mxu0 0.0
  %2902 = vmatprep.subr.mxu0 0.0
  %2903 = vmatpush2.msra.mxu0 0.0
  %2904 = vmatprep.subr.mxu0 0.0
  %2905 = vmatpush2.msra.mxu0 0.0
  %2906 = vmatprep.subr.mxu0 0.0
  %2907 = vmatpush2.msra.mxu0 0.0
  %2908 = vmatprep.subr.mxu0 0.0
  %2909 = vmatpush2.msra.mxu0 0.0
  %2910 = vmatprep.subr.mxu0 0.0
  %2911 = vmatpush2.msra.mxu0 0.0
  %2912 = vmatprep.subr.mxu0 0.0
  %2913 = vmatpush2.msra.mxu0 %v2839
  %2914 = vmatprep.subr.mxu0 0.0
  %2915 = vmatpush2.msra.mxu0 %v2838
  %2916 = vmatprep.subr.mxu0 0.0
  %2917 = vmatpush2.msra.mxu0 %v2837
  %2918 = vmatprep.subr.mxu0 0.0
  %2919 = vmatpush2.msra.mxu0 %v2836
  %2920 = vmatprep.mubr.f32.mxu0 %v2842
  %2921 = vmatmul.mubr.f32.gmra.mxu0 %v2810
  %v2922 = vpop.f32.mrf.mxu0
  %v2923 = vadd.f32 0.0, %v2922
  %v2924 = vpop.f32.mrf.mxu0
  %2925 = vmatprep.mubr.f32.mxu0 %v2845
  %2926 = vmatmul.mubr.f32.gmra.mxu0 %v2812
  %v2927 = vpop.f32.mrf.mxu0
  %v2928 = vadd.f32 0.0, %v2927
  %v2929 = vpop.f32.mrf.mxu0
  %2930 = vmatprep.mubr.f32.mxu0 %v2848
  %2931 = vmatmul.mubr.f32.gmra.mxu0 %v2814
  %v2932 = vpop.f32.mrf.mxu0
  %v2933 = vadd.f32 0.0, %v2932
  %v2934 = vpop.f32.mrf.mxu0
  %2935 = vmatprep.mubr.f32.mxu0 %v2851
  %2936 = vmatmul.mubr.f32.gmra.mxu0 %v2816
  %v2937 = vpop.f32.mrf.mxu0
  %v2938 = vadd.f32 0.0, %v2937
  %v2939 = vpop.f32.mrf.mxu0
  %2940 = vmatprep.mubr.f32.mxu0 %v2854
  %2941 = vmatmul.mubr.f32.gmra.mxu0 %v2818
  %v2942 = vpop.f32.mrf.mxu0
  %v2943 = vadd.f32 0.0, %v2942
  %v2944 = vpop.f32.mrf.mxu0
  %2945 = vdwg.mxu0
  %s2946 = scalar_lea.vmem %s6, 160
  %v2947 = vld [vmem:[%s2946] sm:$0xff]
  %v2948 = vld [vmem:[%s2946 + $0x8] sm:$0xff]
  %v2949 = vld [vmem:[%s2946 + $0x10] sm:$0xff]
  %v2950 = vld [vmem:[%s2946 + $0x18] sm:$0xff]
  %v2951 = vld [vmem:[%s2946 + $0x20] sm:$0xff]
  %v2952 = vld [vmem:[%s2946 + $0x28] sm:$0xff]
  %v2953 = vld [vmem:[%s2946 + $0x30] sm:$0xff]
  %v2954 = vld [vmem:[%s2946 + $0x38] sm:$0xff]
  %v2955 = vld [vmem:[%s2946 + $0x40] sm:$0xff]
  %v2956 = vld [vmem:[%s2946 + $0x48] sm:$0xff]
  %v2957 = vld [vmem:[%s2946 + $0x50] sm:$0xff]
  %v2958 = vld [vmem:[%s2946 + $0x58] sm:$0xff]
  %v2959 = vld [vmem:[%s2946 + $0x60] sm:$0xff]
  %v2960 = vld [vmem:[%s2946 + $0x68] sm:$0xff]
  %v2961 = vld [vmem:[%s2946 + $0x70] sm:$0xff]
  %v2962 = vld [vmem:[%s2946 + $0x78] sm:$0xff]
  %v2963 = vld [vmem:[%s2946 + $0x80] sm:$0xff]
  %v2964 = vld [vmem:[%s2946 + $0x88] sm:$0xff]
  %v2965 = vld [vmem:[%s2946 + $0x90] sm:$0xff]
  %v2966 = vld [vmem:[%s2946 + $0x98] sm:$0xff]
  %2967 = vmatprep.subr.mxu0 0.0
  %2968 = vmatpush1.msra.mxu0 %v2962
  %2969 = vmatprep.subr.mxu0 0.0
  %2970 = vmatpush1.msra.mxu0 %v2961
  %2971 = vmatprep.subr.mxu0 0.0
  %2972 = vmatpush1.msra.mxu0 %v2960
  %2973 = vmatprep.subr.mxu0 0.0
  %2974 = vmatpush1.msra.mxu0 %v2959
  %2975 = vmatprep.subr.mxu0 0.0
  %2976 = vmatpush1.msra.mxu0 %v2958
  %2977 = vmatprep.subr.mxu0 0.0
  %2978 = vmatpush1.msra.mxu0 %v2957
  %2979 = vmatprep.subr.mxu0 0.0
  %2980 = vmatpush1.msra.mxu0 %v2956
  %2981 = vmatprep.subr.mxu0 0.0
  %2982 = vmatpush1.msra.mxu0 %v2955
  %2983 = vmatprep.subr.mxu0 0.0
  %2984 = vmatpush1.msra.mxu0 %v2954
  %2985 = vmatprep.subr.mxu0 0.0
  %2986 = vmatpush1.msra.mxu0 %v2953
  %2987 = vmatprep.subr.mxu0 0.0
  %2988 = vmatpush1.msra.mxu0 %v2952
  %2989 = vmatprep.subr.mxu0 0.0
  %2990 = vmatpush1.msra.mxu0 %v2951
  %2991 = vmatprep.subr.mxu0 0.0
  %2992 = vmatpush1.msra.mxu0 %v2950
  %2993 = vmatprep.subr.mxu0 0.0
  %2994 = vmatpush1.msra.mxu0 %v2949
  %2995 = vmatprep.subr.mxu0 0.0
  %2996 = vmatpush1.msra.mxu0 %v2948
  %2997 = vmatprep.subr.mxu0 0.0
  %2998 = vmatpush1.msra.mxu0 %v2947
  %2999 = vmatprep.subr.mxu0 0.0
  %3000 = vmatpush2.msra.mxu0 0.0
  %3001 = vmatprep.subr.mxu0 0.0
  %3002 = vmatpush2.msra.mxu0 0.0
  %3003 = vmatprep.subr.mxu0 0.0
  %3004 = vmatpush2.msra.mxu0 0.0
  %3005 = vmatprep.subr.mxu0 0.0
  %3006 = vmatpush2.msra.mxu0 0.0
  %3007 = vmatprep.subr.mxu0 0.0
  %3008 = vmatpush2.msra.mxu0 0.0
  %3009 = vmatprep.subr.mxu0 0.0
  %3010 = vmatpush2.msra.mxu0 0.0
  %3011 = vmatprep.subr.mxu0 0.0
  %3012 = vmatpush2.msra.mxu0 0.0
  %3013 = vmatprep.subr.mxu0 0.0
  %3014 = vmatpush2.msra.mxu0 0.0
  %3015 = vmatprep.subr.mxu0 0.0
  %3016 = vmatpush2.msra.mxu0 0.0
  %3017 = vmatprep.subr.mxu0 0.0
  %3018 = vmatpush2.msra.mxu0 0.0
  %3019 = vmatprep.subr.mxu0 0.0
  %3020 = vmatpush2.msra.mxu0 0.0
  %3021 = vmatprep.subr.mxu0 0.0
  %3022 = vmatpush2.msra.mxu0 0.0
  %3023 = vmatprep.subr.mxu0 0.0
  %3024 = vmatpush2.msra.mxu0 %v2966
  %3025 = vmatprep.subr.mxu0 0.0
  %3026 = vmatpush2.msra.mxu0 %v2965
  %3027 = vmatprep.subr.mxu0 0.0
  %3028 = vmatpush2.msra.mxu0 %v2964
  %3029 = vmatprep.subr.mxu0 0.0
  %3030 = vmatpush2.msra.mxu0 %v2963
  %3031 = vmatprep.mubr.f32.mxu0 %v2842
  %3032 = vmatmul.mubr.f32.gmra.mxu0 %v2810
  %v3033 = vpop.f32.mrf.mxu0
  %v3034 = vadd.f32 0.0, %v3033
  %v3035 = vpop.f32.mrf.mxu0
  %3036 = vmatprep.mubr.f32.mxu0 %v2845
  %3037 = vmatmul.mubr.f32.gmra.mxu0 %v2812
  %v3038 = vpop.f32.mrf.mxu0
  %v3039 = vadd.f32 0.0, %v3038
  %v3040 = vpop.f32.mrf.mxu0
  %3041 = vmatprep.mubr.f32.mxu0 %v2848
  %3042 = vmatmul.mubr.f32.gmra.mxu0 %v2814
  %v3043 = vpop.f32.mrf.mxu0
  %v3044 = vadd.f32 0.0, %v3043
  %v3045 = vpop.f32.mrf.mxu0
  %3046 = vmatprep.mubr.f32.mxu0 %v2851
  %3047 = vmatmul.mubr.f32.gmra.mxu0 %v2816
  %v3048 = vpop.f32.mrf.mxu0
  %v3049 = vadd.f32 0.0, %v3048
  %v3050 = vpop.f32.mrf.mxu0
  %3051 = vmatprep.mubr.f32.mxu0 %v2854
  %3052 = vmatmul.mubr.f32.gmra.mxu0 %v2818
  %v3053 = vpop.f32.mrf.mxu0
  %v3054 = vadd.f32 0.0, %v3053
  %v3055 = vpop.f32.mrf.mxu0
  %3056 = vdwg.mxu0
  %v3057 = vmax.f32 %v2923, %v3034
  %v3058 = vmax.f32 %v2928, %v3039
  %v3059 = vmax.f32 %v2933, %v3044
  %v3060 = vmax.f32 %v2938, %v3049
  %v3061 = vmax.f32 %v2943, %v3054
  %v3062 = vld [vmem:[%s7] sm:$0xff]
  %v3063 = vld [vmem:[%s7 + $0x8] sm:$0xff]
  %v3064 = vld [vmem:[%s7 + $0x10] sm:$0xff]
  %v3065 = vld [vmem:[%s7 + $0x18] sm:$0xff]
  %v3066 = vld [vmem:[%s7 + $0x20] sm:$0xff]
  %v3067 = vld [vmem:[%s7 + $0x28] sm:$0xff]
  %v3068 = vld [vmem:[%s7 + $0x30] sm:$0xff]
  %v3069 = vld [vmem:[%s7 + $0x38] sm:$0xff]
  %v3070 = vld [vmem:[%s7 + $0x40] sm:$0xff]
  %v3071 = vld [vmem:[%s7 + $0x48] sm:$0xff]
  %s3072 = scalar_lea.vmem %s7, 80
  %v3073 = vld [vmem:[%s3072] sm:$0xff]
  %v3074 = vld [vmem:[%s3072 + $0x8] sm:$0xff]
  %v3075 = vld [vmem:[%s3072 + $0x10] sm:$0xff]
  %v3076 = vld [vmem:[%s3072 + $0x18] sm:$0xff]
  %v3077 = vld [vmem:[%s3072 + $0x20] sm:$0xff]
  %v3078 = vld [vmem:[%s3072 + $0x28] sm:$0xff]
  %v3079 = vld [vmem:[%s3072 + $0x30] sm:$0xff]
  %v3080 = vld [vmem:[%s3072 + $0x38] sm:$0xff]
  %v3081 = vld [vmem:[%s3072 + $0x40] sm:$0xff]
  %v3082 = vld [vmem:[%s3072 + $0x48] sm:$0xff]
  %vm3083 = vcmask 654336
  %v3085 = vsel %vm3083, %v3058, 0
  %3087 = vmatprep.subr.mxu0 0.0
  %3088 = vmatpush1.msra.mxu0 0.0
  %3089 = vmatprep.subr.mxu0 0.0
  %3090 = vmatpush1.msra.mxu0 0.0
  %3091 = vmatprep.subr.mxu0 0.0
  %3092 = vmatpush1.msra.mxu0 0.0
  %3093 = vmatprep.subr.mxu0 0.0
  %3094 = vmatpush1.msra.mxu0 0.0
  %3095 = vmatprep.subr.mxu0 0.0
  %3096 = vmatpush1.msra.mxu0 0.0
  %3097 = vmatprep.subr.mxu0 0.0
  %3098 = vmatpush1.msra.mxu0 0.0
  %3099 = vmatprep.subr.mxu0 0.0
  %3100 = vmatpush1.msra.mxu0 %v3082
  %3101 = vmatprep.subr.mxu0 0.0
  %3102 = vmatpush1.msra.mxu0 %v3081
  %3103 = vmatprep.subr.mxu0 0.0
  %3104 = vmatpush1.msra.mxu0 %v3080
  %3105 = vmatprep.subr.mxu0 0.0
  %3106 = vmatpush1.msra.mxu0 %v3079
  %3107 = vmatprep.subr.mxu0 0.0
  %3108 = vmatpush1.msra.mxu0 %v3078
  %3109 = vmatprep.subr.mxu0 0.0
  %3110 = vmatpush1.msra.mxu0 %v3077
  %3111 = vmatprep.subr.mxu0 0.0
  %3112 = vmatpush1.msra.mxu0 %v3076
  %3113 = vmatprep.subr.mxu0 0.0
  %3114 = vmatpush1.msra.mxu0 %v3075
  %3115 = vmatprep.subr.mxu0 0.0
  %3116 = vmatpush1.msra.mxu0 %v3074
  %3117 = vmatprep.subr.mxu0 0.0
  %3118 = vmatpush1.msra.mxu0 %v3073
  %3119 = vmatprep.subr.mxu0 0.0
  %3120 = vmatpush2.msra.mxu0 0.0
  %3121 = vmatprep.subr.mxu0 0.0
  %3122 = vmatpush2.msra.mxu0 0.0
  %3123 = vmatprep.subr.mxu0 0.0
  %3124 = vmatpush2.msra.mxu0 0.0
  %3125 = vmatprep.subr.mxu0 0.0
  %3126 = vmatpush2.msra.mxu0 0.0
  %3127 = vmatprep.subr.mxu0 0.0
  %3128 = vmatpush2.msra.mxu0 0.0
  %3129 = vmatprep.subr.mxu0 0.0
  %3130 = vmatpush2.msra.mxu0 0.0
  %3131 = vmatprep.subr.mxu0 0.0
  %3132 = vmatpush2.msra.mxu0 0.0
  %3133 = vmatprep.subr.mxu0 0.0
  %3134 = vmatpush2.msra.mxu0 0.0
  %3135 = vmatprep.subr.mxu0 0.0
  %3136 = vmatpush2.msra.mxu0 0.0
  %3137 = vmatprep.subr.mxu0 0.0
  %3138 = vmatpush2.msra.mxu0 0.0
  %3139 = vmatprep.subr.mxu0 0.0
  %3140 = vmatpush2.msra.mxu0 0.0
  %3141 = vmatprep.subr.mxu0 0.0
  %3142 = vmatpush2.msra.mxu0 0.0
  %3143 = vmatprep.subr.mxu0 0.0
  %3144 = vmatpush2.msra.mxu0 0.0
  %3145 = vmatprep.subr.mxu0 0.0
  %3146 = vmatpush2.msra.mxu0 0.0
  %3147 = vmatprep.subr.mxu0 0.0
  %3148 = vmatpush2.msra.mxu0 0.0
  %3149 = vmatprep.subr.mxu0 0.0
  %3150 = vmatpush2.msra.mxu0 0.0
  %3151 = vmatprep.mubr.f32.mxu0 0.0
  %3152 = vmatmul.mubr.f32.gmra.mxu0 %v3085
  %v3153 = vpop.f32.mrf.mxu0
  %v3154 = vadd.f32 0.0, %v3153
  %v3155 = vpop.f32.mrf.mxu0
  %3156 = vdwg.mxu0
  %v3158 = vsel %vm3083, %v3057, 0
  %3160 = vmatprep.subr.mxu0 0.0
  %3161 = vmatpush1.msra.mxu0 0.0
  %3162 = vmatprep.subr.mxu0 0.0
  %3163 = vmatpush1.msra.mxu0 0.0
  %3164 = vmatprep.subr.mxu0 0.0
  %3165 = vmatpush1.msra.mxu0 0.0
  %3166 = vmatprep.subr.mxu0 0.0
  %3167 = vmatpush1.msra.mxu0 0.0
  %3168 = vmatprep.subr.mxu0 0.0
  %3169 = vmatpush1.msra.mxu0 0.0
  %3170 = vmatprep.subr.mxu0 0.0
  %3171 = vmatpush1.msra.mxu0 0.0
  %3172 = vmatprep.subr.mxu0 0.0
  %3173 = vmatpush1.msra.mxu0 %v3071
  %3174 = vmatprep.subr.mxu0 0.0
  %3175 = vmatpush1.msra.mxu0 %v3070
  %3176 = vmatprep.subr.mxu0 0.0
  %3177 = vmatpush1.msra.mxu0 %v3069
  %3178 = vmatprep.subr.mxu0 0.0
  %3179 = vmatpush1.msra.mxu0 %v3068
  %3180 = vmatprep.subr.mxu0 0.0
  %3181 = vmatpush1.msra.mxu0 %v3067
  %3182 = vmatprep.subr.mxu0 0.0
  %3183 = vmatpush1.msra.mxu0 %v3066
  %3184 = vmatprep.subr.mxu0 0.0
  %3185 = vmatpush1.msra.mxu0 %v3065
  %3186 = vmatprep.subr.mxu0 0.0
  %3187 = vmatpush1.msra.mxu0 %v3064
  %3188 = vmatprep.subr.mxu0 0.0
  %3189 = vmatpush1.msra.mxu0 %v3063
  %3190 = vmatprep.subr.mxu0 0.0
  %3191 = vmatpush1.msra.mxu0 %v3062
  %3192 = vmatprep.subr.mxu0 0.0
  %3193 = vmatpush2.msra.mxu0 0.0
  %3194 = vmatprep.subr.mxu0 0.0
  %3195 = vmatpush2.msra.mxu0 0.0
  %3196 = vmatprep.subr.mxu0 0.0
  %3197 = vmatpush2.msra.mxu0 0.0
  %3198 = vmatprep.subr.mxu0 0.0
  %3199 = vmatpush2.msra.mxu0 0.0
  %3200 = vmatprep.subr.mxu0 0.0
  %3201 = vmatpush2.msra.mxu0 0.0
  %3202 = vmatprep.subr.mxu0 0.0
  %3203 = vmatpush2.msra.mxu0 0.0
  %3204 = vmatprep.subr.mxu0 0.0
  %3205 = vmatpush2.msra.mxu0 0.0
  %3206 = vmatprep.subr.mxu0 0.0
  %3207 = vmatpush2.msra.mxu0 0.0
  %3208 = vmatprep.subr.mxu0 0.0
  %3209 = vmatpush2.msra.mxu0 0.0
  %3210 = vmatprep.subr.mxu0 0.0
  %3211 = vmatpush2.msra.mxu0 0.0
  %3212 = vmatprep.subr.mxu0 0.0
  %3213 = vmatpush2.msra.mxu0 0.0
  %3214 = vmatprep.subr.mxu0 0.0
  %3215 = vmatpush2.msra.mxu0 0.0
  %3216 = vmatprep.subr.mxu0 0.0
  %3217 = vmatpush2.msra.mxu0 0.0
  %3218 = vmatprep.subr.mxu0 0.0
  %3219 = vmatpush2.msra.mxu0 0.0
  %3220 = vmatprep.subr.mxu0 0.0
  %3221 = vmatpush2.msra.mxu0 0.0
  %3222 = vmatprep.subr.mxu0 0.0
  %3223 = vmatpush2.msra.mxu0 0.0
  %3224 = vmatprep.mubr.f32.mxu0 0.0
  %3225 = vmatmul.mubr.f32.gmra.mxu0 %v3158
  %v3226 = vpop.f32.mrf.mxu0
  %v3227 = vadd.f32 %v3154, %v3226
  %v3228 = vpop.f32.mrf.mxu0
  %3229 = vdwg.mxu0
  %s3230 = scalar_lea.vmem %s7, 160
  %v3231 = vld [vmem:[%s3230] sm:$0xff]
  %v3232 = vld [vmem:[%s3230 + $0x8] sm:$0xff]
  %v3233 = vld [vmem:[%s3230 + $0x10] sm:$0xff]
  %v3234 = vld [vmem:[%s3230 + $0x18] sm:$0xff]
  %v3235 = vld [vmem:[%s3230 + $0x20] sm:$0xff]
  %v3236 = vld [vmem:[%s3230 + $0x28] sm:$0xff]
  %v3237 = vld [vmem:[%s3230 + $0x30] sm:$0xff]
  %v3238 = vld [vmem:[%s3230 + $0x38] sm:$0xff]
  %v3239 = vld [vmem:[%s3230 + $0x40] sm:$0xff]
  %v3240 = vld [vmem:[%s3230 + $0x48] sm:$0xff]
  %v3242 = vsel %vm3083, %v3059, 0
  %3244 = vmatprep.subr.mxu0 0.0
  %3245 = vmatpush1.msra.mxu0 0.0
  %3246 = vmatprep.subr.mxu0 0.0
  %3247 = vmatpush1.msra.mxu0 0.0
  %3248 = vmatprep.subr.mxu0 0.0
  %3249 = vmatpush1.msra.mxu0 0.0
  %3250 = vmatprep.subr.mxu0 0.0
  %3251 = vmatpush1.msra.mxu0 0.0
  %3252 = vmatprep.subr.mxu0 0.0
  %3253 = vmatpush1.msra.mxu0 0.0
  %3254 = vmatprep.subr.mxu0 0.0
  %3255 = vmatpush1.msra.mxu0 0.0
  %3256 = vmatprep.subr.mxu0 0.0
  %3257 = vmatpush1.msra.mxu0 %v3240
  %3258 = vmatprep.subr.mxu0 0.0
  %3259 = vmatpush1.msra.mxu0 %v3239
  %3260 = vmatprep.subr.mxu0 0.0
  %3261 = vmatpush1.msra.mxu0 %v3238
  %3262 = vmatprep.subr.mxu0 0.0
  %3263 = vmatpush1.msra.mxu0 %v3237
  %3264 = vmatprep.subr.mxu0 0.0
  %3265 = vmatpush1.msra.mxu0 %v3236
  %3266 = vmatprep.subr.mxu0 0.0
  %3267 = vmatpush1.msra.mxu0 %v3235
  %3268 = vmatprep.subr.mxu0 0.0
  %3269 = vmatpush1.msra.mxu0 %v3234
  %3270 = vmatprep.subr.mxu0 0.0
  %3271 = vmatpush1.msra.mxu0 %v3233
  %3272 = vmatprep.subr.mxu0 0.0
  %3273 = vmatpush1.msra.mxu0 %v3232
  %3274 = vmatprep.subr.mxu0 0.0
  %3275 = vmatpush1.msra.mxu0 %v3231
  %3276 = vmatprep.subr.mxu0 0.0
  %3277 = vmatpush2.msra.mxu0 0.0
  %3278 = vmatprep.subr.mxu0 0.0
  %3279 = vmatpush2.msra.mxu0 0.0
  %3280 = vmatprep.subr.mxu0 0.0
  %3281 = vmatpush2.msra.mxu0 0.0
  %3282 = vmatprep.subr.mxu0 0.0
  %3283 = vmatpush2.msra.mxu0 0.0
  %3284 = vmatprep.subr.mxu0 0.0
  %3285 = vmatpush2.msra.mxu0 0.0
  %3286 = vmatprep.subr.mxu0 0.0
  %3287 = vmatpush2.msra.mxu0 0.0
  %3288 = vmatprep.subr.mxu0 0.0
  %3289 = vmatpush2.msra.mxu0 0.0
  %3290 = vmatprep.subr.mxu0 0.0
  %3291 = vmatpush2.msra.mxu0 0.0
  %3292 = vmatprep.subr.mxu0 0.0
  %3293 = vmatpush2.msra.mxu0 0.0
  %3294 = vmatprep.subr.mxu0 0.0
  %3295 = vmatpush2.msra.mxu0 0.0
  %3296 = vmatprep.subr.mxu0 0.0
  %3297 = vmatpush2.msra.mxu0 0.0
  %3298 = vmatprep.subr.mxu0 0.0
  %3299 = vmatpush2.msra.mxu0 0.0
  %3300 = vmatprep.subr.mxu0 0.0
  %3301 = vmatpush2.msra.mxu0 0.0
  %3302 = vmatprep.subr.mxu0 0.0
  %3303 = vmatpush2.msra.mxu0 0.0
  %3304 = vmatprep.subr.mxu0 0.0
  %3305 = vmatpush2.msra.mxu0 0.0
  %3306 = vmatprep.subr.mxu0 0.0
  %3307 = vmatpush2.msra.mxu0 0.0
  %3308 = vmatprep.mubr.f32.mxu0 0.0
  %3309 = vmatmul.mubr.f32.gmra.mxu0 %v3242
  %v3310 = vpop.f32.mrf.mxu0
  %v3311 = vadd.f32 0.0, %v3310
  %v3312 = vpop.f32.mrf.mxu0
  %3313 = vdwg.mxu0
  %v3314 = vadd.f32 %v3227, %v3311
  %s3315 = scalar_lea.vmem %s7, 240
  %v3316 = vld [vmem:[%s3315] sm:$0xff]
  %v3317 = vld [vmem:[%s3315 + $0x8] sm:$0xff]
  %v3318 = vld [vmem:[%s3315 + $0x10] sm:$0xff]
  %v3319 = vld [vmem:[%s3315 + $0x18] sm:$0xff]
  %v3320 = vld [vmem:[%s3315 + $0x20] sm:$0xff]
  %v3321 = vld [vmem:[%s3315 + $0x28] sm:$0xff]
  %v3322 = vld [vmem:[%s3315 + $0x30] sm:$0xff]
  %v3323 = vld [vmem:[%s3315 + $0x38] sm:$0xff]
  %v3324 = vld [vmem:[%s3315 + $0x40] sm:$0xff]
  %v3325 = vld [vmem:[%s3315 + $0x48] sm:$0xff]
  %v3327 = vsel %vm3083, %v3060, 0
  %3329 = vmatprep.subr.mxu0 0.0
  %3330 = vmatpush1.msra.mxu0 0.0
  %3331 = vmatprep.subr.mxu0 0.0
  %3332 = vmatpush1.msra.mxu0 0.0
  %3333 = vmatprep.subr.mxu0 0.0
  %3334 = vmatpush1.msra.mxu0 0.0
  %3335 = vmatprep.subr.mxu0 0.0
  %3336 = vmatpush1.msra.mxu0 0.0
  %3337 = vmatprep.subr.mxu0 0.0
  %3338 = vmatpush1.msra.mxu0 0.0
  %3339 = vmatprep.subr.mxu0 0.0
  %3340 = vmatpush1.msra.mxu0 0.0
  %3341 = vmatprep.subr.mxu0 0.0
  %3342 = vmatpush1.msra.mxu0 %v3325
  %3343 = vmatprep.subr.mxu0 0.0
  %3344 = vmatpush1.msra.mxu0 %v3324
  %3345 = vmatprep.subr.mxu0 0.0
  %3346 = vmatpush1.msra.mxu0 %v3323
  %3347 = vmatprep.subr.mxu0 0.0
  %3348 = vmatpush1.msra.mxu0 %v3322
  %3349 = vmatprep.subr.mxu0 0.0
  %3350 = vmatpush1.msra.mxu0 %v3321
  %3351 = vmatprep.subr.mxu0 0.0
  %3352 = vmatpush1.msra.mxu0 %v3320
  %3353 = vmatprep.subr.mxu0 0.0
  %3354 = vmatpush1.msra.mxu0 %v3319
  %3355 = vmatprep.subr.mxu0 0.0
  %3356 = vmatpush1.msra.mxu0 %v3318
  %3357 = vmatprep.subr.mxu0 0.0
  %3358 = vmatpush1.msra.mxu0 %v3317
  %3359 = vmatprep.subr.mxu0 0.0
  %3360 = vmatpush1.msra.mxu0 %v3316
  %3361 = vmatprep.subr.mxu0 0.0
  %3362 = vmatpush2.msra.mxu0 0.0
  %3363 = vmatprep.subr.mxu0 0.0
  %3364 = vmatpush2.msra.mxu0 0.0
  %3365 = vmatprep.subr.mxu0 0.0
  %3366 = vmatpush2.msra.mxu0 0.0
  %3367 = vmatprep.subr.mxu0 0.0
  %3368 = vmatpush2.msra.mxu0 0.0
  %3369 = vmatprep.subr.mxu0 0.0
  %3370 = vmatpush2.msra.mxu0 0.0
  %3371 = vmatprep.subr.mxu0 0.0
  %3372 = vmatpush2.msra.mxu0 0.0
  %3373 = vmatprep.subr.mxu0 0.0
  %3374 = vmatpush2.msra.mxu0 0.0
  %3375 = vmatprep.subr.mxu0 0.0
  %3376 = vmatpush2.msra.mxu0 0.0
  %3377 = vmatprep.subr.mxu0 0.0
  %3378 = vmatpush2.msra.mxu0 0.0
  %3379 = vmatprep.subr.mxu0 0.0
  %3380 = vmatpush2.msra.mxu0 0.0
  %3381 = vmatprep.subr.mxu0 0.0
  %3382 = vmatpush2.msra.mxu0 0.0
  %3383 = vmatprep.subr.mxu0 0.0
  %3384 = vmatpush2.msra.mxu0 0.0
  %3385 = vmatprep.subr.mxu0 0.0
  %3386 = vmatpush2.msra.mxu0 0.0
  %3387 = vmatprep.subr.mxu0 0.0
  %3388 = vmatpush2.msra.mxu0 0.0
  %3389 = vmatprep.subr.mxu0 0.0
  %3390 = vmatpush2.msra.mxu0 0.0
  %3391 = vmatprep.subr.mxu0 0.0
  %3392 = vmatpush2.msra.mxu0 0.0
  %3393 = vmatprep.mubr.f32.mxu0 0.0
  %3394 = vmatmul.mubr.f32.gmra.mxu0 %v3327
  %v3395 = vpop.f32.mrf.mxu0
  %v3396 = vadd.f32 0.0, %v3395
  %v3397 = vpop.f32.mrf.mxu0
  %3398 = vdwg.mxu0
  %v3399 = vadd.f32 %v3314, %v3396
  %s3400 = scalar_lea.vmem %s7, 320
  %v3401 = vld [vmem:[%s3400] sm:$0xff]
  %v3402 = vld [vmem:[%s3400 + $0x8] sm:$0xff]
  %v3403 = vld [vmem:[%s3400 + $0x10] sm:$0xff]
  %v3404 = vld [vmem:[%s3400 + $0x18] sm:$0xff]
  %v3405 = vld [vmem:[%s3400 + $0x20] sm:$0xff]
  %v3406 = vld [vmem:[%s3400 + $0x28] sm:$0xff]
  %v3407 = vld [vmem:[%s3400 + $0x30] sm:$0xff]
  %v3408 = vld [vmem:[%s3400 + $0x38] sm:$0xff]
  %v3409 = vld [vmem:[%s3400 + $0x40] sm:$0xff]
  %v3410 = vld [vmem:[%s3400 + $0x48] sm:$0xff]
  %v3412 = vsel %vm3083, %v3061, 0
  %3414 = vmatprep.subr.mxu0 0.0
  %3415 = vmatpush1.msra.mxu0 0.0
  %3416 = vmatprep.subr.mxu0 0.0
  %3417 = vmatpush1.msra.mxu0 0.0
  %3418 = vmatprep.subr.mxu0 0.0
  %3419 = vmatpush1.msra.mxu0 0.0
  %3420 = vmatprep.subr.mxu0 0.0
  %3421 = vmatpush1.msra.mxu0 0.0
  %3422 = vmatprep.subr.mxu0 0.0
  %3423 = vmatpush1.msra.mxu0 0.0
  %3424 = vmatprep.subr.mxu0 0.0
  %3425 = vmatpush1.msra.mxu0 0.0
  %3426 = vmatprep.subr.mxu0 0.0
  %3427 = vmatpush1.msra.mxu0 %v3410
  %3428 = vmatprep.subr.mxu0 0.0
  %3429 = vmatpush1.msra.mxu0 %v3409
  %3430 = vmatprep.subr.mxu0 0.0
  %3431 = vmatpush1.msra.mxu0 %v3408
  %3432 = vmatprep.subr.mxu0 0.0
  %3433 = vmatpush1.msra.mxu0 %v3407
  %3434 = vmatprep.subr.mxu0 0.0
  %3435 = vmatpush1.msra.mxu0 %v3406
  %3436 = vmatprep.subr.mxu0 0.0
  %3437 = vmatpush1.msra.mxu0 %v3405
  %3438 = vmatprep.subr.mxu0 0.0
  %3439 = vmatpush1.msra.mxu0 %v3404
  %3440 = vmatprep.subr.mxu0 0.0
  %3441 = vmatpush1.msra.mxu0 %v3403
  %3442 = vmatprep.subr.mxu0 0.0
  %3443 = vmatpush1.msra.mxu0 %v3402
  %3444 = vmatprep.subr.mxu0 0.0
  %3445 = vmatpush1.msra.mxu0 %v3401
  %3446 = vmatprep.subr.mxu0 0.0
  %3447 = vmatpush2.msra.mxu0 0.0
  %3448 = vmatprep.subr.mxu0 0.0
  %3449 = vmatpush2.msra.mxu0 0.0
  %3450 = vmatprep.subr.mxu0 0.0
  %3451 = vmatpush2.msra.mxu0 0.0
  %3452 = vmatprep.subr.mxu0 0.0
  %3453 = vmatpush2.msra.mxu0 0.0
  %3454 = vmatprep.subr.mxu0 0.0
  %3455 = vmatpush2.msra.mxu0 0.0
  %3456 = vmatprep.subr.mxu0 0.0
  %3457 = vmatpush2.msra.mxu0 0.0
  %3458 = vmatprep.subr.mxu0 0.0
  %3459 = vmatpush2.msra.mxu0 0.0
  %3460 = vmatprep.subr.mxu0 0.0
  %3461 = vmatpush2.msra.mxu0 0.0
  %3462 = vmatprep.subr.mxu0 0.0
  %3463 = vmatpush2.msra.mxu0 0.0
  %3464 = vmatprep.subr.mxu0 0.0
  %3465 = vmatpush2.msra.mxu0 0.0
  %3466 = vmatprep.subr.mxu0 0.0
  %3467 = vmatpush2.msra.mxu0 0.0
  %3468 = vmatprep.subr.mxu0 0.0
  %3469 = vmatpush2.msra.mxu0 0.0
  %3470 = vmatprep.subr.mxu0 0.0
  %3471 = vmatpush2.msra.mxu0 0.0
  %3472 = vmatprep.subr.mxu0 0.0
  %3473 = vmatpush2.msra.mxu0 0.0
  %3474 = vmatprep.subr.mxu0 0.0
  %3475 = vmatpush2.msra.mxu0 0.0
  %3476 = vmatprep.subr.mxu0 0.0
  %3477 = vmatpush2.msra.mxu0 0.0
  %3478 = vmatprep.mubr.f32.mxu0 0.0
  %3479 = vmatmul.mubr.f32.gmra.mxu0 %v3412
  %v3480 = vpop.f32.mrf.mxu0
  %v3481 = vadd.f32 0.0, %v3480
  %v3482 = vpop.f32.mrf.mxu0
  %3483 = vdwg.mxu0
  %v3484 = vadd.f32 %v3399, %v3481
  %v3485 = vld [vmem:[%s8] sm:$0x1]
  %v3487 = vlaneseq
  %v3488 = vshrl.u32 %v3487, 7
  %v3489 = vsub.s32 0, %v3488
  %v3490 = vrot.slane %v3485, %v3489
  %v3492 = vadd.f32 %v3484, %v3490
  %v3493 = vmax.f32 %v3492, 0.0
  %v3494 = vld [vmem:[%s9] sm:$0xff]
  %v3495 = vld [vmem:[%s9 + $0x8] sm:$0xff]
  %v3496 = vld [vmem:[%s9 + $0x10] sm:$0xff]
  %v3497 = vld [vmem:[%s9 + $0x18] sm:$0xff]
  %v3498 = vld [vmem:[%s9 + $0x20] sm:$0xff]
  %v3499 = vld [vmem:[%s9 + $0x28] sm:$0xff]
  %v3500 = vld [vmem:[%s9 + $0x30] sm:$0xff]
  %v3501 = vld [vmem:[%s9 + $0x38] sm:$0xff]
  %v3502 = vld [vmem:[%s9 + $0x40] sm:$0xff]
  %v3503 = vld [vmem:[%s9 + $0x48] sm:$0xff]
  %v3504 = vld [vmem:[%s9 + $0x50] sm:$0xff]
  %v3505 = vld [vmem:[%s9 + $0x58] sm:$0xff]
  %v3506 = vld [vmem:[%s9 + $0x60] sm:$0xff]
  %v3507 = vld [vmem:[%s9 + $0x68] sm:$0xff]
  %v3508 = vld [vmem:[%s9 + $0x70] sm:$0xff]
  %v3509 = vld [vmem:[%s10] sm:$0x1]
  %v3511 = vlaneseq
  %v3512 = vshrl.u32 %v3511, 7
  %v3513 = vsub.s32 0, %v3512
  %v3514 = vrot.slane %v3509, %v3513
  %vm3516 = vcmask 982016
  %v3518 = vsel %vm3516, %v3493, 0
  %3520 = vmatprep.subr.mxu0 0.0
  %3521 = vmatpush1.msra.mxu0 0.0
  %3522 = vmatprep.subr.mxu0 0.0
  %3523 = vmatpush1.msra.mxu0 %v3508
  %3524 = vmatprep.subr.mxu0 0.0
  %3525 = vmatpush1.msra.mxu0 %v3507
  %3526 = vmatprep.subr.mxu0 0.0
  %3527 = vmatpush1.msra.mxu0 %v3506
  %3528 = vmatprep.subr.mxu0 0.0
  %3529 = vmatpush1.msra.mxu0 %v3505
  %3530 = vmatprep.subr.mxu0 0.0
  %3531 = vmatpush1.msra.mxu0 %v3504
  %3532 = vmatprep.subr.mxu0 0.0
  %3533 = vmatpush1.msra.mxu0 %v3503
  %3534 = vmatprep.subr.mxu0 0.0
  %3535 = vmatpush1.msra.mxu0 %v3502
  %3536 = vmatprep.subr.mxu0 0.0
  %3537 = vmatpush1.msra.mxu0 %v3501
  %3538 = vmatprep.subr.mxu0 0.0
  %3539 = vmatpush1.msra.mxu0 %v3500
  %3540 = vmatprep.subr.mxu0 0.0
  %3541 = vmatpush1.msra.mxu0 %v3499
  %3542 = vmatprep.subr.mxu0 0.0
  %3543 = vmatpush1.msra.mxu0 %v3498
  %3544 = vmatprep.subr.mxu0 0.0
  %3545 = vmatpush1.msra.mxu0 %v3497
  %3546 = vmatprep.subr.mxu0 0.0
  %3547 = vmatpush1.msra.mxu0 %v3496
  %3548 = vmatprep.subr.mxu0 0.0
  %3549 = vmatpush1.msra.mxu0 %v3495
  %3550 = vmatprep.subr.mxu0 0.0
  %3551 = vmatpush1.msra.mxu0 %v3494
  %3552 = vmatprep.subr.mxu0 0.0
  %3553 = vmatpush2.msra.mxu0 0.0
  %3554 = vmatprep.subr.mxu0 0.0
  %3555 = vmatpush2.msra.mxu0 0.0
  %3556 = vmatprep.subr.mxu0 0.0
  %3557 = vmatpush2.msra.mxu0 0.0
  %3558 = vmatprep.subr.mxu0 0.0
  %3559 = vmatpush2.msra.mxu0 0.0
  %3560 = vmatprep.subr.mxu0 0.0
  %3561 = vmatpush2.msra.mxu0 0.0
  %3562 = vmatprep.subr.mxu0 0.0
  %3563 = vmatpush2.msra.mxu0 0.0
  %3564 = vmatprep.subr.mxu0 0.0
  %3565 = vmatpush2.msra.mxu0 0.0
  %3566 = vmatprep.subr.mxu0 0.0
  %3567 = vmatpush2.msra.mxu0 0.0
  %3568 = vmatprep.subr.mxu0 0.0
  %3569 = vmatpush2.msra.mxu0 0.0
  %3570 = vmatprep.subr.mxu0 0.0
  %3571 = vmatpush2.msra.mxu0 0.0
  %3572 = vmatprep.subr.mxu0 0.0
  %3573 = vmatpush2.msra.mxu0 0.0
  %3574 = vmatprep.subr.mxu0 0.0
  %3575 = vmatpush2.msra.mxu0 0.0
  %3576 = vmatprep.subr.mxu0 0.0
  %3577 = vmatpush2.msra.mxu0 0.0
  %3578 = vmatprep.subr.mxu0 0.0
  %3579 = vmatpush2.msra.mxu0 0.0
  %3580 = vmatprep.subr.mxu0 0.0
  %3581 = vmatpush2.msra.mxu0 0.0
  %3582 = vmatprep.subr.mxu0 0.0
  %3583 = vmatpush2.msra.mxu0 0.0
  %3584 = vmatprep.mubr.f32.mxu0 0.0
  %3585 = vmatmul.mubr.f32.gmra.mxu0 %v3518
  %v3586 = vpop.f32.mrf.mxu0
  %v3587 = vadd.f32 %v3514, %v3586
  %v3588 = vpop.f32.mrf.mxu0
  %3589 = vdwg.mxu0
  %v3590 = vmax.f32 %v3587, 0.0
  %v3591 = vld [vmem:[%s11] sm:$0xff]
  %v3592 = vld [vmem:[%s11 + $0x8] sm:$0xff]
  %v3593 = vld [vmem:[%s11 + $0x10] sm:$0xff]
  %v3594 = vld [vmem:[%s11 + $0x18] sm:$0xff]
  %v3595 = vld [vmem:[%s11 + $0x20] sm:$0xff]
  %v3596 = vld [vmem:[%s11 + $0x28] sm:$0xff]
  %v3597 = vld [vmem:[%s11 + $0x30] sm:$0xff]
  %v3598 = vld [vmem:[%s11 + $0x38] sm:$0xff]
  %v3599 = vld [vmem:[%s11 + $0x40] sm:$0xff]
  %v3600 = vld [vmem:[%s11 + $0x48] sm:$0xff]
  %v3601 = vld [vmem:[%s11 + $0x50] sm:$0xf]
  %v3602 = vld [vmem:[%s12] sm:$0x1]
  %v3604 = vlaneseq
  %v3605 = vshrl.u32 %v3604, 7
  %v3606 = vsub.s32 0, %v3605
  %v3607 = vrot.slane %v3602, %v3606
  %v3610 = vsel %vm1934, %v3590, 0
  %v3613 = vsel %vm162, %v3601, 0
  %3615 = vmatprep.subr.mxu0 0.0
  %3616 = vmatpush1.msra.mxu0 0.0
  %3617 = vmatprep.subr.mxu0 0.0
  %3618 = vmatpush1.msra.mxu0 0.0
  %3619 = vmatprep.subr.mxu0 0.0
  %3620 = vmatpush1.msra.mxu0 0.0
  %3621 = vmatprep.subr.mxu0 0.0
  %3622 = vmatpush1.msra.mxu0 0.0
  %3623 = vmatprep.subr.mxu0 0.0
  %3624 = vmatpush1.msra.mxu0 0.0
  %3625 = vmatprep.subr.mxu0 0.0
  %3626 = vmatpush1.msra.mxu0 %v3613
  %3627 = vmatprep.subr.mxu0 0.0
  %3628 = vmatpush1.msra.mxu0 %v3600
  %3629 = vmatprep.subr.mxu0 0.0
  %3630 = vmatpush1.msra.mxu0 %v3599
  %3631 = vmatprep.subr.mxu0 0.0
  %3632 = vmatpush1.msra.mxu0 %v3598
  %3633 = vmatprep.subr.mxu0 0.0
  %3634 = vmatpush1.msra.mxu0 %v3597
  %3635 = vmatprep.subr.mxu0 0.0
  %3636 = vmatpush1.msra.mxu0 %v3596
  %3637 = vmatprep.subr.mxu0 0.0
  %3638 = vmatpush1.msra.mxu0 %v3595
  %3639 = vmatprep.subr.mxu0 0.0
  %3640 = vmatpush1.msra.mxu0 %v3594
  %3641 = vmatprep.subr.mxu0 0.0
  %3642 = vmatpush1.msra.mxu0 %v3593
  %3643 = vmatprep.subr.mxu0 0.0
  %3644 = vmatpush1.msra.mxu0 %v3592
  %3645 = vmatprep.subr.mxu0 0.0
  %3646 = vmatpush1.msra.mxu0 %v3591
  %3647 = vmatprep.subr.mxu0 0.0
  %3648 = vmatpush2.msra.mxu0 0.0
  %3649 = vmatprep.subr.mxu0 0.0
  %3650 = vmatpush2.msra.mxu0 0.0
  %3651 = vmatprep.subr.mxu0 0.0
  %3652 = vmatpush2.msra.mxu0 0.0
  %3653 = vmatprep.subr.mxu0 0.0
  %3654 = vmatpush2.msra.mxu0 0.0
  %3655 = vmatprep.subr.mxu0 0.0
  %3656 = vmatpush2.msra.mxu0 0.0
  %3657 = vmatprep.subr.mxu0 0.0
  %3658 = vmatpush2.msra.mxu0 0.0
  %3659 = vmatprep.subr.mxu0 0.0
  %3660 = vmatpush2.msra.mxu0 0.0
  %3661 = vmatprep.subr.mxu0 0.0
  %3662 = vmatpush2.msra.mxu0 0.0
  %3663 = vmatprep.subr.mxu0 0.0
  %3664 = vmatpush2.msra.mxu0 0.0
  %3665 = vmatprep.subr.mxu0 0.0
  %3666 = vmatpush2.msra.mxu0 0.0
  %3667 = vmatprep.subr.mxu0 0.0
  %3668 = vmatpush2.msra.mxu0 0.0
  %3669 = vmatprep.subr.mxu0 0.0
  %3670 = vmatpush2.msra.mxu0 0.0
  %3671 = vmatprep.subr.mxu0 0.0
  %3672 = vmatpush2.msra.mxu0 0.0
  %3673 = vmatprep.subr.mxu0 0.0
  %3674 = vmatpush2.msra.mxu0 0.0
  %3675 = vmatprep.subr.mxu0 0.0
  %3676 = vmatpush2.msra.mxu0 0.0
  %3677 = vmatprep.subr.mxu0 0.0
  %3678 = vmatpush2.msra.mxu0 0.0
  %3679 = vmatprep.mubr.f32.mxu0 0.0
  %3680 = vmatmul.mubr.f32.gmra.mxu0 %v3610
  %v3681 = vpop.f32.mrf.mxu0
  %v3682 = vadd.f32 %v3607, %v3681
  %v3683 = vpop.f32.mrf.mxu0
  %3684 = vdwg.mxu0
  %3685 = vst [vmem:[%s13] sm:$0xff] %v3682
  // Predicated region
  $region54: #{cnn_forward.1} parent=0 // pred_check
    _
  $region55: #{cnn_forward.1} parent=0 // pred_check_branch
    %3687 = sbr.rel (0) target = $region57
  $region56: #{cnn_forward.1} parent=0 // pred_region
    _
  $region57: #{cnn_forward.1} parent=0 // pred_fallthru
    _
  // Predicated region
  $region58: #{cnn_forward.1} parent=0 // pred_check
    _
  $region59: #{cnn_forward.1} parent=0 // pred_check_branch
    %3689 = sbr.rel (0) target = $region61
  $region60: #{cnn_forward.1} parent=0 // pred_region
    _
  $region61: #{cnn_forward.1} parent=0 // pred_fallthru
    _

</llo_original>
